<compile_context>
chip_gen: v6e
topology: v6e:2x2x1
jax: 0.10.0
libtpu: 0.0.40
codegen_flags: <defaults>
</compile_context>

<pallas_src>
import jax
import jax.numpy as jnp
from jax.experimental import pallas as pl
from jax.experimental.pallas import tpu as pltpu


def _round_up(a, b):
    return (a + b - 1) // b * b


def _cos_kernel(w_ref, b_ref, x_ref, o_ref):
    """w_ref: SMEM (C*H2,) f32 scalars; b_ref: SMEM (C,) f32 scalars;
    x_ref: VMEM (TN, H, D) input block; o_ref: VMEM (TN, C) f32 output block."""
    _, H, _ = x_ref.shape
    C = o_ref.shape[1]
    H2 = H // 2
    eps_sq = jnp.float32(1e-16)          # (1e-8)^2, clamp applied to s1*s2

    cols = []
    # C and H2 are small compile-time constants -> fully unrolled VPU code.
    for c in range(C):
        w0 = w_ref[c * H2]
        p1 = x_ref[:, 0, :].astype(jnp.float32) * w0            # (TN, D)
        p2 = x_ref[:, H2, :].astype(jnp.float32) * w0
        for h in range(1, H2):
            wh = w_ref[c * H2 + h]
            p1 = p1 + x_ref[:, h, :].astype(jnp.float32) * wh
            p2 = p2 + x_ref[:, H2 + h, :].astype(jnp.float32) * wh
        bc = b_ref[c]
        p1 = p1 + bc
        p2 = p2 + bc

        num = jnp.sum(p1 * p2, axis=-1, keepdims=True)           # (TN, 1)
        s1 = jnp.sum(p1 * p1, axis=-1, keepdims=True)
        s2 = jnp.sum(p2 * p2, axis=-1, keepdims=True)
        # num / max(n1*n2, eps)  ==  num * rsqrt(max(s1*s2, eps^2))
        cols.append(num * jax.lax.rsqrt(jnp.maximum(s1 * s2, eps_sq)))

    o_ref[...] = jnp.concatenate(cols, axis=-1)                  # (TN, C)


def cos_forward(x, conv_weight, conv_bias, shot_num, block_rows=1024):
    """x: (B, S, shot_num, D); conv_weight: (C, 1, shot_num//2, 1); conv_bias: (C,)."""
    B, S, H, D = x.shape
    assert H == shot_num and H % 2 == 0
    H2 = H // 2
    C = conv_weight.shape[0]
    N = B * S

    # Free, contiguous reshape — no transpose, no dtype cast in the wrapper.
    xf = x.reshape(N, H, D)

    # TN rows per grid step (sweepable); keep it a multiple of 8 so the
    # (TN, C) output block satisfies the sublane constraint.
    TN = min(block_rows, _round_up(N, 8))
    N_pad = _round_up(N, TN)
    if N_pad != N:
        xf = jnp.pad(xf, ((0, N_pad - N), (0, 0), (0, 0)))

    # Weights/bias go to SMEM via scalar prefetch; flatten weight to 1-D to
    # avoid 2-D SMEM padding.
    w_flat = conv_weight.reshape(C * H2).astype(jnp.float32)     # w[c*H2 + h]
    b_flat = conv_bias.reshape(C).astype(jnp.float32)

    out = pl.pallas_call(
        _cos_kernel,
        out_shape=jax.ShapeDtypeStruct((N_pad, C), jnp.float32),
        grid_spec=pltpu.PrefetchScalarGridSpec(
            num_scalar_prefetch=2,
            grid=(N_pad // TN,),
            in_specs=[
                pl.BlockSpec((TN, H, D), lambda i, w, b: (i, 0, 0)),
            ],
            out_specs=pl.BlockSpec((TN, C), lambda i, w, b: (i, 0)),
        ),
        compiler_params=pltpu.CompilerParams(
            dimension_semantics=("parallel",)),
    )(w_flat, b_flat, xf)

    return out[:N] if N_pad != N else out


def cos_reference(x, conv_weight, conv_bias, shot_num):
    """Pure-JAX reference mirroring the PyTorch forward (eps clamps the
    product of the norms, as in the F.cosine_similarity docs)."""
    B, S, H, D = x.shape
    H2 = shot_num // 2
    C = conv_weight.shape[0]
    xf = x.reshape(B * S, H, D).astype(jnp.float32)
    w = conv_weight.reshape(C, H2).astype(jnp.float32)
    b = conv_bias.astype(jnp.float32)
    p1 = jnp.einsum("ch,nhd->ncd", w, xf[:, :H2]) + b[None, :, None]
    p2 = jnp.einsum("ch,nhd->ncd", w, xf[:, H2:]) + b[None, :, None]
    num = jnp.sum(p1 * p2, axis=2)
    n1 = jnp.sqrt(jnp.sum(p1 * p1, axis=2))
    n2 = jnp.sqrt(jnp.sum(p2 * p2, axis=2))
    return num / jnp.maximum(n1 * n2, 1e-8)


if __name__ == "__main__":
    # cfg.shot_num = 8, cfg.model.sim_channel = 8
    shot_num = 8
    sim_channel = 8
    B, S, D = 2, 9, 32          # N = 18: exercises row padding
    H2 = shot_num // 2

    key = jax.random.PRNGKey(0)
    kx, kw, kb = jax.random.split(key, 3)
    x = jax.random.normal(kx, (B, S, shot_num, D), dtype=jnp.float32)
    conv_weight = jax.random.normal(kw, (sim_channel, 1, H2, 1), dtype=jnp.float32) * 0.1
    conv_bias = jax.random.normal(kb, (sim_channel,), dtype=jnp.float32) * 0.1

    ref = cos_reference(x, conv_weight, conv_bias, shot_num)

    # Default block size: single grid step at this small N.
    out = jax.block_until_ready(cos_forward(x, conv_weight, conv_bias, shot_num))
    assert out.shape == (B * S, sim_channel), out.shape
    assert jnp.allclose(out, ref, atol=1e-5, rtol=1e-5), (
        float(jnp.max(jnp.abs(out - ref))))

    # Small block size: forces grid > 1 (3 steps) plus padded final rows.
    out2 = jax.block_until_ready(
        cos_forward(x, conv_weight, conv_bias, shot_num, block_rows=8))
    assert jnp.allclose(out2, ref, atol=1e-5, rtol=1e-5), (
        float(jnp.max(jnp.abs(out2 - ref))))

    print("KERNEL_OK")
</pallas_src>

<mosaic_0001>
module attributes {stable_mosaic.version = 11 : i64} {
  func.func @_cos_kernel(%arg0: i32, %arg1: memref<32xf32, #tpu.memory_space<smem>>, %arg2: memref<8xf32, #tpu.memory_space<smem>>, %arg3: memref<24x8x32xf32, #tpu.memory_space<vmem>>, %arg4: memref<24x8xf32, #tpu.memory_space<vmem>>) attributes {dimension_semantics = [#tpu.dimension_semantics<parallel>], iteration_bounds = array<i64: 1>, scalar_prefetch = 2 : i64, scratch_operands = 0 : i64, tpu.core_type = #tpu.core_type<tc>, window_params = [{transform_indices = @transform_0, window_bounds = array<i64: 24, 8, 32>}, {transform_indices = @transform_1, window_bounds = array<i64: 24, 8>}]} {
    %c0 = arith.constant 0 : index
    %0 = memref.load %arg1[%c0] : memref<32xf32, #tpu.memory_space<smem>>
    %c0_0 = arith.constant 0 : index
    %c0_1 = arith.constant 0 : index
    %c0_2 = arith.constant 0 : index
    %1 = vector.load %arg3[%c0_0, %c0_1, %c0_2] : memref<24x8x32xf32, #tpu.memory_space<vmem>>, vector<24x1x32xf32>
    %2 = vector.shape_cast %1 : vector<24x1x32xf32> to vector<24x32xf32>
    %3 = vector.broadcast %0 : f32 to vector<24x32xf32>
    %4 = arith.mulf %2, %3 : vector<24x32xf32>
    %c0_3 = arith.constant 0 : index
    %c4 = arith.constant 4 : index
    %c0_4 = arith.constant 0 : index
    %5 = vector.load %arg3[%c0_3, %c4, %c0_4] : memref<24x8x32xf32, #tpu.memory_space<vmem>>, vector<24x1x32xf32>
    %6 = vector.shape_cast %5 : vector<24x1x32xf32> to vector<24x32xf32>
    %7 = vector.broadcast %0 : f32 to vector<24x32xf32>
    %8 = arith.mulf %6, %7 : vector<24x32xf32>
    %c1 = arith.constant 1 : index
    %9 = memref.load %arg1[%c1] : memref<32xf32, #tpu.memory_space<smem>>
    %c0_5 = arith.constant 0 : index
    %c1_6 = arith.constant 1 : index
    %c0_7 = arith.constant 0 : index
    %10 = vector.load %arg3[%c0_5, %c1_6, %c0_7] : memref<24x8x32xf32, #tpu.memory_space<vmem>>, vector<24x1x32xf32>
    %11 = vector.shape_cast %10 : vector<24x1x32xf32> to vector<24x32xf32>
    %12 = vector.broadcast %9 : f32 to vector<24x32xf32>
    %13 = arith.mulf %11, %12 : vector<24x32xf32>
    %14 = arith.addf %4, %13 : vector<24x32xf32>
    %c0_8 = arith.constant 0 : index
    %c5 = arith.constant 5 : index
    %c0_9 = arith.constant 0 : index
    %15 = vector.load %arg3[%c0_8, %c5, %c0_9] : memref<24x8x32xf32, #tpu.memory_space<vmem>>, vector<24x1x32xf32>
    %16 = vector.shape_cast %15 : vector<24x1x32xf32> to vector<24x32xf32>
    %17 = vector.broadcast %9 : f32 to vector<24x32xf32>
    %18 = arith.mulf %16, %17 : vector<24x32xf32>
    %19 = arith.addf %8, %18 : vector<24x32xf32>
    %c2 = arith.constant 2 : index
    %20 = memref.load %arg1[%c2] : memref<32xf32, #tpu.memory_space<smem>>
    %c0_10 = arith.constant 0 : index
    %c2_11 = arith.constant 2 : index
    %c0_12 = arith.constant 0 : index
    %21 = vector.load %arg3[%c0_10, %c2_11, %c0_12] : memref<24x8x32xf32, #tpu.memory_space<vmem>>, vector<24x1x32xf32>
    %22 = vector.shape_cast %21 : vector<24x1x32xf32> to vector<24x32xf32>
    %23 = vector.broadcast %20 : f32 to vector<24x32xf32>
    %24 = arith.mulf %22, %23 : vector<24x32xf32>
    %25 = arith.addf %14, %24 : vector<24x32xf32>
    %c0_13 = arith.constant 0 : index
    %c6 = arith.constant 6 : index
    %c0_14 = arith.constant 0 : index
    %26 = vector.load %arg3[%c0_13, %c6, %c0_14] : memref<24x8x32xf32, #tpu.memory_space<vmem>>, vector<24x1x32xf32>
    %27 = vector.shape_cast %26 : vector<24x1x32xf32> to vector<24x32xf32>
    %28 = vector.broadcast %20 : f32 to vector<24x32xf32>
    %29 = arith.mulf %27, %28 : vector<24x32xf32>
    %30 = arith.addf %19, %29 : vector<24x32xf32>
    %c3 = arith.constant 3 : index
    %31 = memref.load %arg1[%c3] : memref<32xf32, #tpu.memory_space<smem>>
    %c0_15 = arith.constant 0 : index
    %c3_16 = arith.constant 3 : index
    %c0_17 = arith.constant 0 : index
    %32 = vector.load %arg3[%c0_15, %c3_16, %c0_17] : memref<24x8x32xf32, #tpu.memory_space<vmem>>, vector<24x1x32xf32>
    %33 = vector.shape_cast %32 : vector<24x1x32xf32> to vector<24x32xf32>
    %34 = vector.broadcast %31 : f32 to vector<24x32xf32>
    %35 = arith.mulf %33, %34 : vector<24x32xf32>
    %36 = arith.addf %25, %35 : vector<24x32xf32>
    %c0_18 = arith.constant 0 : index
    %c7 = arith.constant 7 : index
    %c0_19 = arith.constant 0 : index
    %37 = vector.load %arg3[%c0_18, %c7, %c0_19] : memref<24x8x32xf32, #tpu.memory_space<vmem>>, vector<24x1x32xf32>
    %38 = vector.shape_cast %37 : vector<24x1x32xf32> to vector<24x32xf32>
    %39 = vector.broadcast %31 : f32 to vector<24x32xf32>
    %40 = arith.mulf %38, %39 : vector<24x32xf32>
    %41 = arith.addf %30, %40 : vector<24x32xf32>
    %c0_20 = arith.constant 0 : index
    %42 = memref.load %arg2[%c0_20] : memref<8xf32, #tpu.memory_space<smem>>
    %43 = vector.broadcast %42 : f32 to vector<24x32xf32>
    %44 = arith.addf %36, %43 : vector<24x32xf32>
    %45 = vector.broadcast %42 : f32 to vector<24x32xf32>
    %46 = arith.addf %41, %45 : vector<24x32xf32>
    %47 = arith.mulf %44, %46 : vector<24x32xf32>
    %cst = arith.constant dense<0.000000e+00> : vector<24xf32>
    %48 = vector.multi_reduction <add>, %47, %cst [1] : vector<24x32xf32> to vector<24xf32>
    %49 = vector.shape_cast %48 : vector<24xf32> to vector<24x1xf32>
    %50 = arith.mulf %44, %44 : vector<24x32xf32>
    %cst_21 = arith.constant dense<0.000000e+00> : vector<24xf32>
    %51 = vector.multi_reduction <add>, %50, %cst_21 [1] : vector<24x32xf32> to vector<24xf32>
    %52 = vector.shape_cast %51 : vector<24xf32> to vector<24x1xf32>
    %53 = arith.mulf %46, %46 : vector<24x32xf32>
    %cst_22 = arith.constant dense<0.000000e+00> : vector<24xf32>
    %54 = vector.multi_reduction <add>, %53, %cst_22 [1] : vector<24x32xf32> to vector<24xf32>
    %55 = vector.shape_cast %54 : vector<24xf32> to vector<24x1xf32>
    %56 = arith.mulf %52, %55 : vector<24x1xf32>
    %cst_23 = arith.constant 1.000000e-16 : f32
    %57 = vector.broadcast %cst_23 : f32 to vector<24x1xf32>
    %58 = arith.maximumf %56, %57 : vector<24x1xf32>
    %59 = math.rsqrt %58 : vector<24x1xf32>
    %60 = arith.mulf %49, %59 : vector<24x1xf32>
    %c4_24 = arith.constant 4 : index
    %61 = memref.load %arg1[%c4_24] : memref<32xf32, #tpu.memory_space<smem>>
    %c0_25 = arith.constant 0 : index
    %c0_26 = arith.constant 0 : index
    %c0_27 = arith.constant 0 : index
    %62 = vector.load %arg3[%c0_25, %c0_26, %c0_27] : memref<24x8x32xf32, #tpu.memory_space<vmem>>, vector<24x1x32xf32>
    %63 = vector.shape_cast %62 : vector<24x1x32xf32> to vector<24x32xf32>
    %64 = vector.broadcast %61 : f32 to vector<24x32xf32>
    %65 = arith.mulf %63, %64 : vector<24x32xf32>
    %c0_28 = arith.constant 0 : index
    %c4_29 = arith.constant 4 : index
    %c0_30 = arith.constant 0 : index
    %66 = vector.load %arg3[%c0_28, %c4_29, %c0_30] : memref<24x8x32xf32, #tpu.memory_space<vmem>>, vector<24x1x32xf32>
    %67 = vector.shape_cast %66 : vector<24x1x32xf32> to vector<24x32xf32>
    %68 = vector.broadcast %61 : f32 to vector<24x32xf32>
    %69 = arith.mulf %67, %68 : vector<24x32xf32>
    %c5_31 = arith.constant 5 : index
    %70 = memref.load %arg1[%c5_31] : memref<32xf32, #tpu.memory_space<smem>>
    %c0_32 = arith.constant 0 : index
    %c1_33 = arith.constant 1 : index
    %c0_34 = arith.constant 0 : index
    %71 = vector.load %arg3[%c0_32, %c1_33, %c0_34] : memref<24x8x32xf32, #tpu.memory_space<vmem>>, vector<24x1x32xf32>
    %72 = vector.shape_cast %71 : vector<24x1x32xf32> to vector<24x32xf32>
    %73 = vector.broadcast %70 : f32 to vector<24x32xf32>
    %74 = arith.mulf %72, %73 : vector<24x32xf32>
    %75 = arith.addf %65, %74 : vector<24x32xf32>
    %c0_35 = arith.constant 0 : index
    %c5_36 = arith.constant 5 : index
    %c0_37 = arith.constant 0 : index
    %76 = vector.load %arg3[%c0_35, %c5_36, %c0_37] : memref<24x8x32xf32, #tpu.memory_space<vmem>>, vector<24x1x32xf32>
    %77 = vector.shape_cast %76 : vector<24x1x32xf32> to vector<24x32xf32>
    %78 = vector.broadcast %70 : f32 to vector<24x32xf32>
    %79 = arith.mulf %77, %78 : vector<24x32xf32>
    %80 = arith.addf %69, %79 : vector<24x32xf32>
    %c6_38 = arith.constant 6 : index
    %81 = memref.load %arg1[%c6_38] : memref<32xf32, #tpu.memory_space<smem>>
    %c0_39 = arith.constant 0 : index
    %c2_40 = arith.constant 2 : index
    %c0_41 = arith.constant 0 : index
    %82 = vector.load %arg3[%c0_39, %c2_40, %c0_41] : memref<24x8x32xf32, #tpu.memory_space<vmem>>, vector<24x1x32xf32>
    %83 = vector.shape_cast %82 : vector<24x1x32xf32> to vector<24x32xf32>
    %84 = vector.broadcast %81 : f32 to vector<24x32xf32>
    %85 = arith.mulf %83, %84 : vector<24x32xf32>
    %86 = arith.addf %75, %85 : vector<24x32xf32>
    %c0_42 = arith.constant 0 : index
    %c6_43 = arith.constant 6 : index
    %c0_44 = arith.constant 0 : index
    %87 = vector.load %arg3[%c0_42, %c6_43, %c0_44] : memref<24x8x32xf32, #tpu.memory_space<vmem>>, vector<24x1x32xf32>
    %88 = vector.shape_cast %87 : vector<24x1x32xf32> to vector<24x32xf32>
    %89 = vector.broadcast %81 : f32 to vector<24x32xf32>
    %90 = arith.mulf %88, %89 : vector<24x32xf32>
    %91 = arith.addf %80, %90 : vector<24x32xf32>
    %c7_45 = arith.constant 7 : index
    %92 = memref.load %arg1[%c7_45] : memref<32xf32, #tpu.memory_space<smem>>
    %c0_46 = arith.constant 0 : index
    %c3_47 = arith.constant 3 : index
    %c0_48 = arith.constant 0 : index
    %93 = vector.load %arg3[%c0_46, %c3_47, %c0_48] : memref<24x8x32xf32, #tpu.memory_space<vmem>>, vector<24x1x32xf32>
    %94 = vector.shape_cast %93 : vector<24x1x32xf32> to vector<24x32xf32>
    %95 = vector.broadcast %92 : f32 to vector<24x32xf32>
    %96 = arith.mulf %94, %95 : vector<24x32xf32>
    %97 = arith.addf %86, %96 : vector<24x32xf32>
    %c0_49 = arith.constant 0 : index
    %c7_50 = arith.constant 7 : index
    %c0_51 = arith.constant 0 : index
    %98 = vector.load %arg3[%c0_49, %c7_50, %c0_51] : memref<24x8x32xf32, #tpu.memory_space<vmem>>, vector<24x1x32xf32>
    %99 = vector.shape_cast %98 : vector<24x1x32xf32> to vector<24x32xf32>
    %100 = vector.broadcast %92 : f32 to vector<24x32xf32>
    %101 = arith.mulf %99, %100 : vector<24x32xf32>
    %102 = arith.addf %91, %101 : vector<24x32xf32>
    %c1_52 = arith.constant 1 : index
    %103 = memref.load %arg2[%c1_52] : memref<8xf32, #tpu.memory_space<smem>>
    %104 = vector.broadcast %103 : f32 to vector<24x32xf32>
    %105 = arith.addf %97, %104 : vector<24x32xf32>
    %106 = vector.broadcast %103 : f32 to vector<24x32xf32>
    %107 = arith.addf %102, %106 : vector<24x32xf32>
    %108 = arith.mulf %105, %107 : vector<24x32xf32>
    %cst_53 = arith.constant dense<0.000000e+00> : vector<24xf32>
    %109 = vector.multi_reduction <add>, %108, %cst_53 [1] : vector<24x32xf32> to vector<24xf32>
    %110 = vector.shape_cast %109 : vector<24xf32> to vector<24x1xf32>
    %111 = arith.mulf %105, %105 : vector<24x32xf32>
    %cst_54 = arith.constant dense<0.000000e+00> : vector<24xf32>
    %112 = vector.multi_reduction <add>, %111, %cst_54 [1] : vector<24x32xf32> to vector<24xf32>
    %113 = vector.shape_cast %112 : vector<24xf32> to vector<24x1xf32>
    %114 = arith.mulf %107, %107 : vector<24x32xf32>
    %cst_55 = arith.constant dense<0.000000e+00> : vector<24xf32>
    %115 = vector.multi_reduction <add>, %114, %cst_55 [1] : vector<24x32xf32> to vector<24xf32>
    %116 = vector.shape_cast %115 : vector<24xf32> to vector<24x1xf32>
    %117 = arith.mulf %113, %116 : vector<24x1xf32>
    %cst_56 = arith.constant 1.000000e-16 : f32
    %118 = vector.broadcast %cst_56 : f32 to vector<24x1xf32>
    %119 = arith.maximumf %117, %118 : vector<24x1xf32>
    %120 = math.rsqrt %119 : vector<24x1xf32>
    %121 = arith.mulf %110, %120 : vector<24x1xf32>
    %c8 = arith.constant 8 : index
    %122 = memref.load %arg1[%c8] : memref<32xf32, #tpu.memory_space<smem>>
    %c0_57 = arith.constant 0 : index
    %c0_58 = arith.constant 0 : index
    %c0_59 = arith.constant 0 : index
    %123 = vector.load %arg3[%c0_57, %c0_58, %c0_59] : memref<24x8x32xf32, #tpu.memory_space<vmem>>, vector<24x1x32xf32>
    %124 = vector.shape_cast %123 : vector<24x1x32xf32> to vector<24x32xf32>
    %125 = vector.broadcast %122 : f32 to vector<24x32xf32>
    %126 = arith.mulf %124, %125 : vector<24x32xf32>
    %c0_60 = arith.constant 0 : index
    %c4_61 = arith.constant 4 : index
    %c0_62 = arith.constant 0 : index
    %127 = vector.load %arg3[%c0_60, %c4_61, %c0_62] : memref<24x8x32xf32, #tpu.memory_space<vmem>>, vector<24x1x32xf32>
    %128 = vector.shape_cast %127 : vector<24x1x32xf32> to vector<24x32xf32>
    %129 = vector.broadcast %122 : f32 to vector<24x32xf32>
    %130 = arith.mulf %128, %129 : vector<24x32xf32>
    %c9 = arith.constant 9 : index
    %131 = memref.load %arg1[%c9] : memref<32xf32, #tpu.memory_space<smem>>
    %c0_63 = arith.constant 0 : index
    %c1_64 = arith.constant 1 : index
    %c0_65 = arith.constant 0 : index
    %132 = vector.load %arg3[%c0_63, %c1_64, %c0_65] : memref<24x8x32xf32, #tpu.memory_space<vmem>>, vector<24x1x32xf32>
    %133 = vector.shape_cast %132 : vector<24x1x32xf32> to vector<24x32xf32>
    %134 = vector.broadcast %131 : f32 to vector<24x32xf32>
    %135 = arith.mulf %133, %134 : vector<24x32xf32>
    %136 = arith.addf %126, %135 : vector<24x32xf32>
    %c0_66 = arith.constant 0 : index
    %c5_67 = arith.constant 5 : index
    %c0_68 = arith.constant 0 : index
    %137 = vector.load %arg3[%c0_66, %c5_67, %c0_68] : memref<24x8x32xf32, #tpu.memory_space<vmem>>, vector<24x1x32xf32>
    %138 = vector.shape_cast %137 : vector<24x1x32xf32> to vector<24x32xf32>
    %139 = vector.broadcast %131 : f32 to vector<24x32xf32>
    %140 = arith.mulf %138, %139 : vector<24x32xf32>
    %141 = arith.addf %130, %140 : vector<24x32xf32>
    %c10 = arith.constant 10 : index
    %142 = memref.load %arg1[%c10] : memref<32xf32, #tpu.memory_space<smem>>
    %c0_69 = arith.constant 0 : index
    %c2_70 = arith.constant 2 : index
    %c0_71 = arith.constant 0 : index
    %143 = vector.load %arg3[%c0_69, %c2_70, %c0_71] : memref<24x8x32xf32, #tpu.memory_space<vmem>>, vector<24x1x32xf32>
    %144 = vector.shape_cast %143 : vector<24x1x32xf32> to vector<24x32xf32>
    %145 = vector.broadcast %142 : f32 to vector<24x32xf32>
    %146 = arith.mulf %144, %145 : vector<24x32xf32>
    %147 = arith.addf %136, %146 : vector<24x32xf32>
    %c0_72 = arith.constant 0 : index
    %c6_73 = arith.constant 6 : index
    %c0_74 = arith.constant 0 : index
    %148 = vector.load %arg3[%c0_72, %c6_73, %c0_74] : memref<24x8x32xf32, #tpu.memory_space<vmem>>, vector<24x1x32xf32>
    %149 = vector.shape_cast %148 : vector<24x1x32xf32> to vector<24x32xf32>
    %150 = vector.broadcast %142 : f32 to vector<24x32xf32>
    %151 = arith.mulf %149, %150 : vector<24x32xf32>
    %152 = arith.addf %141, %151 : vector<24x32xf32>
    %c11 = arith.constant 11 : index
    %153 = memref.load %arg1[%c11] : memref<32xf32, #tpu.memory_space<smem>>
    %c0_75 = arith.constant 0 : index
    %c3_76 = arith.constant 3 : index
    %c0_77 = arith.constant 0 : index
    %154 = vector.load %arg3[%c0_75, %c3_76, %c0_77] : memref<24x8x32xf32, #tpu.memory_space<vmem>>, vector<24x1x32xf32>
    %155 = vector.shape_cast %154 : vector<24x1x32xf32> to vector<24x32xf32>
    %156 = vector.broadcast %153 : f32 to vector<24x32xf32>
    %157 = arith.mulf %155, %156 : vector<24x32xf32>
    %158 = arith.addf %147, %157 : vector<24x32xf32>
    %c0_78 = arith.constant 0 : index
    %c7_79 = arith.constant 7 : index
    %c0_80 = arith.constant 0 : index
    %159 = vector.load %arg3[%c0_78, %c7_79, %c0_80] : memref<24x8x32xf32, #tpu.memory_space<vmem>>, vector<24x1x32xf32>
    %160 = vector.shape_cast %159 : vector<24x1x32xf32> to vector<24x32xf32>
    %161 = vector.broadcast %153 : f32 to vector<24x32xf32>
    %162 = arith.mulf %160, %161 : vector<24x32xf32>
    %163 = arith.addf %152, %162 : vector<24x32xf32>
    %c2_81 = arith.constant 2 : index
    %164 = memref.load %arg2[%c2_81] : memref<8xf32, #tpu.memory_space<smem>>
    %165 = vector.broadcast %164 : f32 to vector<24x32xf32>
    %166 = arith.addf %158, %165 : vector<24x32xf32>
    %167 = vector.broadcast %164 : f32 to vector<24x32xf32>
    %168 = arith.addf %163, %167 : vector<24x32xf32>
    %169 = arith.mulf %166, %168 : vector<24x32xf32>
    %cst_82 = arith.constant dense<0.000000e+00> : vector<24xf32>
    %170 = vector.multi_reduction <add>, %169, %cst_82 [1] : vector<24x32xf32> to vector<24xf32>
    %171 = vector.shape_cast %170 : vector<24xf32> to vector<24x1xf32>
    %172 = arith.mulf %166, %166 : vector<24x32xf32>
    %cst_83 = arith.constant dense<0.000000e+00> : vector<24xf32>
    %173 = vector.multi_reduction <add>, %172, %cst_83 [1] : vector<24x32xf32> to vector<24xf32>
    %174 = vector.shape_cast %173 : vector<24xf32> to vector<24x1xf32>
    %175 = arith.mulf %168, %168 : vector<24x32xf32>
    %cst_84 = arith.constant dense<0.000000e+00> : vector<24xf32>
    %176 = vector.multi_reduction <add>, %175, %cst_84 [1] : vector<24x32xf32> to vector<24xf32>
    %177 = vector.shape_cast %176 : vector<24xf32> to vector<24x1xf32>
    %178 = arith.mulf %174, %177 : vector<24x1xf32>
    %cst_85 = arith.constant 1.000000e-16 : f32
    %179 = vector.broadcast %cst_85 : f32 to vector<24x1xf32>
    %180 = arith.maximumf %178, %179 : vector<24x1xf32>
    %181 = math.rsqrt %180 : vector<24x1xf32>
    %182 = arith.mulf %171, %181 : vector<24x1xf32>
    %c12 = arith.constant 12 : index
    %183 = memref.load %arg1[%c12] : memref<32xf32, #tpu.memory_space<smem>>
    %c0_86 = arith.constant 0 : index
    %c0_87 = arith.constant 0 : index
    %c0_88 = arith.constant 0 : index
    %184 = vector.load %arg3[%c0_86, %c0_87, %c0_88] : memref<24x8x32xf32, #tpu.memory_space<vmem>>, vector<24x1x32xf32>
    %185 = vector.shape_cast %184 : vector<24x1x32xf32> to vector<24x32xf32>
    %186 = vector.broadcast %183 : f32 to vector<24x32xf32>
    %187 = arith.mulf %185, %186 : vector<24x32xf32>
    %c0_89 = arith.constant 0 : index
    %c4_90 = arith.constant 4 : index
    %c0_91 = arith.constant 0 : index
    %188 = vector.load %arg3[%c0_89, %c4_90, %c0_91] : memref<24x8x32xf32, #tpu.memory_space<vmem>>, vector<24x1x32xf32>
    %189 = vector.shape_cast %188 : vector<24x1x32xf32> to vector<24x32xf32>
    %190 = vector.broadcast %183 : f32 to vector<24x32xf32>
    %191 = arith.mulf %189, %190 : vector<24x32xf32>
    %c13 = arith.constant 13 : index
    %192 = memref.load %arg1[%c13] : memref<32xf32, #tpu.memory_space<smem>>
    %c0_92 = arith.constant 0 : index
    %c1_93 = arith.constant 1 : index
    %c0_94 = arith.constant 0 : index
    %193 = vector.load %arg3[%c0_92, %c1_93, %c0_94] : memref<24x8x32xf32, #tpu.memory_space<vmem>>, vector<24x1x32xf32>
    %194 = vector.shape_cast %193 : vector<24x1x32xf32> to vector<24x32xf32>
    %195 = vector.broadcast %192 : f32 to vector<24x32xf32>
    %196 = arith.mulf %194, %195 : vector<24x32xf32>
    %197 = arith.addf %187, %196 : vector<24x32xf32>
    %c0_95 = arith.constant 0 : index
    %c5_96 = arith.constant 5 : index
    %c0_97 = arith.constant 0 : index
    %198 = vector.load %arg3[%c0_95, %c5_96, %c0_97] : memref<24x8x32xf32, #tpu.memory_space<vmem>>, vector<24x1x32xf32>
    %199 = vector.shape_cast %198 : vector<24x1x32xf32> to vector<24x32xf32>
    %200 = vector.broadcast %192 : f32 to vector<24x32xf32>
    %201 = arith.mulf %199, %200 : vector<24x32xf32>
    %202 = arith.addf %191, %201 : vector<24x32xf32>
    %c14 = arith.constant 14 : index
    %203 = memref.load %arg1[%c14] : memref<32xf32, #tpu.memory_space<smem>>
    %c0_98 = arith.constant 0 : index
    %c2_99 = arith.constant 2 : index
    %c0_100 = arith.constant 0 : index
    %204 = vector.load %arg3[%c0_98, %c2_99, %c0_100] : memref<24x8x32xf32, #tpu.memory_space<vmem>>, vector<24x1x32xf32>
    %205 = vector.shape_cast %204 : vector<24x1x32xf32> to vector<24x32xf32>
    %206 = vector.broadcast %203 : f32 to vector<24x32xf32>
    %207 = arith.mulf %205, %206 : vector<24x32xf32>
    %208 = arith.addf %197, %207 : vector<24x32xf32>
    %c0_101 = arith.constant 0 : index
    %c6_102 = arith.constant 6 : index
    %c0_103 = arith.constant 0 : index
    %209 = vector.load %arg3[%c0_101, %c6_102, %c0_103] : memref<24x8x32xf32, #tpu.memory_space<vmem>>, vector<24x1x32xf32>
    %210 = vector.shape_cast %209 : vector<24x1x32xf32> to vector<24x32xf32>
    %211 = vector.broadcast %203 : f32 to vector<24x32xf32>
    %212 = arith.mulf %210, %211 : vector<24x32xf32>
    %213 = arith.addf %202, %212 : vector<24x32xf32>
    %c15 = arith.constant 15 : index
    %214 = memref.load %arg1[%c15] : memref<32xf32, #tpu.memory_space<smem>>
    %c0_104 = arith.constant 0 : index
    %c3_105 = arith.constant 3 : index
    %c0_106 = arith.constant 0 : index
    %215 = vector.load %arg3[%c0_104, %c3_105, %c0_106] : memref<24x8x32xf32, #tpu.memory_space<vmem>>, vector<24x1x32xf32>
    %216 = vector.shape_cast %215 : vector<24x1x32xf32> to vector<24x32xf32>
    %217 = vector.broadcast %214 : f32 to vector<24x32xf32>
    %218 = arith.mulf %216, %217 : vector<24x32xf32>
    %219 = arith.addf %208, %218 : vector<24x32xf32>
    %c0_107 = arith.constant 0 : index
    %c7_108 = arith.constant 7 : index
    %c0_109 = arith.constant 0 : index
    %220 = vector.load %arg3[%c0_107, %c7_108, %c0_109] : memref<24x8x32xf32, #tpu.memory_space<vmem>>, vector<24x1x32xf32>
    %221 = vector.shape_cast %220 : vector<24x1x32xf32> to vector<24x32xf32>
    %222 = vector.broadcast %214 : f32 to vector<24x32xf32>
    %223 = arith.mulf %221, %222 : vector<24x32xf32>
    %224 = arith.addf %213, %223 : vector<24x32xf32>
    %c3_110 = arith.constant 3 : index
    %225 = memref.load %arg2[%c3_110] : memref<8xf32, #tpu.memory_space<smem>>
    %226 = vector.broadcast %225 : f32 to vector<24x32xf32>
    %227 = arith.addf %219, %226 : vector<24x32xf32>
    %228 = vector.broadcast %225 : f32 to vector<24x32xf32>
    %229 = arith.addf %224, %228 : vector<24x32xf32>
    %230 = arith.mulf %227, %229 : vector<24x32xf32>
    %cst_111 = arith.constant dense<0.000000e+00> : vector<24xf32>
    %231 = vector.multi_reduction <add>, %230, %cst_111 [1] : vector<24x32xf32> to vector<24xf32>
    %232 = vector.shape_cast %231 : vector<24xf32> to vector<24x1xf32>
    %233 = arith.mulf %227, %227 : vector<24x32xf32>
    %cst_112 = arith.constant dense<0.000000e+00> : vector<24xf32>
    %234 = vector.multi_reduction <add>, %233, %cst_112 [1] : vector<24x32xf32> to vector<24xf32>
    %235 = vector.shape_cast %234 : vector<24xf32> to vector<24x1xf32>
    %236 = arith.mulf %229, %229 : vector<24x32xf32>
    %cst_113 = arith.constant dense<0.000000e+00> : vector<24xf32>
    %237 = vector.multi_reduction <add>, %236, %cst_113 [1] : vector<24x32xf32> to vector<24xf32>
    %238 = vector.shape_cast %237 : vector<24xf32> to vector<24x1xf32>
    %239 = arith.mulf %235, %238 : vector<24x1xf32>
    %cst_114 = arith.constant 1.000000e-16 : f32
    %240 = vector.broadcast %cst_114 : f32 to vector<24x1xf32>
    %241 = arith.maximumf %239, %240 : vector<24x1xf32>
    %242 = math.rsqrt %241 : vector<24x1xf32>
    %243 = arith.mulf %232, %242 : vector<24x1xf32>
    %c16 = arith.constant 16 : index
    %244 = memref.load %arg1[%c16] : memref<32xf32, #tpu.memory_space<smem>>
    %c0_115 = arith.constant 0 : index
    %c0_116 = arith.constant 0 : index
    %c0_117 = arith.constant 0 : index
    %245 = vector.load %arg3[%c0_115, %c0_116, %c0_117] : memref<24x8x32xf32, #tpu.memory_space<vmem>>, vector<24x1x32xf32>
    %246 = vector.shape_cast %245 : vector<24x1x32xf32> to vector<24x32xf32>
    %247 = vector.broadcast %244 : f32 to vector<24x32xf32>
    %248 = arith.mulf %246, %247 : vector<24x32xf32>
    %c0_118 = arith.constant 0 : index
    %c4_119 = arith.constant 4 : index
    %c0_120 = arith.constant 0 : index
    %249 = vector.load %arg3[%c0_118, %c4_119, %c0_120] : memref<24x8x32xf32, #tpu.memory_space<vmem>>, vector<24x1x32xf32>
    %250 = vector.shape_cast %249 : vector<24x1x32xf32> to vector<24x32xf32>
    %251 = vector.broadcast %244 : f32 to vector<24x32xf32>
    %252 = arith.mulf %250, %251 : vector<24x32xf32>
    %c17 = arith.constant 17 : index
    %253 = memref.load %arg1[%c17] : memref<32xf32, #tpu.memory_space<smem>>
    %c0_121 = arith.constant 0 : index
    %c1_122 = arith.constant 1 : index
    %c0_123 = arith.constant 0 : index
    %254 = vector.load %arg3[%c0_121, %c1_122, %c0_123] : memref<24x8x32xf32, #tpu.memory_space<vmem>>, vector<24x1x32xf32>
    %255 = vector.shape_cast %254 : vector<24x1x32xf32> to vector<24x32xf32>
    %256 = vector.broadcast %253 : f32 to vector<24x32xf32>
    %257 = arith.mulf %255, %256 : vector<24x32xf32>
    %258 = arith.addf %248, %257 : vector<24x32xf32>
    %c0_124 = arith.constant 0 : index
    %c5_125 = arith.constant 5 : index
    %c0_126 = arith.constant 0 : index
    %259 = vector.load %arg3[%c0_124, %c5_125, %c0_126] : memref<24x8x32xf32, #tpu.memory_space<vmem>>, vector<24x1x32xf32>
    %260 = vector.shape_cast %259 : vector<24x1x32xf32> to vector<24x32xf32>
    %261 = vector.broadcast %253 : f32 to vector<24x32xf32>
    %262 = arith.mulf %260, %261 : vector<24x32xf32>
    %263 = arith.addf %252, %262 : vector<24x32xf32>
    %c18 = arith.constant 18 : index
    %264 = memref.load %arg1[%c18] : memref<32xf32, #tpu.memory_space<smem>>
    %c0_127 = arith.constant 0 : index
    %c2_128 = arith.constant 2 : index
    %c0_129 = arith.constant 0 : index
    %265 = vector.load %arg3[%c0_127, %c2_128, %c0_129] : memref<24x8x32xf32, #tpu.memory_space<vmem>>, vector<24x1x32xf32>
    %266 = vector.shape_cast %265 : vector<24x1x32xf32> to vector<24x32xf32>
    %267 = vector.broadcast %264 : f32 to vector<24x32xf32>
    %268 = arith.mulf %266, %267 : vector<24x32xf32>
    %269 = arith.addf %258, %268 : vector<24x32xf32>
    %c0_130 = arith.constant 0 : index
    %c6_131 = arith.constant 6 : index
    %c0_132 = arith.constant 0 : index
    %270 = vector.load %arg3[%c0_130, %c6_131, %c0_132] : memref<24x8x32xf32, #tpu.memory_space<vmem>>, vector<24x1x32xf32>
    %271 = vector.shape_cast %270 : vector<24x1x32xf32> to vector<24x32xf32>
    %272 = vector.broadcast %264 : f32 to vector<24x32xf32>
    %273 = arith.mulf %271, %272 : vector<24x32xf32>
    %274 = arith.addf %263, %273 : vector<24x32xf32>
    %c19 = arith.constant 19 : index
    %275 = memref.load %arg1[%c19] : memref<32xf32, #tpu.memory_space<smem>>
    %c0_133 = arith.constant 0 : index
    %c3_134 = arith.constant 3 : index
    %c0_135 = arith.constant 0 : index
    %276 = vector.load %arg3[%c0_133, %c3_134, %c0_135] : memref<24x8x32xf32, #tpu.memory_space<vmem>>, vector<24x1x32xf32>
    %277 = vector.shape_cast %276 : vector<24x1x32xf32> to vector<24x32xf32>
    %278 = vector.broadcast %275 : f32 to vector<24x32xf32>
    %279 = arith.mulf %277, %278 : vector<24x32xf32>
    %280 = arith.addf %269, %279 : vector<24x32xf32>
    %c0_136 = arith.constant 0 : index
    %c7_137 = arith.constant 7 : index
    %c0_138 = arith.constant 0 : index
    %281 = vector.load %arg3[%c0_136, %c7_137, %c0_138] : memref<24x8x32xf32, #tpu.memory_space<vmem>>, vector<24x1x32xf32>
    %282 = vector.shape_cast %281 : vector<24x1x32xf32> to vector<24x32xf32>
    %283 = vector.broadcast %275 : f32 to vector<24x32xf32>
    %284 = arith.mulf %282, %283 : vector<24x32xf32>
    %285 = arith.addf %274, %284 : vector<24x32xf32>
    %c4_139 = arith.constant 4 : index
    %286 = memref.load %arg2[%c4_139] : memref<8xf32, #tpu.memory_space<smem>>
    %287 = vector.broadcast %286 : f32 to vector<24x32xf32>
    %288 = arith.addf %280, %287 : vector<24x32xf32>
    %289 = vector.broadcast %286 : f32 to vector<24x32xf32>
    %290 = arith.addf %285, %289 : vector<24x32xf32>
    %291 = arith.mulf %288, %290 : vector<24x32xf32>
    %cst_140 = arith.constant dense<0.000000e+00> : vector<24xf32>
    %292 = vector.multi_reduction <add>, %291, %cst_140 [1] : vector<24x32xf32> to vector<24xf32>
    %293 = vector.shape_cast %292 : vector<24xf32> to vector<24x1xf32>
    %294 = arith.mulf %288, %288 : vector<24x32xf32>
    %cst_141 = arith.constant dense<0.000000e+00> : vector<24xf32>
    %295 = vector.multi_reduction <add>, %294, %cst_141 [1] : vector<24x32xf32> to vector<24xf32>
    %296 = vector.shape_cast %295 : vector<24xf32> to vector<24x1xf32>
    %297 = arith.mulf %290, %290 : vector<24x32xf32>
    %cst_142 = arith.constant dense<0.000000e+00> : vector<24xf32>
    %298 = vector.multi_reduction <add>, %297, %cst_142 [1] : vector<24x32xf32> to vector<24xf32>
    %299 = vector.shape_cast %298 : vector<24xf32> to vector<24x1xf32>
    %300 = arith.mulf %296, %299 : vector<24x1xf32>
    %cst_143 = arith.constant 1.000000e-16 : f32
    %301 = vector.broadcast %cst_143 : f32 to vector<24x1xf32>
    %302 = arith.maximumf %300, %301 : vector<24x1xf32>
    %303 = math.rsqrt %302 : vector<24x1xf32>
    %304 = arith.mulf %293, %303 : vector<24x1xf32>
    %c20 = arith.constant 20 : index
    %305 = memref.load %arg1[%c20] : memref<32xf32, #tpu.memory_space<smem>>
    %c0_144 = arith.constant 0 : index
    %c0_145 = arith.constant 0 : index
    %c0_146 = arith.constant 0 : index
    %306 = vector.load %arg3[%c0_144, %c0_145, %c0_146] : memref<24x8x32xf32, #tpu.memory_space<vmem>>, vector<24x1x32xf32>
    %307 = vector.shape_cast %306 : vector<24x1x32xf32> to vector<24x32xf32>
    %308 = vector.broadcast %305 : f32 to vector<24x32xf32>
    %309 = arith.mulf %307, %308 : vector<24x32xf32>
    %c0_147 = arith.constant 0 : index
    %c4_148 = arith.constant 4 : index
    %c0_149 = arith.constant 0 : index
    %310 = vector.load %arg3[%c0_147, %c4_148, %c0_149] : memref<24x8x32xf32, #tpu.memory_space<vmem>>, vector<24x1x32xf32>
    %311 = vector.shape_cast %310 : vector<24x1x32xf32> to vector<24x32xf32>
    %312 = vector.broadcast %305 : f32 to vector<24x32xf32>
    %313 = arith.mulf %311, %312 : vector<24x32xf32>
    %c21 = arith.constant 21 : index
    %314 = memref.load %arg1[%c21] : memref<32xf32, #tpu.memory_space<smem>>
    %c0_150 = arith.constant 0 : index
    %c1_151 = arith.constant 1 : index
    %c0_152 = arith.constant 0 : index
    %315 = vector.load %arg3[%c0_150, %c1_151, %c0_152] : memref<24x8x32xf32, #tpu.memory_space<vmem>>, vector<24x1x32xf32>
    %316 = vector.shape_cast %315 : vector<24x1x32xf32> to vector<24x32xf32>
    %317 = vector.broadcast %314 : f32 to vector<24x32xf32>
    %318 = arith.mulf %316, %317 : vector<24x32xf32>
    %319 = arith.addf %309, %318 : vector<24x32xf32>
    %c0_153 = arith.constant 0 : index
    %c5_154 = arith.constant 5 : index
    %c0_155 = arith.constant 0 : index
    %320 = vector.load %arg3[%c0_153, %c5_154, %c0_155] : memref<24x8x32xf32, #tpu.memory_space<vmem>>, vector<24x1x32xf32>
    %321 = vector.shape_cast %320 : vector<24x1x32xf32> to vector<24x32xf32>
    %322 = vector.broadcast %314 : f32 to vector<24x32xf32>
    %323 = arith.mulf %321, %322 : vector<24x32xf32>
    %324 = arith.addf %313, %323 : vector<24x32xf32>
    %c22 = arith.constant 22 : index
    %325 = memref.load %arg1[%c22] : memref<32xf32, #tpu.memory_space<smem>>
    %c0_156 = arith.constant 0 : index
    %c2_157 = arith.constant 2 : index
    %c0_158 = arith.constant 0 : index
    %326 = vector.load %arg3[%c0_156, %c2_157, %c0_158] : memref<24x8x32xf32, #tpu.memory_space<vmem>>, vector<24x1x32xf32>
    %327 = vector.shape_cast %326 : vector<24x1x32xf32> to vector<24x32xf32>
    %328 = vector.broadcast %325 : f32 to vector<24x32xf32>
    %329 = arith.mulf %327, %328 : vector<24x32xf32>
    %330 = arith.addf %319, %329 : vector<24x32xf32>
    %c0_159 = arith.constant 0 : index
    %c6_160 = arith.constant 6 : index
    %c0_161 = arith.constant 0 : index
    %331 = vector.load %arg3[%c0_159, %c6_160, %c0_161] : memref<24x8x32xf32, #tpu.memory_space<vmem>>, vector<24x1x32xf32>
    %332 = vector.shape_cast %331 : vector<24x1x32xf32> to vector<24x32xf32>
    %333 = vector.broadcast %325 : f32 to vector<24x32xf32>
    %334 = arith.mulf %332, %333 : vector<24x32xf32>
    %335 = arith.addf %324, %334 : vector<24x32xf32>
    %c23 = arith.constant 23 : index
    %336 = memref.load %arg1[%c23] : memref<32xf32, #tpu.memory_space<smem>>
    %c0_162 = arith.constant 0 : index
    %c3_163 = arith.constant 3 : index
    %c0_164 = arith.constant 0 : index
    %337 = vector.load %arg3[%c0_162, %c3_163, %c0_164] : memref<24x8x32xf32, #tpu.memory_space<vmem>>, vector<24x1x32xf32>
    %338 = vector.shape_cast %337 : vector<24x1x32xf32> to vector<24x32xf32>
    %339 = vector.broadcast %336 : f32 to vector<24x32xf32>
    %340 = arith.mulf %338, %339 : vector<24x32xf32>
    %341 = arith.addf %330, %340 : vector<24x32xf32>
    %c0_165 = arith.constant 0 : index
    %c7_166 = arith.constant 7 : index
    %c0_167 = arith.constant 0 : index
    %342 = vector.load %arg3[%c0_165, %c7_166, %c0_167] : memref<24x8x32xf32, #tpu.memory_space<vmem>>, vector<24x1x32xf32>
    %343 = vector.shape_cast %342 : vector<24x1x32xf32> to vector<24x32xf32>
    %344 = vector.broadcast %336 : f32 to vector<24x32xf32>
    %345 = arith.mulf %343, %344 : vector<24x32xf32>
    %346 = arith.addf %335, %345 : vector<24x32xf32>
    %c5_168 = arith.constant 5 : index
    %347 = memref.load %arg2[%c5_168] : memref<8xf32, #tpu.memory_space<smem>>
    %348 = vector.broadcast %347 : f32 to vector<24x32xf32>
    %349 = arith.addf %341, %348 : vector<24x32xf32>
    %350 = vector.broadcast %347 : f32 to vector<24x32xf32>
    %351 = arith.addf %346, %350 : vector<24x32xf32>
    %352 = arith.mulf %349, %351 : vector<24x32xf32>
    %cst_169 = arith.constant dense<0.000000e+00> : vector<24xf32>
    %353 = vector.multi_reduction <add>, %352, %cst_169 [1] : vector<24x32xf32> to vector<24xf32>
    %354 = vector.shape_cast %353 : vector<24xf32> to vector<24x1xf32>
    %355 = arith.mulf %349, %349 : vector<24x32xf32>
    %cst_170 = arith.constant dense<0.000000e+00> : vector<24xf32>
    %356 = vector.multi_reduction <add>, %355, %cst_170 [1] : vector<24x32xf32> to vector<24xf32>
    %357 = vector.shape_cast %356 : vector<24xf32> to vector<24x1xf32>
    %358 = arith.mulf %351, %351 : vector<24x32xf32>
    %cst_171 = arith.constant dense<0.000000e+00> : vector<24xf32>
    %359 = vector.multi_reduction <add>, %358, %cst_171 [1] : vector<24x32xf32> to vector<24xf32>
    %360 = vector.shape_cast %359 : vector<24xf32> to vector<24x1xf32>
    %361 = arith.mulf %357, %360 : vector<24x1xf32>
    %cst_172 = arith.constant 1.000000e-16 : f32
    %362 = vector.broadcast %cst_172 : f32 to vector<24x1xf32>
    %363 = arith.maximumf %361, %362 : vector<24x1xf32>
    %364 = math.rsqrt %363 : vector<24x1xf32>
    %365 = arith.mulf %354, %364 : vector<24x1xf32>
    %c24 = arith.constant 24 : index
    %366 = memref.load %arg1[%c24] : memref<32xf32, #tpu.memory_space<smem>>
    %c0_173 = arith.constant 0 : index
    %c0_174 = arith.constant 0 : index
    %c0_175 = arith.constant 0 : index
    %367 = vector.load %arg3[%c0_173, %c0_174, %c0_175] : memref<24x8x32xf32, #tpu.memory_space<vmem>>, vector<24x1x32xf32>
    %368 = vector.shape_cast %367 : vector<24x1x32xf32> to vector<24x32xf32>
    %369 = vector.broadcast %366 : f32 to vector<24x32xf32>
    %370 = arith.mulf %368, %369 : vector<24x32xf32>
    %c0_176 = arith.constant 0 : index
    %c4_177 = arith.constant 4 : index
    %c0_178 = arith.constant 0 : index
    %371 = vector.load %arg3[%c0_176, %c4_177, %c0_178] : memref<24x8x32xf32, #tpu.memory_space<vmem>>, vector<24x1x32xf32>
    %372 = vector.shape_cast %371 : vector<24x1x32xf32> to vector<24x32xf32>
    %373 = vector.broadcast %366 : f32 to vector<24x32xf32>
    %374 = arith.mulf %372, %373 : vector<24x32xf32>
    %c25 = arith.constant 25 : index
    %375 = memref.load %arg1[%c25] : memref<32xf32, #tpu.memory_space<smem>>
    %c0_179 = arith.constant 0 : index
    %c1_180 = arith.constant 1 : index
    %c0_181 = arith.constant 0 : index
    %376 = vector.load %arg3[%c0_179, %c1_180, %c0_181] : memref<24x8x32xf32, #tpu.memory_space<vmem>>, vector<24x1x32xf32>
    %377 = vector.shape_cast %376 : vector<24x1x32xf32> to vector<24x32xf32>
    %378 = vector.broadcast %375 : f32 to vector<24x32xf32>
    %379 = arith.mulf %377, %378 : vector<24x32xf32>
    %380 = arith.addf %370, %379 : vector<24x32xf32>
    %c0_182 = arith.constant 0 : index
    %c5_183 = arith.constant 5 : index
    %c0_184 = arith.constant 0 : index
    %381 = vector.load %arg3[%c0_182, %c5_183, %c0_184] : memref<24x8x32xf32, #tpu.memory_space<vmem>>, vector<24x1x32xf32>
    %382 = vector.shape_cast %381 : vector<24x1x32xf32> to vector<24x32xf32>
    %383 = vector.broadcast %375 : f32 to vector<24x32xf32>
    %384 = arith.mulf %382, %383 : vector<24x32xf32>
    %385 = arith.addf %374, %384 : vector<24x32xf32>
    %c26 = arith.constant 26 : index
    %386 = memref.load %arg1[%c26] : memref<32xf32, #tpu.memory_space<smem>>
    %c0_185 = arith.constant 0 : index
    %c2_186 = arith.constant 2 : index
    %c0_187 = arith.constant 0 : index
    %387 = vector.load %arg3[%c0_185, %c2_186, %c0_187] : memref<24x8x32xf32, #tpu.memory_space<vmem>>, vector<24x1x32xf32>
    %388 = vector.shape_cast %387 : vector<24x1x32xf32> to vector<24x32xf32>
    %389 = vector.broadcast %386 : f32 to vector<24x32xf32>
    %390 = arith.mulf %388, %389 : vector<24x32xf32>
    %391 = arith.addf %380, %390 : vector<24x32xf32>
    %c0_188 = arith.constant 0 : index
    %c6_189 = arith.constant 6 : index
    %c0_190 = arith.constant 0 : index
    %392 = vector.load %arg3[%c0_188, %c6_189, %c0_190] : memref<24x8x32xf32, #tpu.memory_space<vmem>>, vector<24x1x32xf32>
    %393 = vector.shape_cast %392 : vector<24x1x32xf32> to vector<24x32xf32>
    %394 = vector.broadcast %386 : f32 to vector<24x32xf32>
    %395 = arith.mulf %393, %394 : vector<24x32xf32>
    %396 = arith.addf %385, %395 : vector<24x32xf32>
    %c27 = arith.constant 27 : index
    %397 = memref.load %arg1[%c27] : memref<32xf32, #tpu.memory_space<smem>>
    %c0_191 = arith.constant 0 : index
    %c3_192 = arith.constant 3 : index
    %c0_193 = arith.constant 0 : index
    %398 = vector.load %arg3[%c0_191, %c3_192, %c0_193] : memref<24x8x32xf32, #tpu.memory_space<vmem>>, vector<24x1x32xf32>
    %399 = vector.shape_cast %398 : vector<24x1x32xf32> to vector<24x32xf32>
    %400 = vector.broadcast %397 : f32 to vector<24x32xf32>
    %401 = arith.mulf %399, %400 : vector<24x32xf32>
    %402 = arith.addf %391, %401 : vector<24x32xf32>
    %c0_194 = arith.constant 0 : index
    %c7_195 = arith.constant 7 : index
    %c0_196 = arith.constant 0 : index
    %403 = vector.load %arg3[%c0_194, %c7_195, %c0_196] : memref<24x8x32xf32, #tpu.memory_space<vmem>>, vector<24x1x32xf32>
    %404 = vector.shape_cast %403 : vector<24x1x32xf32> to vector<24x32xf32>
    %405 = vector.broadcast %397 : f32 to vector<24x32xf32>
    %406 = arith.mulf %404, %405 : vector<24x32xf32>
    %407 = arith.addf %396, %406 : vector<24x32xf32>
    %c6_197 = arith.constant 6 : index
    %408 = memref.load %arg2[%c6_197] : memref<8xf32, #tpu.memory_space<smem>>
    %409 = vector.broadcast %408 : f32 to vector<24x32xf32>
    %410 = arith.addf %402, %409 : vector<24x32xf32>
    %411 = vector.broadcast %408 : f32 to vector<24x32xf32>
    %412 = arith.addf %407, %411 : vector<24x32xf32>
    %413 = arith.mulf %410, %412 : vector<24x32xf32>
    %cst_198 = arith.constant dense<0.000000e+00> : vector<24xf32>
    %414 = vector.multi_reduction <add>, %413, %cst_198 [1] : vector<24x32xf32> to vector<24xf32>
    %415 = vector.shape_cast %414 : vector<24xf32> to vector<24x1xf32>
    %416 = arith.mulf %410, %410 : vector<24x32xf32>
    %cst_199 = arith.constant dense<0.000000e+00> : vector<24xf32>
    %417 = vector.multi_reduction <add>, %416, %cst_199 [1] : vector<24x32xf32> to vector<24xf32>
    %418 = vector.shape_cast %417 : vector<24xf32> to vector<24x1xf32>
    %419 = arith.mulf %412, %412 : vector<24x32xf32>
    %cst_200 = arith.constant dense<0.000000e+00> : vector<24xf32>
    %420 = vector.multi_reduction <add>, %419, %cst_200 [1] : vector<24x32xf32> to vector<24xf32>
    %421 = vector.shape_cast %420 : vector<24xf32> to vector<24x1xf32>
    %422 = arith.mulf %418, %421 : vector<24x1xf32>
    %cst_201 = arith.constant 1.000000e-16 : f32
    %423 = vector.broadcast %cst_201 : f32 to vector<24x1xf32>
    %424 = arith.maximumf %422, %423 : vector<24x1xf32>
    %425 = math.rsqrt %424 : vector<24x1xf32>
    %426 = arith.mulf %415, %425 : vector<24x1xf32>
    %c28 = arith.constant 28 : index
    %427 = memref.load %arg1[%c28] : memref<32xf32, #tpu.memory_space<smem>>
    %c0_202 = arith.constant 0 : index
    %c0_203 = arith.constant 0 : index
    %c0_204 = arith.constant 0 : index
    %428 = vector.load %arg3[%c0_202, %c0_203, %c0_204] : memref<24x8x32xf32, #tpu.memory_space<vmem>>, vector<24x1x32xf32>
    %429 = vector.shape_cast %428 : vector<24x1x32xf32> to vector<24x32xf32>
    %430 = vector.broadcast %427 : f32 to vector<24x32xf32>
    %431 = arith.mulf %429, %430 : vector<24x32xf32>
    %c0_205 = arith.constant 0 : index
    %c4_206 = arith.constant 4 : index
    %c0_207 = arith.constant 0 : index
    %432 = vector.load %arg3[%c0_205, %c4_206, %c0_207] : memref<24x8x32xf32, #tpu.memory_space<vmem>>, vector<24x1x32xf32>
    %433 = vector.shape_cast %432 : vector<24x1x32xf32> to vector<24x32xf32>
    %434 = vector.broadcast %427 : f32 to vector<24x32xf32>
    %435 = arith.mulf %433, %434 : vector<24x32xf32>
    %c29 = arith.constant 29 : index
    %436 = memref.load %arg1[%c29] : memref<32xf32, #tpu.memory_space<smem>>
    %c0_208 = arith.constant 0 : index
    %c1_209 = arith.constant 1 : index
    %c0_210 = arith.constant 0 : index
    %437 = vector.load %arg3[%c0_208, %c1_209, %c0_210] : memref<24x8x32xf32, #tpu.memory_space<vmem>>, vector<24x1x32xf32>
    %438 = vector.shape_cast %437 : vector<24x1x32xf32> to vector<24x32xf32>
    %439 = vector.broadcast %436 : f32 to vector<24x32xf32>
    %440 = arith.mulf %438, %439 : vector<24x32xf32>
    %441 = arith.addf %431, %440 : vector<24x32xf32>
    %c0_211 = arith.constant 0 : index
    %c5_212 = arith.constant 5 : index
    %c0_213 = arith.constant 0 : index
    %442 = vector.load %arg3[%c0_211, %c5_212, %c0_213] : memref<24x8x32xf32, #tpu.memory_space<vmem>>, vector<24x1x32xf32>
    %443 = vector.shape_cast %442 : vector<24x1x32xf32> to vector<24x32xf32>
    %444 = vector.broadcast %436 : f32 to vector<24x32xf32>
    %445 = arith.mulf %443, %444 : vector<24x32xf32>
    %446 = arith.addf %435, %445 : vector<24x32xf32>
    %c30 = arith.constant 30 : index
    %447 = memref.load %arg1[%c30] : memref<32xf32, #tpu.memory_space<smem>>
    %c0_214 = arith.constant 0 : index
    %c2_215 = arith.constant 2 : index
    %c0_216 = arith.constant 0 : index
    %448 = vector.load %arg3[%c0_214, %c2_215, %c0_216] : memref<24x8x32xf32, #tpu.memory_space<vmem>>, vector<24x1x32xf32>
    %449 = vector.shape_cast %448 : vector<24x1x32xf32> to vector<24x32xf32>
    %450 = vector.broadcast %447 : f32 to vector<24x32xf32>
    %451 = arith.mulf %449, %450 : vector<24x32xf32>
    %452 = arith.addf %441, %451 : vector<24x32xf32>
    %c0_217 = arith.constant 0 : index
    %c6_218 = arith.constant 6 : index
    %c0_219 = arith.constant 0 : index
    %453 = vector.load %arg3[%c0_217, %c6_218, %c0_219] : memref<24x8x32xf32, #tpu.memory_space<vmem>>, vector<24x1x32xf32>
    %454 = vector.shape_cast %453 : vector<24x1x32xf32> to vector<24x32xf32>
    %455 = vector.broadcast %447 : f32 to vector<24x32xf32>
    %456 = arith.mulf %454, %455 : vector<24x32xf32>
    %457 = arith.addf %446, %456 : vector<24x32xf32>
    %c31 = arith.constant 31 : index
    %458 = memref.load %arg1[%c31] : memref<32xf32, #tpu.memory_space<smem>>
    %c0_220 = arith.constant 0 : index
    %c3_221 = arith.constant 3 : index
    %c0_222 = arith.constant 0 : index
    %459 = vector.load %arg3[%c0_220, %c3_221, %c0_222] : memref<24x8x32xf32, #tpu.memory_space<vmem>>, vector<24x1x32xf32>
    %460 = vector.shape_cast %459 : vector<24x1x32xf32> to vector<24x32xf32>
    %461 = vector.broadcast %458 : f32 to vector<24x32xf32>
    %462 = arith.mulf %460, %461 : vector<24x32xf32>
    %463 = arith.addf %452, %462 : vector<24x32xf32>
    %c0_223 = arith.constant 0 : index
    %c7_224 = arith.constant 7 : index
    %c0_225 = arith.constant 0 : index
    %464 = vector.load %arg3[%c0_223, %c7_224, %c0_225] : memref<24x8x32xf32, #tpu.memory_space<vmem>>, vector<24x1x32xf32>
    %465 = vector.shape_cast %464 : vector<24x1x32xf32> to vector<24x32xf32>
    %466 = vector.broadcast %458 : f32 to vector<24x32xf32>
    %467 = arith.mulf %465, %466 : vector<24x32xf32>
    %468 = arith.addf %457, %467 : vector<24x32xf32>
    %c7_226 = arith.constant 7 : index
    %469 = memref.load %arg2[%c7_226] : memref<8xf32, #tpu.memory_space<smem>>
    %470 = vector.broadcast %469 : f32 to vector<24x32xf32>
    %471 = arith.addf %463, %470 : vector<24x32xf32>
    %472 = vector.broadcast %469 : f32 to vector<24x32xf32>
    %473 = arith.addf %468, %472 : vector<24x32xf32>
    %474 = arith.mulf %471, %473 : vector<24x32xf32>
    %cst_227 = arith.constant dense<0.000000e+00> : vector<24xf32>
    %475 = vector.multi_reduction <add>, %474, %cst_227 [1] : vector<24x32xf32> to vector<24xf32>
    %476 = vector.shape_cast %475 : vector<24xf32> to vector<24x1xf32>
    %477 = arith.mulf %471, %471 : vector<24x32xf32>
    %cst_228 = arith.constant dense<0.000000e+00> : vector<24xf32>
    %478 = vector.multi_reduction <add>, %477, %cst_228 [1] : vector<24x32xf32> to vector<24xf32>
    %479 = vector.shape_cast %478 : vector<24xf32> to vector<24x1xf32>
    %480 = arith.mulf %473, %473 : vector<24x32xf32>
    %cst_229 = arith.constant dense<0.000000e+00> : vector<24xf32>
    %481 = vector.multi_reduction <add>, %480, %cst_229 [1] : vector<24x32xf32> to vector<24xf32>
    %482 = vector.shape_cast %481 : vector<24xf32> to vector<24x1xf32>
    %483 = arith.mulf %479, %482 : vector<24x1xf32>
    %cst_230 = arith.constant 1.000000e-16 : f32
    %484 = vector.broadcast %cst_230 : f32 to vector<24x1xf32>
    %485 = arith.maximumf %483, %484 : vector<24x1xf32>
    %486 = math.rsqrt %485 : vector<24x1xf32>
    %487 = arith.mulf %476, %486 : vector<24x1xf32>
    %488 = tpu.concatenate %60, %121, %182, %243, %304, %365, %426, %487 in 1 : vector<24x1xf32>, vector<24x1xf32>, vector<24x1xf32>, vector<24x1xf32>, vector<24x1xf32>, vector<24x1xf32>, vector<24x1xf32>, vector<24x1xf32> -> vector<24x8xf32>
    %c0_231 = arith.constant 0 : index
    %c0_232 = arith.constant 0 : index
    %489 = vector.load %arg4[%c0_231, %c0_232] : memref<24x8xf32, #tpu.memory_space<vmem>>, vector<24x8xf32>
    tpu.vector_store %arg4[%c0_231, %c0_232], %488 {strides = array<i32>} : memref<24x8xf32, #tpu.memory_space<vmem>>, vector<24x8xf32>,
    return
  }
  func.func @transform_0(%arg0: i32, %arg1: memref<32xf32, #tpu.memory_space<smem>>, %arg2: memref<8xf32, #tpu.memory_space<smem>>) -> (i32, i32, i32) {
    %c0_i32 = arith.constant 0 : i32
    %c0_i32_0 = arith.constant 0 : i32
    %c0_i32_1 = arith.constant 0 : i32
    return %arg0, %c0_i32, %c0_i32_0 : i32, i32, i32
  }
  func.func @transform_1(%arg0: i32, %arg1: memref<32xf32, #tpu.memory_space<smem>>, %arg2: memref<8xf32, #tpu.memory_space<smem>>) -> (i32, i32) {
    %c0_i32 = arith.constant 0 : i32
    %c0_i32_0 = arith.constant 0 : i32
    return %arg0, %c0_i32 : i32, i32
  }
}

</mosaic_0001>

<llo_original>
// kernel: tpu_custom_call.1
$region0: #{tpu_custom_call.1}
  #allocation0 [shape = 'u32[]', space=smem, size = 0x4, offset = 0x4, fixed_abs, tag = 'smem constant byte address 0x4 - core index']
  #allocation1 [shape = 'u32[144,128]{1,0:T(1,128)}', space=vmem, size = 0x12000, scoped, tag = 'internal scratch']
  #allocation2 [shape = 's32[1]{0}', space=sflag, size = 0x4, scoped, tag = 'scoped memory for tpu_custom_call.1']
  #allocation3 [shape = 'u8[512]{0}', space=smem, size = 0x200, scoped, tag = 'prefetched SMEM operand 0']
  #allocation4 [shape = 'u8[512]{0}', space=smem, size = 0x200, scoped, tag = 'prefetched SMEM operand 1']
  %s0 = inlined_call_operand.hbm [shape: f32[32], index: 0, kind: input, shape index: {}]
  %s1 = inlined_call_operand.vmem [shape: f32[8], index: 1, kind: input, shape index: {}]
  %s2 = inlined_call_operand.hbm [shape: f32[24,8,32], index: 2, kind: input, shape index: {}]
  %s3 = inlined_call_operand.vmem [shape: f32[24,8], index: 3, kind: output, shape index: {}]
  %s4 = sld [smem:[#allocation0]]
  $region18: #{tpu_custom_call.1} parent=0
    _
  %s6 = ssub.s32 1, %s4
  %s7 = scalar_select 0, %s6, %s4
  %9 = dma.hbm_to_smem %s0, 16, [#allocation3], [#allocation2]
  %s10 = sshll.u32 %s1, 4
  %s11 = int_to_ptr.vmem [resolvable:$true] %s10
  %13 = dma.vmem_to_smem %s11, 16, [#allocation4], [#allocation2]
  %14 = dma.done [#allocation2], 32
  %15 = sfence
  $region1: #{tpu_custom_call.1} parent=0
    #allocation5 [shape = 'u8[98304]{0}', space=vmem, size = 0x18000, scoped, tag = 'input window, operand 2, single buffered']
    #allocation6 [shape = 's32[1]{0}', space=sflag, size = 0x4, scoped, tag = 'scoped memory for tpu_custom_call.1']
    %16 = vsyncpa [#allocation6], 0
    // Predicated region
    $region2: #{tpu_custom_call.1} parent=1 // pred_check
      _
    $region3: #{tpu_custom_call.1} parent=1 // pred_check_branch
      %18 = sbr.rel (0) target = $region5
    $region4: #{tpu_custom_call.1} parent=1 // pred_region
      %s20 = ssub.s32 3072, 3072
      %21 = vsyncadd [#allocation6], %s20
      %s22 = sshll.u32 [#allocation5], 4
      %s23 = int_to_ptr.vmem [resolvable:$true] %s22
      %28 = dma.hbm_to_vmem [thread:$0]  %s2, 3072, %s23, [#allocation6], 128, 128, 8
    $region5: #{tpu_custom_call.1} parent=1 // pred_fallthru
      _
    // Predicated region
    $region6: #{tpu_custom_call.1} parent=1 // pred_check
      _
    $region7: #{tpu_custom_call.1} parent=1 // pred_check_branch
      %30 = sbr.rel (0) target = $region9
    $region8: #{tpu_custom_call.1} parent=1 // pred_region
      %31 = dma.done [#allocation6], 3072
    $region9: #{tpu_custom_call.1} parent=1 // pred_fallthru
      _
    %s32 = sld [smem:[#allocation3]]
    %v33 = vld [vmem:[#allocation5] sm:$0x1]
    %v34 = vld [vmem:[#allocation5 + $0x8] sm:$0x1]
    %v35 = vld [vmem:[#allocation5 + $0x10] sm:$0x1]
    %v36 = vld [vmem:[#allocation5 + $0x18] sm:$0x1]
    %v37 = vld [vmem:[#allocation5 + $0x20] sm:$0x1]
    %v38 = vld [vmem:[#allocation5 + $0x28] sm:$0x1]
    %v39 = vld [vmem:[#allocation5 + $0x30] sm:$0x1]
    %v40 = vld [vmem:[#allocation5 + $0x38] sm:$0x1]
    %v41 = vld [vmem:[#allocation5 + $0x40] sm:$0x1]
    %v42 = vld [vmem:[#allocation5 + $0x48] sm:$0x1]
    %v43 = vld [vmem:[#allocation5 + $0x50] sm:$0x1]
    %v44 = vld [vmem:[#allocation5 + $0x58] sm:$0x1]
    %v45 = vld [vmem:[#allocation5 + $0x60] sm:$0x1]
    %v46 = vld [vmem:[#allocation5 + $0x68] sm:$0x1]
    %v47 = vld [vmem:[#allocation5 + $0x70] sm:$0x1]
    %v48 = vld [vmem:[#allocation5 + $0x78] sm:$0x1]
    %v49 = vld [vmem:[#allocation5 + $0x80] sm:$0x1]
    %v50 = vld [vmem:[#allocation5 + $0x88] sm:$0x1]
    %v51 = vld [vmem:[#allocation5 + $0x90] sm:$0x1]
    %v52 = vld [vmem:[#allocation5 + $0x98] sm:$0x1]
    %v53 = vld [vmem:[#allocation5 + $0xa0] sm:$0x1]
    %v54 = vld [vmem:[#allocation5 + $0xa8] sm:$0x1]
    %v55 = vld [vmem:[#allocation5 + $0xb0] sm:$0x1]
    %v56 = vld [vmem:[#allocation5 + $0xb8] sm:$0x1]
    %v57 = vstv %s32
    %v58 = vmul.f32 %v33, %v57
    %v59 = vmul.f32 %v34, %v57
    %v60 = vmul.f32 %v35, %v57
    %v61 = vmul.f32 %v36, %v57
    %v62 = vmul.f32 %v37, %v57
    %v63 = vmul.f32 %v38, %v57
    %v64 = vmul.f32 %v39, %v57
    %v65 = vmul.f32 %v40, %v57
    %v66 = vmul.f32 %v41, %v57
    %v67 = vmul.f32 %v42, %v57
    %v68 = vmul.f32 %v43, %v57
    %v69 = vmul.f32 %v44, %v57
    %v70 = vmul.f32 %v45, %v57
    %v71 = vmul.f32 %v46, %v57
    %v72 = vmul.f32 %v47, %v57
    %v73 = vmul.f32 %v48, %v57
    %v74 = vmul.f32 %v49, %v57
    %v75 = vmul.f32 %v50, %v57
    %v76 = vmul.f32 %v51, %v57
    %v77 = vmul.f32 %v52, %v57
    %v78 = vmul.f32 %v53, %v57
    %v79 = vmul.f32 %v54, %v57
    %v80 = vmul.f32 %v55, %v57
    %v81 = vmul.f32 %v56, %v57
    %v82 = vld [vmem:[#allocation5 + $0x4] sm:$0x1]
    %v83 = vld [vmem:[#allocation5 + $0xc] sm:$0x1]
    %v84 = vld [vmem:[#allocation5 + $0x14] sm:$0x1]
    %v85 = vld [vmem:[#allocation5 + $0x1c] sm:$0x1]
    %v86 = vld [vmem:[#allocation5 + $0x24] sm:$0x1]
    %v87 = vld [vmem:[#allocation5 + $0x2c] sm:$0x1]
    %v88 = vld [vmem:[#allocation5 + $0x34] sm:$0x1]
    %v89 = vld [vmem:[#allocation5 + $0x3c] sm:$0x1]
    %v90 = vld [vmem:[#allocation5 + $0x44] sm:$0x1]
    %v91 = vld [vmem:[#allocation5 + $0x4c] sm:$0x1]
    %v92 = vld [vmem:[#allocation5 + $0x54] sm:$0x1]
    %v93 = vld [vmem:[#allocation5 + $0x5c] sm:$0x1]
    %v94 = vld [vmem:[#allocation5 + $0x64] sm:$0x1]
    %v95 = vld [vmem:[#allocation5 + $0x6c] sm:$0x1]
    %v96 = vld [vmem:[#allocation5 + $0x74] sm:$0x1]
    %v97 = vld [vmem:[#allocation5 + $0x7c] sm:$0x1]
    %v98 = vld [vmem:[#allocation5 + $0x84] sm:$0x1]
    %v99 = vld [vmem:[#allocation5 + $0x8c] sm:$0x1]
    %v100 = vld [vmem:[#allocation5 + $0x94] sm:$0x1]
    %v101 = vld [vmem:[#allocation5 + $0x9c] sm:$0x1]
    %v102 = vld [vmem:[#allocation5 + $0xa4] sm:$0x1]
    %v103 = vld [vmem:[#allocation5 + $0xac] sm:$0x1]
    %v104 = vld [vmem:[#allocation5 + $0xb4] sm:$0x1]
    %v105 = vld [vmem:[#allocation5 + $0xbc] sm:$0x1]
    %v106 = vmul.f32 %v82, %v57
    %v107 = vmul.f32 %v83, %v57
    %v108 = vmul.f32 %v84, %v57
    %v109 = vmul.f32 %v85, %v57
    %v110 = vmul.f32 %v86, %v57
    %v111 = vmul.f32 %v87, %v57
    %v112 = vmul.f32 %v88, %v57
    %v113 = vmul.f32 %v89, %v57
    %v114 = vmul.f32 %v90, %v57
    %v115 = vmul.f32 %v91, %v57
    %v116 = vmul.f32 %v92, %v57
    %v117 = vmul.f32 %v93, %v57
    %v118 = vmul.f32 %v94, %v57
    %v119 = vmul.f32 %v95, %v57
    %v120 = vmul.f32 %v96, %v57
    %v121 = vmul.f32 %v97, %v57
    %v122 = vmul.f32 %v98, %v57
    %v123 = vmul.f32 %v99, %v57
    %v124 = vmul.f32 %v100, %v57
    %v125 = vmul.f32 %v101, %v57
    %v126 = vmul.f32 %v102, %v57
    %v127 = vmul.f32 %v103, %v57
    %v128 = vmul.f32 %v104, %v57
    %v129 = vmul.f32 %v105, %v57
    %s130 = sld [smem:[#allocation3 + $0x1]]
    %v131 = vld [vmem:[#allocation5 + $0x1] sm:$0x1]
    %v132 = vld [vmem:[#allocation5 + $0x9] sm:$0x1]
    %v133 = vld [vmem:[#allocation5 + $0x11] sm:$0x1]
    %v134 = vld [vmem:[#allocation5 + $0x19] sm:$0x1]
    %v135 = vld [vmem:[#allocation5 + $0x21] sm:$0x1]
    %v136 = vld [vmem:[#allocation5 + $0x29] sm:$0x1]
    %v137 = vld [vmem:[#allocation5 + $0x31] sm:$0x1]
    %v138 = vld [vmem:[#allocation5 + $0x39] sm:$0x1]
    %v139 = vld [vmem:[#allocation5 + $0x41] sm:$0x1]
    %v140 = vld [vmem:[#allocation5 + $0x49] sm:$0x1]
    %v141 = vld [vmem:[#allocation5 + $0x51] sm:$0x1]
    %v142 = vld [vmem:[#allocation5 + $0x59] sm:$0x1]
    %v143 = vld [vmem:[#allocation5 + $0x61] sm:$0x1]
    %v144 = vld [vmem:[#allocation5 + $0x69] sm:$0x1]
    %v145 = vld [vmem:[#allocation5 + $0x71] sm:$0x1]
    %v146 = vld [vmem:[#allocation5 + $0x79] sm:$0x1]
    %v147 = vld [vmem:[#allocation5 + $0x81] sm:$0x1]
    %v148 = vld [vmem:[#allocation5 + $0x89] sm:$0x1]
    %v149 = vld [vmem:[#allocation5 + $0x91] sm:$0x1]
    %v150 = vld [vmem:[#allocation5 + $0x99] sm:$0x1]
    %v151 = vld [vmem:[#allocation5 + $0xa1] sm:$0x1]
    %v152 = vld [vmem:[#allocation5 + $0xa9] sm:$0x1]
    %v153 = vld [vmem:[#allocation5 + $0xb1] sm:$0x1]
    %v154 = vld [vmem:[#allocation5 + $0xb9] sm:$0x1]
    %v155 = vstv %s130
    %v156 = vmul.f32 %v131, %v155
    %v157 = vmul.f32 %v132, %v155
    %v158 = vmul.f32 %v133, %v155
    %v159 = vmul.f32 %v134, %v155
    %v160 = vmul.f32 %v135, %v155
    %v161 = vmul.f32 %v136, %v155
    %v162 = vmul.f32 %v137, %v155
    %v163 = vmul.f32 %v138, %v155
    %v164 = vmul.f32 %v139, %v155
    %v165 = vmul.f32 %v140, %v155
    %v166 = vmul.f32 %v141, %v155
    %v167 = vmul.f32 %v142, %v155
    %v168 = vmul.f32 %v143, %v155
    %v169 = vmul.f32 %v144, %v155
    %v170 = vmul.f32 %v145, %v155
    %v171 = vmul.f32 %v146, %v155
    %v172 = vmul.f32 %v147, %v155
    %v173 = vmul.f32 %v148, %v155
    %v174 = vmul.f32 %v149, %v155
    %v175 = vmul.f32 %v150, %v155
    %v176 = vmul.f32 %v151, %v155
    %v177 = vmul.f32 %v152, %v155
    %v178 = vmul.f32 %v153, %v155
    %v179 = vmul.f32 %v154, %v155
    %v180 = vadd.f32 %v58, %v156
    %v181 = vadd.f32 %v59, %v157
    %v182 = vadd.f32 %v60, %v158
    %v183 = vadd.f32 %v61, %v159
    %v184 = vadd.f32 %v62, %v160
    %v185 = vadd.f32 %v63, %v161
    %v186 = vadd.f32 %v64, %v162
    %v187 = vadd.f32 %v65, %v163
    %v188 = vadd.f32 %v66, %v164
    %v189 = vadd.f32 %v67, %v165
    %v190 = vadd.f32 %v68, %v166
    %v191 = vadd.f32 %v69, %v167
    %v192 = vadd.f32 %v70, %v168
    %v193 = vadd.f32 %v71, %v169
    %v194 = vadd.f32 %v72, %v170
    %v195 = vadd.f32 %v73, %v171
    %v196 = vadd.f32 %v74, %v172
    %v197 = vadd.f32 %v75, %v173
    %v198 = vadd.f32 %v76, %v174
    %v199 = vadd.f32 %v77, %v175
    %v200 = vadd.f32 %v78, %v176
    %v201 = vadd.f32 %v79, %v177
    %v202 = vadd.f32 %v80, %v178
    %v203 = vadd.f32 %v81, %v179
    %v204 = vld [vmem:[#allocation5 + $0x5] sm:$0x1]
    %v205 = vld [vmem:[#allocation5 + $0xd] sm:$0x1]
    %v206 = vld [vmem:[#allocation5 + $0x15] sm:$0x1]
    %v207 = vld [vmem:[#allocation5 + $0x1d] sm:$0x1]
    %v208 = vld [vmem:[#allocation5 + $0x25] sm:$0x1]
    %v209 = vld [vmem:[#allocation5 + $0x2d] sm:$0x1]
    %v210 = vld [vmem:[#allocation5 + $0x35] sm:$0x1]
    %v211 = vld [vmem:[#allocation5 + $0x3d] sm:$0x1]
    %v212 = vld [vmem:[#allocation5 + $0x45] sm:$0x1]
    %v213 = vld [vmem:[#allocation5 + $0x4d] sm:$0x1]
    %v214 = vld [vmem:[#allocation5 + $0x55] sm:$0x1]
    %v215 = vld [vmem:[#allocation5 + $0x5d] sm:$0x1]
    %v216 = vld [vmem:[#allocation5 + $0x65] sm:$0x1]
    %v217 = vld [vmem:[#allocation5 + $0x6d] sm:$0x1]
    %v218 = vld [vmem:[#allocation5 + $0x75] sm:$0x1]
    %v219 = vld [vmem:[#allocation5 + $0x7d] sm:$0x1]
    %v220 = vld [vmem:[#allocation5 + $0x85] sm:$0x1]
    %v221 = vld [vmem:[#allocation5 + $0x8d] sm:$0x1]
    %v222 = vld [vmem:[#allocation5 + $0x95] sm:$0x1]
    %v223 = vld [vmem:[#allocation5 + $0x9d] sm:$0x1]
    %v224 = vld [vmem:[#allocation5 + $0xa5] sm:$0x1]
    %v225 = vld [vmem:[#allocation5 + $0xad] sm:$0x1]
    %v226 = vld [vmem:[#allocation5 + $0xb5] sm:$0x1]
    %v227 = vld [vmem:[#allocation5 + $0xbd] sm:$0x1]
    %v228 = vmul.f32 %v204, %v155
    %v229 = vmul.f32 %v205, %v155
    %v230 = vmul.f32 %v206, %v155
    %v231 = vmul.f32 %v207, %v155
    %v232 = vmul.f32 %v208, %v155
    %v233 = vmul.f32 %v209, %v155
    %v234 = vmul.f32 %v210, %v155
    %v235 = vmul.f32 %v211, %v155
    %v236 = vmul.f32 %v212, %v155
    %v237 = vmul.f32 %v213, %v155
    %v238 = vmul.f32 %v214, %v155
    %v239 = vmul.f32 %v215, %v155
    %v240 = vmul.f32 %v216, %v155
    %v241 = vmul.f32 %v217, %v155
    %v242 = vmul.f32 %v218, %v155
    %v243 = vmul.f32 %v219, %v155
    %v244 = vmul.f32 %v220, %v155
    %v245 = vmul.f32 %v221, %v155
    %v246 = vmul.f32 %v222, %v155
    %v247 = vmul.f32 %v223, %v155
    %v248 = vmul.f32 %v224, %v155
    %v249 = vmul.f32 %v225, %v155
    %v250 = vmul.f32 %v226, %v155
    %v251 = vmul.f32 %v227, %v155
    %v252 = vadd.f32 %v106, %v228
    %v253 = vadd.f32 %v107, %v229
    %v254 = vadd.f32 %v108, %v230
    %v255 = vadd.f32 %v109, %v231
    %v256 = vadd.f32 %v110, %v232
    %v257 = vadd.f32 %v111, %v233
    %v258 = vadd.f32 %v112, %v234
    %v259 = vadd.f32 %v113, %v235
    %v260 = vadd.f32 %v114, %v236
    %v261 = vadd.f32 %v115, %v237
    %v262 = vadd.f32 %v116, %v238
    %v263 = vadd.f32 %v117, %v239
    %v264 = vadd.f32 %v118, %v240
    %v265 = vadd.f32 %v119, %v241
    %v266 = vadd.f32 %v120, %v242
    %v267 = vadd.f32 %v121, %v243
    %v268 = vadd.f32 %v122, %v244
    %v269 = vadd.f32 %v123, %v245
    %v270 = vadd.f32 %v124, %v246
    %v271 = vadd.f32 %v125, %v247
    %v272 = vadd.f32 %v126, %v248
    %v273 = vadd.f32 %v127, %v249
    %v274 = vadd.f32 %v128, %v250
    %v275 = vadd.f32 %v129, %v251
    %s276 = sld [smem:[#allocation3 + $0x2]]
    %v277 = vld [vmem:[#allocation5 + $0x2] sm:$0x1]
    %v278 = vld [vmem:[#allocation5 + $0xa] sm:$0x1]
    %v279 = vld [vmem:[#allocation5 + $0x12] sm:$0x1]
    %v280 = vld [vmem:[#allocation5 + $0x1a] sm:$0x1]
    %v281 = vld [vmem:[#allocation5 + $0x22] sm:$0x1]
    %v282 = vld [vmem:[#allocation5 + $0x2a] sm:$0x1]
    %v283 = vld [vmem:[#allocation5 + $0x32] sm:$0x1]
    %v284 = vld [vmem:[#allocation5 + $0x3a] sm:$0x1]
    %v285 = vld [vmem:[#allocation5 + $0x42] sm:$0x1]
    %v286 = vld [vmem:[#allocation5 + $0x4a] sm:$0x1]
    %v287 = vld [vmem:[#allocation5 + $0x52] sm:$0x1]
    %v288 = vld [vmem:[#allocation5 + $0x5a] sm:$0x1]
    %v289 = vld [vmem:[#allocation5 + $0x62] sm:$0x1]
    %v290 = vld [vmem:[#allocation5 + $0x6a] sm:$0x1]
    %v291 = vld [vmem:[#allocation5 + $0x72] sm:$0x1]
    %v292 = vld [vmem:[#allocation5 + $0x7a] sm:$0x1]
    %v293 = vld [vmem:[#allocation5 + $0x82] sm:$0x1]
    %v294 = vld [vmem:[#allocation5 + $0x8a] sm:$0x1]
    %v295 = vld [vmem:[#allocation5 + $0x92] sm:$0x1]
    %v296 = vld [vmem:[#allocation5 + $0x9a] sm:$0x1]
    %v297 = vld [vmem:[#allocation5 + $0xa2] sm:$0x1]
    %v298 = vld [vmem:[#allocation5 + $0xaa] sm:$0x1]
    %v299 = vld [vmem:[#allocation5 + $0xb2] sm:$0x1]
    %v300 = vld [vmem:[#allocation5 + $0xba] sm:$0x1]
    %v301 = vstv %s276
    %v302 = vmul.f32 %v277, %v301
    %v303 = vmul.f32 %v278, %v301
    %v304 = vmul.f32 %v279, %v301
    %v305 = vmul.f32 %v280, %v301
    %v306 = vmul.f32 %v281, %v301
    %v307 = vmul.f32 %v282, %v301
    %v308 = vmul.f32 %v283, %v301
    %v309 = vmul.f32 %v284, %v301
    %v310 = vmul.f32 %v285, %v301
    %v311 = vmul.f32 %v286, %v301
    %v312 = vmul.f32 %v287, %v301
    %v313 = vmul.f32 %v288, %v301
    %v314 = vmul.f32 %v289, %v301
    %v315 = vmul.f32 %v290, %v301
    %v316 = vmul.f32 %v291, %v301
    %v317 = vmul.f32 %v292, %v301
    %v318 = vmul.f32 %v293, %v301
    %v319 = vmul.f32 %v294, %v301
    %v320 = vmul.f32 %v295, %v301
    %v321 = vmul.f32 %v296, %v301
    %v322 = vmul.f32 %v297, %v301
    %v323 = vmul.f32 %v298, %v301
    %v324 = vmul.f32 %v299, %v301
    %v325 = vmul.f32 %v300, %v301
    %v326 = vadd.f32 %v180, %v302
    %v327 = vadd.f32 %v181, %v303
    %v328 = vadd.f32 %v182, %v304
    %v329 = vadd.f32 %v183, %v305
    %v330 = vadd.f32 %v184, %v306
    %v331 = vadd.f32 %v185, %v307
    %v332 = vadd.f32 %v186, %v308
    %v333 = vadd.f32 %v187, %v309
    %v334 = vadd.f32 %v188, %v310
    %v335 = vadd.f32 %v189, %v311
    %v336 = vadd.f32 %v190, %v312
    %v337 = vadd.f32 %v191, %v313
    %v338 = vadd.f32 %v192, %v314
    %v339 = vadd.f32 %v193, %v315
    %v340 = vadd.f32 %v194, %v316
    %v341 = vadd.f32 %v195, %v317
    %v342 = vadd.f32 %v196, %v318
    %v343 = vadd.f32 %v197, %v319
    %v344 = vadd.f32 %v198, %v320
    %v345 = vadd.f32 %v199, %v321
    %v346 = vadd.f32 %v200, %v322
    %v347 = vadd.f32 %v201, %v323
    %v348 = vadd.f32 %v202, %v324
    %v349 = vadd.f32 %v203, %v325
    %v350 = vld [vmem:[#allocation5 + $0x6] sm:$0x1]
    %v351 = vld [vmem:[#allocation5 + $0xe] sm:$0x1]
    %v352 = vld [vmem:[#allocation5 + $0x16] sm:$0x1]
    %v353 = vld [vmem:[#allocation5 + $0x1e] sm:$0x1]
    %v354 = vld [vmem:[#allocation5 + $0x26] sm:$0x1]
    %v355 = vld [vmem:[#allocation5 + $0x2e] sm:$0x1]
    %v356 = vld [vmem:[#allocation5 + $0x36] sm:$0x1]
    %v357 = vld [vmem:[#allocation5 + $0x3e] sm:$0x1]
    %v358 = vld [vmem:[#allocation5 + $0x46] sm:$0x1]
    %v359 = vld [vmem:[#allocation5 + $0x4e] sm:$0x1]
    %v360 = vld [vmem:[#allocation5 + $0x56] sm:$0x1]
    %v361 = vld [vmem:[#allocation5 + $0x5e] sm:$0x1]
    %v362 = vld [vmem:[#allocation5 + $0x66] sm:$0x1]
    %v363 = vld [vmem:[#allocation5 + $0x6e] sm:$0x1]
    %v364 = vld [vmem:[#allocation5 + $0x76] sm:$0x1]
    %v365 = vld [vmem:[#allocation5 + $0x7e] sm:$0x1]
    %v366 = vld [vmem:[#allocation5 + $0x86] sm:$0x1]
    %v367 = vld [vmem:[#allocation5 + $0x8e] sm:$0x1]
    %v368 = vld [vmem:[#allocation5 + $0x96] sm:$0x1]
    %v369 = vld [vmem:[#allocation5 + $0x9e] sm:$0x1]
    %v370 = vld [vmem:[#allocation5 + $0xa6] sm:$0x1]
    %v371 = vld [vmem:[#allocation5 + $0xae] sm:$0x1]
    %v372 = vld [vmem:[#allocation5 + $0xb6] sm:$0x1]
    %v373 = vld [vmem:[#allocation5 + $0xbe] sm:$0x1]
    %v374 = vmul.f32 %v350, %v301
    %v375 = vmul.f32 %v351, %v301
    %v376 = vmul.f32 %v352, %v301
    %v377 = vmul.f32 %v353, %v301
    %v378 = vmul.f32 %v354, %v301
    %v379 = vmul.f32 %v355, %v301
    %v380 = vmul.f32 %v356, %v301
    %v381 = vmul.f32 %v357, %v301
    %v382 = vmul.f32 %v358, %v301
    %v383 = vmul.f32 %v359, %v301
    %v384 = vmul.f32 %v360, %v301
    %v385 = vmul.f32 %v361, %v301
    %v386 = vmul.f32 %v362, %v301
    %v387 = vmul.f32 %v363, %v301
    %v388 = vmul.f32 %v364, %v301
    %v389 = vmul.f32 %v365, %v301
    %v390 = vmul.f32 %v366, %v301
    %v391 = vmul.f32 %v367, %v301
    %v392 = vmul.f32 %v368, %v301
    %v393 = vmul.f32 %v369, %v301
    %v394 = vmul.f32 %v370, %v301
    %v395 = vmul.f32 %v371, %v301
    %v396 = vmul.f32 %v372, %v301
    %v397 = vmul.f32 %v373, %v301
    %v398 = vadd.f32 %v252, %v374
    %v399 = vadd.f32 %v253, %v375
    %v400 = vadd.f32 %v254, %v376
    %v401 = vadd.f32 %v255, %v377
    %v402 = vadd.f32 %v256, %v378
    %v403 = vadd.f32 %v257, %v379
    %v404 = vadd.f32 %v258, %v380
    %v405 = vadd.f32 %v259, %v381
    %v406 = vadd.f32 %v260, %v382
    %v407 = vadd.f32 %v261, %v383
    %v408 = vadd.f32 %v262, %v384
    %v409 = vadd.f32 %v263, %v385
    %v410 = vadd.f32 %v264, %v386
    %v411 = vadd.f32 %v265, %v387
    %v412 = vadd.f32 %v266, %v388
    %v413 = vadd.f32 %v267, %v389
    %v414 = vadd.f32 %v268, %v390
    %v415 = vadd.f32 %v269, %v391
    %v416 = vadd.f32 %v270, %v392
    %v417 = vadd.f32 %v271, %v393
    %v418 = vadd.f32 %v272, %v394
    %v419 = vadd.f32 %v273, %v395
    %v420 = vadd.f32 %v274, %v396
    %v421 = vadd.f32 %v275, %v397
    %s422 = sld [smem:[#allocation3 + $0x3]]
    %v423 = vld [vmem:[#allocation5 + $0x3] sm:$0x1]
    %v424 = vld [vmem:[#allocation5 + $0xb] sm:$0x1]
    %v425 = vld [vmem:[#allocation5 + $0x13] sm:$0x1]
    %v426 = vld [vmem:[#allocation5 + $0x1b] sm:$0x1]
    %v427 = vld [vmem:[#allocation5 + $0x23] sm:$0x1]
    %v428 = vld [vmem:[#allocation5 + $0x2b] sm:$0x1]
    %v429 = vld [vmem:[#allocation5 + $0x33] sm:$0x1]
    %v430 = vld [vmem:[#allocation5 + $0x3b] sm:$0x1]
    %v431 = vld [vmem:[#allocation5 + $0x43] sm:$0x1]
    %v432 = vld [vmem:[#allocation5 + $0x4b] sm:$0x1]
    %v433 = vld [vmem:[#allocation5 + $0x53] sm:$0x1]
    %v434 = vld [vmem:[#allocation5 + $0x5b] sm:$0x1]
    %v435 = vld [vmem:[#allocation5 + $0x63] sm:$0x1]
    %v436 = vld [vmem:[#allocation5 + $0x6b] sm:$0x1]
    %v437 = vld [vmem:[#allocation5 + $0x73] sm:$0x1]
    %v438 = vld [vmem:[#allocation5 + $0x7b] sm:$0x1]
    %v439 = vld [vmem:[#allocation5 + $0x83] sm:$0x1]
    %v440 = vld [vmem:[#allocation5 + $0x8b] sm:$0x1]
    %v441 = vld [vmem:[#allocation5 + $0x93] sm:$0x1]
    %v442 = vld [vmem:[#allocation5 + $0x9b] sm:$0x1]
    %v443 = vld [vmem:[#allocation5 + $0xa3] sm:$0x1]
    %v444 = vld [vmem:[#allocation5 + $0xab] sm:$0x1]
    %v445 = vld [vmem:[#allocation5 + $0xb3] sm:$0x1]
    %v446 = vld [vmem:[#allocation5 + $0xbb] sm:$0x1]
    %v447 = vstv %s422
    %v448 = vmul.f32 %v423, %v447
    %v449 = vmul.f32 %v424, %v447
    %v450 = vmul.f32 %v425, %v447
    %v451 = vmul.f32 %v426, %v447
    %v452 = vmul.f32 %v427, %v447
    %v453 = vmul.f32 %v428, %v447
    %v454 = vmul.f32 %v429, %v447
    %v455 = vmul.f32 %v430, %v447
    %v456 = vmul.f32 %v431, %v447
    %v457 = vmul.f32 %v432, %v447
    %v458 = vmul.f32 %v433, %v447
    %v459 = vmul.f32 %v434, %v447
    %v460 = vmul.f32 %v435, %v447
    %v461 = vmul.f32 %v436, %v447
    %v462 = vmul.f32 %v437, %v447
    %v463 = vmul.f32 %v438, %v447
    %v464 = vmul.f32 %v439, %v447
    %v465 = vmul.f32 %v440, %v447
    %v466 = vmul.f32 %v441, %v447
    %v467 = vmul.f32 %v442, %v447
    %v468 = vmul.f32 %v443, %v447
    %v469 = vmul.f32 %v444, %v447
    %v470 = vmul.f32 %v445, %v447
    %v471 = vmul.f32 %v446, %v447
    %v472 = vadd.f32 %v326, %v448
    %v473 = vadd.f32 %v327, %v449
    %v474 = vadd.f32 %v328, %v450
    %v475 = vadd.f32 %v329, %v451
    %v476 = vadd.f32 %v330, %v452
    %v477 = vadd.f32 %v331, %v453
    %v478 = vadd.f32 %v332, %v454
    %v479 = vadd.f32 %v333, %v455
    %v480 = vadd.f32 %v334, %v456
    %v481 = vadd.f32 %v335, %v457
    %v482 = vadd.f32 %v336, %v458
    %v483 = vadd.f32 %v337, %v459
    %v484 = vadd.f32 %v338, %v460
    %v485 = vadd.f32 %v339, %v461
    %v486 = vadd.f32 %v340, %v462
    %v487 = vadd.f32 %v341, %v463
    %v488 = vadd.f32 %v342, %v464
    %v489 = vadd.f32 %v343, %v465
    %v490 = vadd.f32 %v344, %v466
    %v491 = vadd.f32 %v345, %v467
    %v492 = vadd.f32 %v346, %v468
    %v493 = vadd.f32 %v347, %v469
    %v494 = vadd.f32 %v348, %v470
    %v495 = vadd.f32 %v349, %v471
    %v496 = vld [vmem:[#allocation5 + $0x7] sm:$0x1]
    %v497 = vld [vmem:[#allocation5 + $0xf] sm:$0x1]
    %v498 = vld [vmem:[#allocation5 + $0x17] sm:$0x1]
    %v499 = vld [vmem:[#allocation5 + $0x1f] sm:$0x1]
    %v500 = vld [vmem:[#allocation5 + $0x27] sm:$0x1]
    %v501 = vld [vmem:[#allocation5 + $0x2f] sm:$0x1]
    %v502 = vld [vmem:[#allocation5 + $0x37] sm:$0x1]
    %v503 = vld [vmem:[#allocation5 + $0x3f] sm:$0x1]
    %v504 = vld [vmem:[#allocation5 + $0x47] sm:$0x1]
    %v505 = vld [vmem:[#allocation5 + $0x4f] sm:$0x1]
    %v506 = vld [vmem:[#allocation5 + $0x57] sm:$0x1]
    %v507 = vld [vmem:[#allocation5 + $0x5f] sm:$0x1]
    %v508 = vld [vmem:[#allocation5 + $0x67] sm:$0x1]
    %v509 = vld [vmem:[#allocation5 + $0x6f] sm:$0x1]
    %v510 = vld [vmem:[#allocation5 + $0x77] sm:$0x1]
    %v511 = vld [vmem:[#allocation5 + $0x7f] sm:$0x1]
    %v512 = vld [vmem:[#allocation5 + $0x87] sm:$0x1]
    %v513 = vld [vmem:[#allocation5 + $0x8f] sm:$0x1]
    %v514 = vld [vmem:[#allocation5 + $0x97] sm:$0x1]
    %v515 = vld [vmem:[#allocation5 + $0x9f] sm:$0x1]
    %v516 = vld [vmem:[#allocation5 + $0xa7] sm:$0x1]
    %v517 = vld [vmem:[#allocation5 + $0xaf] sm:$0x1]
    %v518 = vld [vmem:[#allocation5 + $0xb7] sm:$0x1]
    %v519 = vld [vmem:[#allocation5 + $0xbf] sm:$0x1]
    %v520 = vmul.f32 %v496, %v447
    %v521 = vmul.f32 %v497, %v447
    %v522 = vmul.f32 %v498, %v447
    %v523 = vmul.f32 %v499, %v447
    %v524 = vmul.f32 %v500, %v447
    %v525 = vmul.f32 %v501, %v447
    %v526 = vmul.f32 %v502, %v447
    %v527 = vmul.f32 %v503, %v447
    %v528 = vmul.f32 %v504, %v447
    %v529 = vmul.f32 %v505, %v447
    %v530 = vmul.f32 %v506, %v447
    %v531 = vmul.f32 %v507, %v447
    %v532 = vmul.f32 %v508, %v447
    %v533 = vmul.f32 %v509, %v447
    %v534 = vmul.f32 %v510, %v447
    %v535 = vmul.f32 %v511, %v447
    %v536 = vmul.f32 %v512, %v447
    %v537 = vmul.f32 %v513, %v447
    %v538 = vmul.f32 %v514, %v447
    %v539 = vmul.f32 %v515, %v447
    %v540 = vmul.f32 %v516, %v447
    %v541 = vmul.f32 %v517, %v447
    %v542 = vmul.f32 %v518, %v447
    %v543 = vmul.f32 %v519, %v447
    %v544 = vadd.f32 %v398, %v520
    %v545 = vadd.f32 %v399, %v521
    %v546 = vadd.f32 %v400, %v522
    %v547 = vadd.f32 %v401, %v523
    %v548 = vadd.f32 %v402, %v524
    %v549 = vadd.f32 %v403, %v525
    %v550 = vadd.f32 %v404, %v526
    %v551 = vadd.f32 %v405, %v527
    %v552 = vadd.f32 %v406, %v528
    %v553 = vadd.f32 %v407, %v529
    %v554 = vadd.f32 %v408, %v530
    %v555 = vadd.f32 %v409, %v531
    %v556 = vadd.f32 %v410, %v532
    %v557 = vadd.f32 %v411, %v533
    %v558 = vadd.f32 %v412, %v534
    %v559 = vadd.f32 %v413, %v535
    %v560 = vadd.f32 %v414, %v536
    %v561 = vadd.f32 %v415, %v537
    %v562 = vadd.f32 %v416, %v538
    %v563 = vadd.f32 %v417, %v539
    %v564 = vadd.f32 %v418, %v540
    %v565 = vadd.f32 %v419, %v541
    %v566 = vadd.f32 %v420, %v542
    %v567 = vadd.f32 %v421, %v543
    %s568 = sld [smem:[#allocation4]]
    %v569 = vstv %s568
    %v570 = vadd.f32 %v472, %v569
    %v571 = vadd.f32 %v473, %v569
    %v572 = vadd.f32 %v474, %v569
    %v573 = vadd.f32 %v475, %v569
    %v574 = vadd.f32 %v476, %v569
    %v575 = vadd.f32 %v477, %v569
    %v576 = vadd.f32 %v478, %v569
    %v577 = vadd.f32 %v479, %v569
    %v578 = vadd.f32 %v480, %v569
    %v579 = vadd.f32 %v481, %v569
    %v580 = vadd.f32 %v482, %v569
    %v581 = vadd.f32 %v483, %v569
    %v582 = vadd.f32 %v484, %v569
    %v583 = vadd.f32 %v485, %v569
    %v584 = vadd.f32 %v486, %v569
    %v585 = vadd.f32 %v487, %v569
    %v586 = vadd.f32 %v488, %v569
    %v587 = vadd.f32 %v489, %v569
    %v588 = vadd.f32 %v490, %v569
    %v589 = vadd.f32 %v491, %v569
    %v590 = vadd.f32 %v492, %v569
    %v591 = vadd.f32 %v493, %v569
    %v592 = vadd.f32 %v494, %v569
    %v593 = vadd.f32 %v495, %v569
    %v594 = vadd.f32 %v544, %v569
    %v595 = vadd.f32 %v545, %v569
    %v596 = vadd.f32 %v546, %v569
    %v597 = vadd.f32 %v547, %v569
    %v598 = vadd.f32 %v548, %v569
    %v599 = vadd.f32 %v549, %v569
    %v600 = vadd.f32 %v550, %v569
    %v601 = vadd.f32 %v551, %v569
    %v602 = vadd.f32 %v552, %v569
    %v603 = vadd.f32 %v553, %v569
    %v604 = vadd.f32 %v554, %v569
    %v605 = vadd.f32 %v555, %v569
    %v606 = vadd.f32 %v556, %v569
    %v607 = vadd.f32 %v557, %v569
    %v608 = vadd.f32 %v558, %v569
    %v609 = vadd.f32 %v559, %v569
    %v610 = vadd.f32 %v560, %v569
    %v611 = vadd.f32 %v561, %v569
    %v612 = vadd.f32 %v562, %v569
    %v613 = vadd.f32 %v563, %v569
    %v614 = vadd.f32 %v564, %v569
    %v615 = vadd.f32 %v565, %v569
    %v616 = vadd.f32 %v566, %v569
    %v617 = vadd.f32 %v567, %v569
    %v618 = vmul.f32 %v570, %v594
    %v619 = vmul.f32 %v571, %v595
    %v620 = vmul.f32 %v572, %v596
    %v621 = vmul.f32 %v573, %v597
    %v622 = vmul.f32 %v574, %v598
    %v623 = vmul.f32 %v575, %v599
    %v624 = vmul.f32 %v576, %v600
    %v625 = vmul.f32 %v577, %v601
    %v626 = vmul.f32 %v578, %v602
    %v627 = vmul.f32 %v579, %v603
    %v628 = vmul.f32 %v580, %v604
    %v629 = vmul.f32 %v581, %v605
    %v630 = vmul.f32 %v582, %v606
    %v631 = vmul.f32 %v583, %v607
    %v632 = vmul.f32 %v584, %v608
    %v633 = vmul.f32 %v585, %v609
    %v634 = vmul.f32 %v586, %v610
    %v635 = vmul.f32 %v587, %v611
    %v636 = vmul.f32 %v588, %v612
    %v637 = vmul.f32 %v589, %v613
    %v638 = vmul.f32 %v590, %v614
    %v639 = vmul.f32 %v591, %v615
    %v640 = vmul.f32 %v592, %v616
    %v641 = vmul.f32 %v593, %v617
    %v666 = vrot.slane %v619, 7
    %vm667 = vcmask 1041409
    %v668 = vsel %vm667, %v666, %v618
    %v669 = vrot.slane %v620, 6
    %vm670 = vcmask 1042434
    %v671 = vsel %vm670, %v669, %v668
    %v672 = vrot.slane %v621, 5
    %vm673 = vcmask 1043459
    %v674 = vsel %vm673, %v672, %v671
    %v675 = vrot.slane %v622, 4
    %vm676 = vcmask 1044484
    %v677 = vsel %vm676, %v675, %v674
    %v678 = vrot.slane %v623, 3
    %vm679 = vcmask 1045509
    %v680 = vsel %vm679, %v678, %v677
    %v681 = vrot.slane %v624, 2
    %vm682 = vcmask 1046534
    %v683 = vsel %vm682, %v681, %v680
    %v684 = vrot.slane %v625, 1
    %vm685 = vcmask 1047559
    %v686 = vsel %vm685, %v684, %v683
    %v687 = vrot.slane %v627, 7
    %v688 = vsel %vm667, %v687, %v626
    %v689 = vrot.slane %v628, 6
    %v690 = vsel %vm670, %v689, %v688
    %v691 = vrot.slane %v629, 5
    %v692 = vsel %vm673, %v691, %v690
    %v693 = vrot.slane %v630, 4
    %v694 = vsel %vm676, %v693, %v692
    %v695 = vrot.slane %v631, 3
    %v696 = vsel %vm679, %v695, %v694
    %v697 = vrot.slane %v632, 2
    %v698 = vsel %vm682, %v697, %v696
    %v699 = vrot.slane %v633, 1
    %v700 = vsel %vm685, %v699, %v698
    %v701 = vrot.slane %v635, 7
    %v702 = vsel %vm667, %v701, %v634
    %v703 = vrot.slane %v636, 6
    %v704 = vsel %vm670, %v703, %v702
    %v705 = vrot.slane %v637, 5
    %v706 = vsel %vm673, %v705, %v704
    %v707 = vrot.slane %v638, 4
    %v708 = vsel %vm676, %v707, %v706
    %v709 = vrot.slane %v639, 3
    %v710 = vsel %vm679, %v709, %v708
    %v711 = vrot.slane %v640, 2
    %v712 = vsel %vm682, %v711, %v710
    %v713 = vrot.slane %v641, 1
    %v714 = vsel %vm685, %v713, %v712
    %vm718 = vcmask 261120
    %v719 = vsel %vm718, %v686, 0.0
    %720 = vadd.xlane.f32.xlu0 %v719
    %v721 = vpop.xlane.xlu0 %720
    %v722 = vsel %vm718, %v700, 0.0
    %723 = vadd.xlane.f32.xlu0 %v722
    %v724 = vpop.xlane.xlu0 %723
    %v725 = vsel %vm718, %v714, 0.0
    %726 = vadd.xlane.f32.xlu0 %v725
    %v727 = vpop.xlane.xlu0 %726
    %v728 = vmul.f32 %v570, %v570
    %v729 = vmul.f32 %v571, %v571
    %v730 = vmul.f32 %v572, %v572
    %v731 = vmul.f32 %v573, %v573
    %v732 = vmul.f32 %v574, %v574
    %v733 = vmul.f32 %v575, %v575
    %v734 = vmul.f32 %v576, %v576
    %v735 = vmul.f32 %v577, %v577
    %v736 = vmul.f32 %v578, %v578
    %v737 = vmul.f32 %v579, %v579
    %v738 = vmul.f32 %v580, %v580
    %v739 = vmul.f32 %v581, %v581
    %v740 = vmul.f32 %v582, %v582
    %v741 = vmul.f32 %v583, %v583
    %v742 = vmul.f32 %v584, %v584
    %v743 = vmul.f32 %v585, %v585
    %v744 = vmul.f32 %v586, %v586
    %v745 = vmul.f32 %v587, %v587
    %v746 = vmul.f32 %v588, %v588
    %v747 = vmul.f32 %v589, %v589
    %v748 = vmul.f32 %v590, %v590
    %v749 = vmul.f32 %v591, %v591
    %v750 = vmul.f32 %v592, %v592
    %v751 = vmul.f32 %v593, %v593
    %v776 = vrot.slane %v729, 7
    %v777 = vsel %vm667, %v776, %v728
    %v778 = vrot.slane %v730, 6
    %v779 = vsel %vm670, %v778, %v777
    %v780 = vrot.slane %v731, 5
    %v781 = vsel %vm673, %v780, %v779
    %v782 = vrot.slane %v732, 4
    %v783 = vsel %vm676, %v782, %v781
    %v784 = vrot.slane %v733, 3
    %v785 = vsel %vm679, %v784, %v783
    %v786 = vrot.slane %v734, 2
    %v787 = vsel %vm682, %v786, %v785
    %v788 = vrot.slane %v735, 1
    %v789 = vsel %vm685, %v788, %v787
    %v790 = vrot.slane %v737, 7
    %v791 = vsel %vm667, %v790, %v736
    %v792 = vrot.slane %v738, 6
    %v793 = vsel %vm670, %v792, %v791
    %v794 = vrot.slane %v739, 5
    %v795 = vsel %vm673, %v794, %v793
    %v796 = vrot.slane %v740, 4
    %v797 = vsel %vm676, %v796, %v795
    %v798 = vrot.slane %v741, 3
    %v799 = vsel %vm679, %v798, %v797
    %v800 = vrot.slane %v742, 2
    %v801 = vsel %vm682, %v800, %v799
    %v802 = vrot.slane %v743, 1
    %v803 = vsel %vm685, %v802, %v801
    %v804 = vrot.slane %v745, 7
    %v805 = vsel %vm667, %v804, %v744
    %v806 = vrot.slane %v746, 6
    %v807 = vsel %vm670, %v806, %v805
    %v808 = vrot.slane %v747, 5
    %v809 = vsel %vm673, %v808, %v807
    %v810 = vrot.slane %v748, 4
    %v811 = vsel %vm676, %v810, %v809
    %v812 = vrot.slane %v749, 3
    %v813 = vsel %vm679, %v812, %v811
    %v814 = vrot.slane %v750, 2
    %v815 = vsel %vm682, %v814, %v813
    %v816 = vrot.slane %v751, 1
    %v817 = vsel %vm685, %v816, %v815
    %v821 = vsel %vm718, %v789, 0.0
    %822 = vadd.xlane.f32.xlu0 %v821
    %v823 = vpop.xlane.xlu0 %822
    %v824 = vsel %vm718, %v803, 0.0
    %825 = vadd.xlane.f32.xlu0 %v824
    %v826 = vpop.xlane.xlu0 %825
    %v827 = vsel %vm718, %v817, 0.0
    %828 = vadd.xlane.f32.xlu0 %v827
    %v829 = vpop.xlane.xlu0 %828
    %v830 = vmul.f32 %v594, %v594
    %v831 = vmul.f32 %v595, %v595
    %v832 = vmul.f32 %v596, %v596
    %v833 = vmul.f32 %v597, %v597
    %v834 = vmul.f32 %v598, %v598
    %v835 = vmul.f32 %v599, %v599
    %v836 = vmul.f32 %v600, %v600
    %v837 = vmul.f32 %v601, %v601
    %v838 = vmul.f32 %v602, %v602
    %v839 = vmul.f32 %v603, %v603
    %v840 = vmul.f32 %v604, %v604
    %v841 = vmul.f32 %v605, %v605
    %v842 = vmul.f32 %v606, %v606
    %v843 = vmul.f32 %v607, %v607
    %v844 = vmul.f32 %v608, %v608
    %v845 = vmul.f32 %v609, %v609
    %v846 = vmul.f32 %v610, %v610
    %v847 = vmul.f32 %v611, %v611
    %v848 = vmul.f32 %v612, %v612
    %v849 = vmul.f32 %v613, %v613
    %v850 = vmul.f32 %v614, %v614
    %v851 = vmul.f32 %v615, %v615
    %v852 = vmul.f32 %v616, %v616
    %v853 = vmul.f32 %v617, %v617
    %v878 = vrot.slane %v831, 7
    %v879 = vsel %vm667, %v878, %v830
    %v880 = vrot.slane %v832, 6
    %v881 = vsel %vm670, %v880, %v879
    %v882 = vrot.slane %v833, 5
    %v883 = vsel %vm673, %v882, %v881
    %v884 = vrot.slane %v834, 4
    %v885 = vsel %vm676, %v884, %v883
    %v886 = vrot.slane %v835, 3
    %v887 = vsel %vm679, %v886, %v885
    %v888 = vrot.slane %v836, 2
    %v889 = vsel %vm682, %v888, %v887
    %v890 = vrot.slane %v837, 1
    %v891 = vsel %vm685, %v890, %v889
    %v892 = vrot.slane %v839, 7
    %v893 = vsel %vm667, %v892, %v838
    %v894 = vrot.slane %v840, 6
    %v895 = vsel %vm670, %v894, %v893
    %v896 = vrot.slane %v841, 5
    %v897 = vsel %vm673, %v896, %v895
    %v898 = vrot.slane %v842, 4
    %v899 = vsel %vm676, %v898, %v897
    %v900 = vrot.slane %v843, 3
    %v901 = vsel %vm679, %v900, %v899
    %v902 = vrot.slane %v844, 2
    %v903 = vsel %vm682, %v902, %v901
    %v904 = vrot.slane %v845, 1
    %v905 = vsel %vm685, %v904, %v903
    %v906 = vrot.slane %v847, 7
    %v907 = vsel %vm667, %v906, %v846
    %v908 = vrot.slane %v848, 6
    %v909 = vsel %vm670, %v908, %v907
    %v910 = vrot.slane %v849, 5
    %v911 = vsel %vm673, %v910, %v909
    %v912 = vrot.slane %v850, 4
    %v913 = vsel %vm676, %v912, %v911
    %v914 = vrot.slane %v851, 3
    %v915 = vsel %vm679, %v914, %v913
    %v916 = vrot.slane %v852, 2
    %v917 = vsel %vm682, %v916, %v915
    %v918 = vrot.slane %v853, 1
    %v919 = vsel %vm685, %v918, %v917
    %v923 = vsel %vm718, %v891, 0.0
    %924 = vadd.xlane.f32.xlu0 %v923
    %v925 = vpop.xlane.xlu0 %924
    %v926 = vsel %vm718, %v905, 0.0
    %927 = vadd.xlane.f32.xlu0 %v926
    %v928 = vpop.xlane.xlu0 %927
    %v929 = vsel %vm718, %v919, 0.0
    %930 = vadd.xlane.f32.xlu0 %v929
    %v931 = vpop.xlane.xlu0 %930
    %v932 = vmul.f32 %v823, %v925
    %v933 = vmul.f32 %v826, %v928
    %v934 = vmul.f32 %v829, %v931
    %v935 = vmax.f32 %v932, 1e-16
    %v936 = vmax.f32 %v933, 1e-16
    %v937 = vmax.f32 %v934, 1e-16
    %v938 = vrsqrt.pop %v935
    %v939 = vrsqrt.pop %v936
    %v940 = vrsqrt.pop %v937
    %v941 = vmul.f32 %v721, %v938
    %v942 = vmul.f32 %v724, %v939
    %v943 = vmul.f32 %v727, %v940
    %s944 = sld [smem:[#allocation3 + $0x4]]
    %v945 = vstv %s944
    %v946 = vmul.f32 %v33, %v945
    %v947 = vmul.f32 %v34, %v945
    %v948 = vmul.f32 %v35, %v945
    %v949 = vmul.f32 %v36, %v945
    %v950 = vmul.f32 %v37, %v945
    %v951 = vmul.f32 %v38, %v945
    %v952 = vmul.f32 %v39, %v945
    %v953 = vmul.f32 %v40, %v945
    %v954 = vmul.f32 %v41, %v945
    %v955 = vmul.f32 %v42, %v945
    %v956 = vmul.f32 %v43, %v945
    %v957 = vmul.f32 %v44, %v945
    %v958 = vmul.f32 %v45, %v945
    %v959 = vmul.f32 %v46, %v945
    %v960 = vmul.f32 %v47, %v945
    %v961 = vmul.f32 %v48, %v945
    %v962 = vmul.f32 %v49, %v945
    %v963 = vmul.f32 %v50, %v945
    %v964 = vmul.f32 %v51, %v945
    %v965 = vmul.f32 %v52, %v945
    %v966 = vmul.f32 %v53, %v945
    %v967 = vmul.f32 %v54, %v945
    %v968 = vmul.f32 %v55, %v945
    %v969 = vmul.f32 %v56, %v945
    %v970 = vmul.f32 %v82, %v945
    %v971 = vmul.f32 %v83, %v945
    %v972 = vmul.f32 %v84, %v945
    %v973 = vmul.f32 %v85, %v945
    %v974 = vmul.f32 %v86, %v945
    %v975 = vmul.f32 %v87, %v945
    %v976 = vmul.f32 %v88, %v945
    %v977 = vmul.f32 %v89, %v945
    %v978 = vmul.f32 %v90, %v945
    %v979 = vmul.f32 %v91, %v945
    %v980 = vmul.f32 %v92, %v945
    %v981 = vmul.f32 %v93, %v945
    %v982 = vmul.f32 %v94, %v945
    %v983 = vmul.f32 %v95, %v945
    %v984 = vmul.f32 %v96, %v945
    %v985 = vmul.f32 %v97, %v945
    %v986 = vmul.f32 %v98, %v945
    %v987 = vmul.f32 %v99, %v945
    %v988 = vmul.f32 %v100, %v945
    %v989 = vmul.f32 %v101, %v945
    %v990 = vmul.f32 %v102, %v945
    %v991 = vmul.f32 %v103, %v945
    %v992 = vmul.f32 %v104, %v945
    %v993 = vmul.f32 %v105, %v945
    %s994 = sld [smem:[#allocation3 + $0x5]]
    %v995 = vstv %s994
    %v996 = vmul.f32 %v131, %v995
    %v997 = vmul.f32 %v132, %v995
    %v998 = vmul.f32 %v133, %v995
    %v999 = vmul.f32 %v134, %v995
    %v1000 = vmul.f32 %v135, %v995
    %v1001 = vmul.f32 %v136, %v995
    %v1002 = vmul.f32 %v137, %v995
    %v1003 = vmul.f32 %v138, %v995
    %v1004 = vmul.f32 %v139, %v995
    %v1005 = vmul.f32 %v140, %v995
    %v1006 = vmul.f32 %v141, %v995
    %v1007 = vmul.f32 %v142, %v995
    %v1008 = vmul.f32 %v143, %v995
    %v1009 = vmul.f32 %v144, %v995
    %v1010 = vmul.f32 %v145, %v995
    %v1011 = vmul.f32 %v146, %v995
    %v1012 = vmul.f32 %v147, %v995
    %v1013 = vmul.f32 %v148, %v995
    %v1014 = vmul.f32 %v149, %v995
    %v1015 = vmul.f32 %v150, %v995
    %v1016 = vmul.f32 %v151, %v995
    %v1017 = vmul.f32 %v152, %v995
    %v1018 = vmul.f32 %v153, %v995
    %v1019 = vmul.f32 %v154, %v995
    %v1020 = vadd.f32 %v946, %v996
    %v1021 = vadd.f32 %v947, %v997
    %v1022 = vadd.f32 %v948, %v998
    %v1023 = vadd.f32 %v949, %v999
    %v1024 = vadd.f32 %v950, %v1000
    %v1025 = vadd.f32 %v951, %v1001
    %v1026 = vadd.f32 %v952, %v1002
    %v1027 = vadd.f32 %v953, %v1003
    %v1028 = vadd.f32 %v954, %v1004
    %v1029 = vadd.f32 %v955, %v1005
    %v1030 = vadd.f32 %v956, %v1006
    %v1031 = vadd.f32 %v957, %v1007
    %v1032 = vadd.f32 %v958, %v1008
    %v1033 = vadd.f32 %v959, %v1009
    %v1034 = vadd.f32 %v960, %v1010
    %v1035 = vadd.f32 %v961, %v1011
    %v1036 = vadd.f32 %v962, %v1012
    %v1037 = vadd.f32 %v963, %v1013
    %v1038 = vadd.f32 %v964, %v1014
    %v1039 = vadd.f32 %v965, %v1015
    %v1040 = vadd.f32 %v966, %v1016
    %v1041 = vadd.f32 %v967, %v1017
    %v1042 = vadd.f32 %v968, %v1018
    %v1043 = vadd.f32 %v969, %v1019
    %v1044 = vmul.f32 %v204, %v995
    %v1045 = vmul.f32 %v205, %v995
    %v1046 = vmul.f32 %v206, %v995
    %v1047 = vmul.f32 %v207, %v995
    %v1048 = vmul.f32 %v208, %v995
    %v1049 = vmul.f32 %v209, %v995
    %v1050 = vmul.f32 %v210, %v995
    %v1051 = vmul.f32 %v211, %v995
    %v1052 = vmul.f32 %v212, %v995
    %v1053 = vmul.f32 %v213, %v995
    %v1054 = vmul.f32 %v214, %v995
    %v1055 = vmul.f32 %v215, %v995
    %v1056 = vmul.f32 %v216, %v995
    %v1057 = vmul.f32 %v217, %v995
    %v1058 = vmul.f32 %v218, %v995
    %v1059 = vmul.f32 %v219, %v995
    %v1060 = vmul.f32 %v220, %v995
    %v1061 = vmul.f32 %v221, %v995
    %v1062 = vmul.f32 %v222, %v995
    %v1063 = vmul.f32 %v223, %v995
    %v1064 = vmul.f32 %v224, %v995
    %v1065 = vmul.f32 %v225, %v995
    %v1066 = vmul.f32 %v226, %v995
    %v1067 = vmul.f32 %v227, %v995
    %v1068 = vadd.f32 %v970, %v1044
    %v1069 = vadd.f32 %v971, %v1045
    %v1070 = vadd.f32 %v972, %v1046
    %v1071 = vadd.f32 %v973, %v1047
    %v1072 = vadd.f32 %v974, %v1048
    %v1073 = vadd.f32 %v975, %v1049
    %v1074 = vadd.f32 %v976, %v1050
    %v1075 = vadd.f32 %v977, %v1051
    %v1076 = vadd.f32 %v978, %v1052
    %v1077 = vadd.f32 %v979, %v1053
    %v1078 = vadd.f32 %v980, %v1054
    %v1079 = vadd.f32 %v981, %v1055
    %v1080 = vadd.f32 %v982, %v1056
    %v1081 = vadd.f32 %v983, %v1057
    %v1082 = vadd.f32 %v984, %v1058
    %v1083 = vadd.f32 %v985, %v1059
    %v1084 = vadd.f32 %v986, %v1060
    %v1085 = vadd.f32 %v987, %v1061
    %v1086 = vadd.f32 %v988, %v1062
    %v1087 = vadd.f32 %v989, %v1063
    %v1088 = vadd.f32 %v990, %v1064
    %v1089 = vadd.f32 %v991, %v1065
    %v1090 = vadd.f32 %v992, %v1066
    %v1091 = vadd.f32 %v993, %v1067
    %s1092 = sld [smem:[#allocation3 + $0x6]]
    %v1093 = vstv %s1092
    %v1094 = vmul.f32 %v277, %v1093
    %v1095 = vmul.f32 %v278, %v1093
    %v1096 = vmul.f32 %v279, %v1093
    %v1097 = vmul.f32 %v280, %v1093
    %v1098 = vmul.f32 %v281, %v1093
    %v1099 = vmul.f32 %v282, %v1093
    %v1100 = vmul.f32 %v283, %v1093
    %v1101 = vmul.f32 %v284, %v1093
    %v1102 = vmul.f32 %v285, %v1093
    %v1103 = vmul.f32 %v286, %v1093
    %v1104 = vmul.f32 %v287, %v1093
    %v1105 = vmul.f32 %v288, %v1093
    %v1106 = vmul.f32 %v289, %v1093
    %v1107 = vmul.f32 %v290, %v1093
    %v1108 = vmul.f32 %v291, %v1093
    %v1109 = vmul.f32 %v292, %v1093
    %v1110 = vmul.f32 %v293, %v1093
    %v1111 = vmul.f32 %v294, %v1093
    %v1112 = vmul.f32 %v295, %v1093
    %v1113 = vmul.f32 %v296, %v1093
    %v1114 = vmul.f32 %v297, %v1093
    %v1115 = vmul.f32 %v298, %v1093
    %v1116 = vmul.f32 %v299, %v1093
    %v1117 = vmul.f32 %v300, %v1093
    %v1118 = vadd.f32 %v1020, %v1094
    %v1119 = vadd.f32 %v1021, %v1095
    %v1120 = vadd.f32 %v1022, %v1096
    %v1121 = vadd.f32 %v1023, %v1097
    %v1122 = vadd.f32 %v1024, %v1098
    %v1123 = vadd.f32 %v1025, %v1099
    %v1124 = vadd.f32 %v1026, %v1100
    %v1125 = vadd.f32 %v1027, %v1101
    %v1126 = vadd.f32 %v1028, %v1102
    %v1127 = vadd.f32 %v1029, %v1103
    %v1128 = vadd.f32 %v1030, %v1104
    %v1129 = vadd.f32 %v1031, %v1105
    %v1130 = vadd.f32 %v1032, %v1106
    %v1131 = vadd.f32 %v1033, %v1107
    %v1132 = vadd.f32 %v1034, %v1108
    %v1133 = vadd.f32 %v1035, %v1109
    %v1134 = vadd.f32 %v1036, %v1110
    %v1135 = vadd.f32 %v1037, %v1111
    %v1136 = vadd.f32 %v1038, %v1112
    %v1137 = vadd.f32 %v1039, %v1113
    %v1138 = vadd.f32 %v1040, %v1114
    %v1139 = vadd.f32 %v1041, %v1115
    %v1140 = vadd.f32 %v1042, %v1116
    %v1141 = vadd.f32 %v1043, %v1117
    %v1142 = vmul.f32 %v350, %v1093
    %v1143 = vmul.f32 %v351, %v1093
    %v1144 = vmul.f32 %v352, %v1093
    %v1145 = vmul.f32 %v353, %v1093
    %v1146 = vmul.f32 %v354, %v1093
    %v1147 = vmul.f32 %v355, %v1093
    %v1148 = vmul.f32 %v356, %v1093
    %v1149 = vmul.f32 %v357, %v1093
    %v1150 = vmul.f32 %v358, %v1093
    %v1151 = vmul.f32 %v359, %v1093
    %v1152 = vmul.f32 %v360, %v1093
    %v1153 = vmul.f32 %v361, %v1093
    %v1154 = vmul.f32 %v362, %v1093
    %v1155 = vmul.f32 %v363, %v1093
    %v1156 = vmul.f32 %v364, %v1093
    %v1157 = vmul.f32 %v365, %v1093
    %v1158 = vmul.f32 %v366, %v1093
    %v1159 = vmul.f32 %v367, %v1093
    %v1160 = vmul.f32 %v368, %v1093
    %v1161 = vmul.f32 %v369, %v1093
    %v1162 = vmul.f32 %v370, %v1093
    %v1163 = vmul.f32 %v371, %v1093
    %v1164 = vmul.f32 %v372, %v1093
    %v1165 = vmul.f32 %v373, %v1093
    %v1166 = vadd.f32 %v1068, %v1142
    %v1167 = vadd.f32 %v1069, %v1143
    %v1168 = vadd.f32 %v1070, %v1144
    %v1169 = vadd.f32 %v1071, %v1145
    %v1170 = vadd.f32 %v1072, %v1146
    %v1171 = vadd.f32 %v1073, %v1147
    %v1172 = vadd.f32 %v1074, %v1148
    %v1173 = vadd.f32 %v1075, %v1149
    %v1174 = vadd.f32 %v1076, %v1150
    %v1175 = vadd.f32 %v1077, %v1151
    %v1176 = vadd.f32 %v1078, %v1152
    %v1177 = vadd.f32 %v1079, %v1153
    %v1178 = vadd.f32 %v1080, %v1154
    %v1179 = vadd.f32 %v1081, %v1155
    %v1180 = vadd.f32 %v1082, %v1156
    %v1181 = vadd.f32 %v1083, %v1157
    %v1182 = vadd.f32 %v1084, %v1158
    %v1183 = vadd.f32 %v1085, %v1159
    %v1184 = vadd.f32 %v1086, %v1160
    %v1185 = vadd.f32 %v1087, %v1161
    %v1186 = vadd.f32 %v1088, %v1162
    %v1187 = vadd.f32 %v1089, %v1163
    %v1188 = vadd.f32 %v1090, %v1164
    %v1189 = vadd.f32 %v1091, %v1165
    %s1190 = sld [smem:[#allocation3 + $0x7]]
    %v1191 = vstv %s1190
    %v1192 = vmul.f32 %v423, %v1191
    %v1193 = vmul.f32 %v424, %v1191
    %v1194 = vmul.f32 %v425, %v1191
    %v1195 = vmul.f32 %v426, %v1191
    %v1196 = vmul.f32 %v427, %v1191
    %v1197 = vmul.f32 %v428, %v1191
    %v1198 = vmul.f32 %v429, %v1191
    %v1199 = vmul.f32 %v430, %v1191
    %v1200 = vmul.f32 %v431, %v1191
    %v1201 = vmul.f32 %v432, %v1191
    %v1202 = vmul.f32 %v433, %v1191
    %v1203 = vmul.f32 %v434, %v1191
    %v1204 = vmul.f32 %v435, %v1191
    %v1205 = vmul.f32 %v436, %v1191
    %v1206 = vmul.f32 %v437, %v1191
    %v1207 = vmul.f32 %v438, %v1191
    %v1208 = vmul.f32 %v439, %v1191
    %v1209 = vmul.f32 %v440, %v1191
    %v1210 = vmul.f32 %v441, %v1191
    %v1211 = vmul.f32 %v442, %v1191
    %v1212 = vmul.f32 %v443, %v1191
    %v1213 = vmul.f32 %v444, %v1191
    %v1214 = vmul.f32 %v445, %v1191
    %v1215 = vmul.f32 %v446, %v1191
    %v1216 = vadd.f32 %v1118, %v1192
    %v1217 = vadd.f32 %v1119, %v1193
    %v1218 = vadd.f32 %v1120, %v1194
    %v1219 = vadd.f32 %v1121, %v1195
    %v1220 = vadd.f32 %v1122, %v1196
    %v1221 = vadd.f32 %v1123, %v1197
    %v1222 = vadd.f32 %v1124, %v1198
    %v1223 = vadd.f32 %v1125, %v1199
    %v1224 = vadd.f32 %v1126, %v1200
    %v1225 = vadd.f32 %v1127, %v1201
    %v1226 = vadd.f32 %v1128, %v1202
    %v1227 = vadd.f32 %v1129, %v1203
    %v1228 = vadd.f32 %v1130, %v1204
    %v1229 = vadd.f32 %v1131, %v1205
    %v1230 = vadd.f32 %v1132, %v1206
    %v1231 = vadd.f32 %v1133, %v1207
    %v1232 = vadd.f32 %v1134, %v1208
    %v1233 = vadd.f32 %v1135, %v1209
    %v1234 = vadd.f32 %v1136, %v1210
    %v1235 = vadd.f32 %v1137, %v1211
    %v1236 = vadd.f32 %v1138, %v1212
    %v1237 = vadd.f32 %v1139, %v1213
    %v1238 = vadd.f32 %v1140, %v1214
    %v1239 = vadd.f32 %v1141, %v1215
    %v1240 = vmul.f32 %v496, %v1191
    %v1241 = vmul.f32 %v497, %v1191
    %v1242 = vmul.f32 %v498, %v1191
    %v1243 = vmul.f32 %v499, %v1191
    %v1244 = vmul.f32 %v500, %v1191
    %v1245 = vmul.f32 %v501, %v1191
    %v1246 = vmul.f32 %v502, %v1191
    %v1247 = vmul.f32 %v503, %v1191
    %v1248 = vmul.f32 %v504, %v1191
    %v1249 = vmul.f32 %v505, %v1191
    %v1250 = vmul.f32 %v506, %v1191
    %v1251 = vmul.f32 %v507, %v1191
    %v1252 = vmul.f32 %v508, %v1191
    %v1253 = vmul.f32 %v509, %v1191
    %v1254 = vmul.f32 %v510, %v1191
    %v1255 = vmul.f32 %v511, %v1191
    %v1256 = vmul.f32 %v512, %v1191
    %v1257 = vmul.f32 %v513, %v1191
    %v1258 = vmul.f32 %v514, %v1191
    %v1259 = vmul.f32 %v515, %v1191
    %v1260 = vmul.f32 %v516, %v1191
    %v1261 = vmul.f32 %v517, %v1191
    %v1262 = vmul.f32 %v518, %v1191
    %v1263 = vmul.f32 %v519, %v1191
    %v1264 = vadd.f32 %v1166, %v1240
    %v1265 = vadd.f32 %v1167, %v1241
    %v1266 = vadd.f32 %v1168, %v1242
    %v1267 = vadd.f32 %v1169, %v1243
    %v1268 = vadd.f32 %v1170, %v1244
    %v1269 = vadd.f32 %v1171, %v1245
    %v1270 = vadd.f32 %v1172, %v1246
    %v1271 = vadd.f32 %v1173, %v1247
    %v1272 = vadd.f32 %v1174, %v1248
    %v1273 = vadd.f32 %v1175, %v1249
    %v1274 = vadd.f32 %v1176, %v1250
    %v1275 = vadd.f32 %v1177, %v1251
    %v1276 = vadd.f32 %v1178, %v1252
    %v1277 = vadd.f32 %v1179, %v1253
    %v1278 = vadd.f32 %v1180, %v1254
    %v1279 = vadd.f32 %v1181, %v1255
    %v1280 = vadd.f32 %v1182, %v1256
    %v1281 = vadd.f32 %v1183, %v1257
    %v1282 = vadd.f32 %v1184, %v1258
    %v1283 = vadd.f32 %v1185, %v1259
    %v1284 = vadd.f32 %v1186, %v1260
    %v1285 = vadd.f32 %v1187, %v1261
    %v1286 = vadd.f32 %v1188, %v1262
    %v1287 = vadd.f32 %v1189, %v1263
    %s1288 = sld [smem:[#allocation4 + $0x1]]
    %v1289 = vstv %s1288
    %v1290 = vadd.f32 %v1216, %v1289
    %v1291 = vadd.f32 %v1217, %v1289
    %v1292 = vadd.f32 %v1218, %v1289
    %v1293 = vadd.f32 %v1219, %v1289
    %v1294 = vadd.f32 %v1220, %v1289
    %v1295 = vadd.f32 %v1221, %v1289
    %v1296 = vadd.f32 %v1222, %v1289
    %v1297 = vadd.f32 %v1223, %v1289
    %v1298 = vadd.f32 %v1224, %v1289
    %v1299 = vadd.f32 %v1225, %v1289
    %v1300 = vadd.f32 %v1226, %v1289
    %v1301 = vadd.f32 %v1227, %v1289
    %v1302 = vadd.f32 %v1228, %v1289
    %v1303 = vadd.f32 %v1229, %v1289
    %v1304 = vadd.f32 %v1230, %v1289
    %v1305 = vadd.f32 %v1231, %v1289
    %v1306 = vadd.f32 %v1232, %v1289
    %v1307 = vadd.f32 %v1233, %v1289
    %v1308 = vadd.f32 %v1234, %v1289
    %v1309 = vadd.f32 %v1235, %v1289
    %v1310 = vadd.f32 %v1236, %v1289
    %v1311 = vadd.f32 %v1237, %v1289
    %v1312 = vadd.f32 %v1238, %v1289
    %v1313 = vadd.f32 %v1239, %v1289
    %v1314 = vadd.f32 %v1264, %v1289
    %v1315 = vadd.f32 %v1265, %v1289
    %v1316 = vadd.f32 %v1266, %v1289
    %v1317 = vadd.f32 %v1267, %v1289
    %v1318 = vadd.f32 %v1268, %v1289
    %v1319 = vadd.f32 %v1269, %v1289
    %v1320 = vadd.f32 %v1270, %v1289
    %v1321 = vadd.f32 %v1271, %v1289
    %v1322 = vadd.f32 %v1272, %v1289
    %v1323 = vadd.f32 %v1273, %v1289
    %v1324 = vadd.f32 %v1274, %v1289
    %v1325 = vadd.f32 %v1275, %v1289
    %v1326 = vadd.f32 %v1276, %v1289
    %v1327 = vadd.f32 %v1277, %v1289
    %v1328 = vadd.f32 %v1278, %v1289
    %v1329 = vadd.f32 %v1279, %v1289
    %v1330 = vadd.f32 %v1280, %v1289
    %v1331 = vadd.f32 %v1281, %v1289
    %v1332 = vadd.f32 %v1282, %v1289
    %v1333 = vadd.f32 %v1283, %v1289
    %v1334 = vadd.f32 %v1284, %v1289
    %v1335 = vadd.f32 %v1285, %v1289
    %v1336 = vadd.f32 %v1286, %v1289
    %v1337 = vadd.f32 %v1287, %v1289
    %v1338 = vmul.f32 %v1290, %v1314
    %v1339 = vmul.f32 %v1291, %v1315
    %v1340 = vmul.f32 %v1292, %v1316
    %v1341 = vmul.f32 %v1293, %v1317
    %v1342 = vmul.f32 %v1294, %v1318
    %v1343 = vmul.f32 %v1295, %v1319
    %v1344 = vmul.f32 %v1296, %v1320
    %v1345 = vmul.f32 %v1297, %v1321
    %v1346 = vmul.f32 %v1298, %v1322
    %v1347 = vmul.f32 %v1299, %v1323
    %v1348 = vmul.f32 %v1300, %v1324
    %v1349 = vmul.f32 %v1301, %v1325
    %v1350 = vmul.f32 %v1302, %v1326
    %v1351 = vmul.f32 %v1303, %v1327
    %v1352 = vmul.f32 %v1304, %v1328
    %v1353 = vmul.f32 %v1305, %v1329
    %v1354 = vmul.f32 %v1306, %v1330
    %v1355 = vmul.f32 %v1307, %v1331
    %v1356 = vmul.f32 %v1308, %v1332
    %v1357 = vmul.f32 %v1309, %v1333
    %v1358 = vmul.f32 %v1310, %v1334
    %v1359 = vmul.f32 %v1311, %v1335
    %v1360 = vmul.f32 %v1312, %v1336
    %v1361 = vmul.f32 %v1313, %v1337
    %v1386 = vrot.slane %v1339, 7
    %v1387 = vsel %vm667, %v1386, %v1338
    %v1388 = vrot.slane %v1340, 6
    %v1389 = vsel %vm670, %v1388, %v1387
    %v1390 = vrot.slane %v1341, 5
    %v1391 = vsel %vm673, %v1390, %v1389
    %v1392 = vrot.slane %v1342, 4
    %v1393 = vsel %vm676, %v1392, %v1391
    %v1394 = vrot.slane %v1343, 3
    %v1395 = vsel %vm679, %v1394, %v1393
    %v1396 = vrot.slane %v1344, 2
    %v1397 = vsel %vm682, %v1396, %v1395
    %v1398 = vrot.slane %v1345, 1
    %v1399 = vsel %vm685, %v1398, %v1397
    %v1400 = vrot.slane %v1347, 7
    %v1401 = vsel %vm667, %v1400, %v1346
    %v1402 = vrot.slane %v1348, 6
    %v1403 = vsel %vm670, %v1402, %v1401
    %v1404 = vrot.slane %v1349, 5
    %v1405 = vsel %vm673, %v1404, %v1403
    %v1406 = vrot.slane %v1350, 4
    %v1407 = vsel %vm676, %v1406, %v1405
    %v1408 = vrot.slane %v1351, 3
    %v1409 = vsel %vm679, %v1408, %v1407
    %v1410 = vrot.slane %v1352, 2
    %v1411 = vsel %vm682, %v1410, %v1409
    %v1412 = vrot.slane %v1353, 1
    %v1413 = vsel %vm685, %v1412, %v1411
    %v1414 = vrot.slane %v1355, 7
    %v1415 = vsel %vm667, %v1414, %v1354
    %v1416 = vrot.slane %v1356, 6
    %v1417 = vsel %vm670, %v1416, %v1415
    %v1418 = vrot.slane %v1357, 5
    %v1419 = vsel %vm673, %v1418, %v1417
    %v1420 = vrot.slane %v1358, 4
    %v1421 = vsel %vm676, %v1420, %v1419
    %v1422 = vrot.slane %v1359, 3
    %v1423 = vsel %vm679, %v1422, %v1421
    %v1424 = vrot.slane %v1360, 2
    %v1425 = vsel %vm682, %v1424, %v1423
    %v1426 = vrot.slane %v1361, 1
    %v1427 = vsel %vm685, %v1426, %v1425
    %v1431 = vsel %vm718, %v1399, 0.0
    %1432 = vadd.xlane.f32.xlu0 %v1431
    %v1433 = vpop.xlane.xlu0 %1432
    %v1434 = vsel %vm718, %v1413, 0.0
    %1435 = vadd.xlane.f32.xlu0 %v1434
    %v1436 = vpop.xlane.xlu0 %1435
    %v1437 = vsel %vm718, %v1427, 0.0
    %1438 = vadd.xlane.f32.xlu0 %v1437
    %v1439 = vpop.xlane.xlu0 %1438
    %v1440 = vmul.f32 %v1290, %v1290
    %v1441 = vmul.f32 %v1291, %v1291
    %v1442 = vmul.f32 %v1292, %v1292
    %v1443 = vmul.f32 %v1293, %v1293
    %v1444 = vmul.f32 %v1294, %v1294
    %v1445 = vmul.f32 %v1295, %v1295
    %v1446 = vmul.f32 %v1296, %v1296
    %v1447 = vmul.f32 %v1297, %v1297
    %v1448 = vmul.f32 %v1298, %v1298
    %v1449 = vmul.f32 %v1299, %v1299
    %v1450 = vmul.f32 %v1300, %v1300
    %v1451 = vmul.f32 %v1301, %v1301
    %v1452 = vmul.f32 %v1302, %v1302
    %v1453 = vmul.f32 %v1303, %v1303
    %v1454 = vmul.f32 %v1304, %v1304
    %v1455 = vmul.f32 %v1305, %v1305
    %v1456 = vmul.f32 %v1306, %v1306
    %v1457 = vmul.f32 %v1307, %v1307
    %v1458 = vmul.f32 %v1308, %v1308
    %v1459 = vmul.f32 %v1309, %v1309
    %v1460 = vmul.f32 %v1310, %v1310
    %v1461 = vmul.f32 %v1311, %v1311
    %v1462 = vmul.f32 %v1312, %v1312
    %v1463 = vmul.f32 %v1313, %v1313
    %v1488 = vrot.slane %v1441, 7
    %v1489 = vsel %vm667, %v1488, %v1440
    %v1490 = vrot.slane %v1442, 6
    %v1491 = vsel %vm670, %v1490, %v1489
    %v1492 = vrot.slane %v1443, 5
    %v1493 = vsel %vm673, %v1492, %v1491
    %v1494 = vrot.slane %v1444, 4
    %v1495 = vsel %vm676, %v1494, %v1493
    %v1496 = vrot.slane %v1445, 3
    %v1497 = vsel %vm679, %v1496, %v1495
    %v1498 = vrot.slane %v1446, 2
    %v1499 = vsel %vm682, %v1498, %v1497
    %v1500 = vrot.slane %v1447, 1
    %v1501 = vsel %vm685, %v1500, %v1499
    %v1502 = vrot.slane %v1449, 7
    %v1503 = vsel %vm667, %v1502, %v1448
    %v1504 = vrot.slane %v1450, 6
    %v1505 = vsel %vm670, %v1504, %v1503
    %v1506 = vrot.slane %v1451, 5
    %v1507 = vsel %vm673, %v1506, %v1505
    %v1508 = vrot.slane %v1452, 4
    %v1509 = vsel %vm676, %v1508, %v1507
    %v1510 = vrot.slane %v1453, 3
    %v1511 = vsel %vm679, %v1510, %v1509
    %v1512 = vrot.slane %v1454, 2
    %v1513 = vsel %vm682, %v1512, %v1511
    %v1514 = vrot.slane %v1455, 1
    %v1515 = vsel %vm685, %v1514, %v1513
    %v1516 = vrot.slane %v1457, 7
    %v1517 = vsel %vm667, %v1516, %v1456
    %v1518 = vrot.slane %v1458, 6
    %v1519 = vsel %vm670, %v1518, %v1517
    %v1520 = vrot.slane %v1459, 5
    %v1521 = vsel %vm673, %v1520, %v1519
    %v1522 = vrot.slane %v1460, 4
    %v1523 = vsel %vm676, %v1522, %v1521
    %v1524 = vrot.slane %v1461, 3
    %v1525 = vsel %vm679, %v1524, %v1523
    %v1526 = vrot.slane %v1462, 2
    %v1527 = vsel %vm682, %v1526, %v1525
    %v1528 = vrot.slane %v1463, 1
    %v1529 = vsel %vm685, %v1528, %v1527
    %v1533 = vsel %vm718, %v1501, 0.0
    %1534 = vadd.xlane.f32.xlu0 %v1533
    %v1535 = vpop.xlane.xlu0 %1534
    %v1536 = vsel %vm718, %v1515, 0.0
    %1537 = vadd.xlane.f32.xlu0 %v1536
    %v1538 = vpop.xlane.xlu0 %1537
    %v1539 = vsel %vm718, %v1529, 0.0
    %1540 = vadd.xlane.f32.xlu0 %v1539
    %v1541 = vpop.xlane.xlu0 %1540
    %v1542 = vmul.f32 %v1314, %v1314
    %v1543 = vmul.f32 %v1315, %v1315
    %v1544 = vmul.f32 %v1316, %v1316
    %v1545 = vmul.f32 %v1317, %v1317
    %v1546 = vmul.f32 %v1318, %v1318
    %v1547 = vmul.f32 %v1319, %v1319
    %v1548 = vmul.f32 %v1320, %v1320
    %v1549 = vmul.f32 %v1321, %v1321
    %v1550 = vmul.f32 %v1322, %v1322
    %v1551 = vmul.f32 %v1323, %v1323
    %v1552 = vmul.f32 %v1324, %v1324
    %v1553 = vmul.f32 %v1325, %v1325
    %v1554 = vmul.f32 %v1326, %v1326
    %v1555 = vmul.f32 %v1327, %v1327
    %v1556 = vmul.f32 %v1328, %v1328
    %v1557 = vmul.f32 %v1329, %v1329
    %v1558 = vmul.f32 %v1330, %v1330
    %v1559 = vmul.f32 %v1331, %v1331
    %v1560 = vmul.f32 %v1332, %v1332
    %v1561 = vmul.f32 %v1333, %v1333
    %v1562 = vmul.f32 %v1334, %v1334
    %v1563 = vmul.f32 %v1335, %v1335
    %v1564 = vmul.f32 %v1336, %v1336
    %v1565 = vmul.f32 %v1337, %v1337
    %v1590 = vrot.slane %v1543, 7
    %v1591 = vsel %vm667, %v1590, %v1542
    %v1592 = vrot.slane %v1544, 6
    %v1593 = vsel %vm670, %v1592, %v1591
    %v1594 = vrot.slane %v1545, 5
    %v1595 = vsel %vm673, %v1594, %v1593
    %v1596 = vrot.slane %v1546, 4
    %v1597 = vsel %vm676, %v1596, %v1595
    %v1598 = vrot.slane %v1547, 3
    %v1599 = vsel %vm679, %v1598, %v1597
    %v1600 = vrot.slane %v1548, 2
    %v1601 = vsel %vm682, %v1600, %v1599
    %v1602 = vrot.slane %v1549, 1
    %v1603 = vsel %vm685, %v1602, %v1601
    %v1604 = vrot.slane %v1551, 7
    %v1605 = vsel %vm667, %v1604, %v1550
    %v1606 = vrot.slane %v1552, 6
    %v1607 = vsel %vm670, %v1606, %v1605
    %v1608 = vrot.slane %v1553, 5
    %v1609 = vsel %vm673, %v1608, %v1607
    %v1610 = vrot.slane %v1554, 4
    %v1611 = vsel %vm676, %v1610, %v1609
    %v1612 = vrot.slane %v1555, 3
    %v1613 = vsel %vm679, %v1612, %v1611
    %v1614 = vrot.slane %v1556, 2
    %v1615 = vsel %vm682, %v1614, %v1613
    %v1616 = vrot.slane %v1557, 1
    %v1617 = vsel %vm685, %v1616, %v1615
    %v1618 = vrot.slane %v1559, 7
    %v1619 = vsel %vm667, %v1618, %v1558
    %v1620 = vrot.slane %v1560, 6
    %v1621 = vsel %vm670, %v1620, %v1619
    %v1622 = vrot.slane %v1561, 5
    %v1623 = vsel %vm673, %v1622, %v1621
    %v1624 = vrot.slane %v1562, 4
    %v1625 = vsel %vm676, %v1624, %v1623
    %v1626 = vrot.slane %v1563, 3
    %v1627 = vsel %vm679, %v1626, %v1625
    %v1628 = vrot.slane %v1564, 2
    %v1629 = vsel %vm682, %v1628, %v1627
    %v1630 = vrot.slane %v1565, 1
    %v1631 = vsel %vm685, %v1630, %v1629
    %v1635 = vsel %vm718, %v1603, 0.0
    %1636 = vadd.xlane.f32.xlu0 %v1635
    %v1637 = vpop.xlane.xlu0 %1636
    %v1638 = vsel %vm718, %v1617, 0.0
    %1639 = vadd.xlane.f32.xlu0 %v1638
    %v1640 = vpop.xlane.xlu0 %1639
    %v1641 = vsel %vm718, %v1631, 0.0
    %1642 = vadd.xlane.f32.xlu0 %v1641
    %v1643 = vpop.xlane.xlu0 %1642
    %v1644 = vmul.f32 %v1535, %v1637
    %v1645 = vmul.f32 %v1538, %v1640
    %v1646 = vmul.f32 %v1541, %v1643
    %v1647 = vmax.f32 %v1644, 1e-16
    %v1648 = vmax.f32 %v1645, 1e-16
    %v1649 = vmax.f32 %v1646, 1e-16
    %v1650 = vrsqrt.pop %v1647
    %v1651 = vrsqrt.pop %v1648
    %v1652 = vrsqrt.pop %v1649
    %v1653 = vmul.f32 %v1433, %v1650
    %v1654 = vmul.f32 %v1436, %v1651
    %v1655 = vmul.f32 %v1439, %v1652
    %s1656 = sld [smem:[#allocation3 + $0x8]]
    %v1657 = vstv %s1656
    %v1658 = vmul.f32 %v33, %v1657
    %v1659 = vmul.f32 %v34, %v1657
    %v1660 = vmul.f32 %v35, %v1657
    %v1661 = vmul.f32 %v36, %v1657
    %v1662 = vmul.f32 %v37, %v1657
    %v1663 = vmul.f32 %v38, %v1657
    %v1664 = vmul.f32 %v39, %v1657
    %v1665 = vmul.f32 %v40, %v1657
    %v1666 = vmul.f32 %v41, %v1657
    %v1667 = vmul.f32 %v42, %v1657
    %v1668 = vmul.f32 %v43, %v1657
    %v1669 = vmul.f32 %v44, %v1657
    %v1670 = vmul.f32 %v45, %v1657
    %v1671 = vmul.f32 %v46, %v1657
    %v1672 = vmul.f32 %v47, %v1657
    %v1673 = vmul.f32 %v48, %v1657
    %v1674 = vmul.f32 %v49, %v1657
    %v1675 = vmul.f32 %v50, %v1657
    %v1676 = vmul.f32 %v51, %v1657
    %v1677 = vmul.f32 %v52, %v1657
    %v1678 = vmul.f32 %v53, %v1657
    %v1679 = vmul.f32 %v54, %v1657
    %v1680 = vmul.f32 %v55, %v1657
    %v1681 = vmul.f32 %v56, %v1657
    %v1682 = vmul.f32 %v82, %v1657
    %v1683 = vmul.f32 %v83, %v1657
    %v1684 = vmul.f32 %v84, %v1657
    %v1685 = vmul.f32 %v85, %v1657
    %v1686 = vmul.f32 %v86, %v1657
    %v1687 = vmul.f32 %v87, %v1657
    %v1688 = vmul.f32 %v88, %v1657
    %v1689 = vmul.f32 %v89, %v1657
    %v1690 = vmul.f32 %v90, %v1657
    %v1691 = vmul.f32 %v91, %v1657
    %v1692 = vmul.f32 %v92, %v1657
    %v1693 = vmul.f32 %v93, %v1657
    %v1694 = vmul.f32 %v94, %v1657
    %v1695 = vmul.f32 %v95, %v1657
    %v1696 = vmul.f32 %v96, %v1657
    %v1697 = vmul.f32 %v97, %v1657
    %v1698 = vmul.f32 %v98, %v1657
    %v1699 = vmul.f32 %v99, %v1657
    %v1700 = vmul.f32 %v100, %v1657
    %v1701 = vmul.f32 %v101, %v1657
    %v1702 = vmul.f32 %v102, %v1657
    %v1703 = vmul.f32 %v103, %v1657
    %v1704 = vmul.f32 %v104, %v1657
    %v1705 = vmul.f32 %v105, %v1657
    %s1706 = sld [smem:[#allocation3 + $0x9]]
    %v1707 = vstv %s1706
    %v1708 = vmul.f32 %v131, %v1707
    %v1709 = vmul.f32 %v132, %v1707
    %v1710 = vmul.f32 %v133, %v1707
    %v1711 = vmul.f32 %v134, %v1707
    %v1712 = vmul.f32 %v135, %v1707
    %v1713 = vmul.f32 %v136, %v1707
    %v1714 = vmul.f32 %v137, %v1707
    %v1715 = vmul.f32 %v138, %v1707
    %v1716 = vmul.f32 %v139, %v1707
    %v1717 = vmul.f32 %v140, %v1707
    %v1718 = vmul.f32 %v141, %v1707
    %v1719 = vmul.f32 %v142, %v1707
    %v1720 = vmul.f32 %v143, %v1707
    %v1721 = vmul.f32 %v144, %v1707
    %v1722 = vmul.f32 %v145, %v1707
    %v1723 = vmul.f32 %v146, %v1707
    %v1724 = vmul.f32 %v147, %v1707
    %v1725 = vmul.f32 %v148, %v1707
    %v1726 = vmul.f32 %v149, %v1707
    %v1727 = vmul.f32 %v150, %v1707
    %v1728 = vmul.f32 %v151, %v1707
    %v1729 = vmul.f32 %v152, %v1707
    %v1730 = vmul.f32 %v153, %v1707
    %v1731 = vmul.f32 %v154, %v1707
    %v1732 = vadd.f32 %v1658, %v1708
    %v1733 = vadd.f32 %v1659, %v1709
    %v1734 = vadd.f32 %v1660, %v1710
    %v1735 = vadd.f32 %v1661, %v1711
    %v1736 = vadd.f32 %v1662, %v1712
    %v1737 = vadd.f32 %v1663, %v1713
    %v1738 = vadd.f32 %v1664, %v1714
    %v1739 = vadd.f32 %v1665, %v1715
    %v1740 = vadd.f32 %v1666, %v1716
    %v1741 = vadd.f32 %v1667, %v1717
    %v1742 = vadd.f32 %v1668, %v1718
    %v1743 = vadd.f32 %v1669, %v1719
    %v1744 = vadd.f32 %v1670, %v1720
    %v1745 = vadd.f32 %v1671, %v1721
    %v1746 = vadd.f32 %v1672, %v1722
    %v1747 = vadd.f32 %v1673, %v1723
    %v1748 = vadd.f32 %v1674, %v1724
    %v1749 = vadd.f32 %v1675, %v1725
    %v1750 = vadd.f32 %v1676, %v1726
    %v1751 = vadd.f32 %v1677, %v1727
    %v1752 = vadd.f32 %v1678, %v1728
    %v1753 = vadd.f32 %v1679, %v1729
    %v1754 = vadd.f32 %v1680, %v1730
    %v1755 = vadd.f32 %v1681, %v1731
    %v1756 = vmul.f32 %v204, %v1707
    %v1757 = vmul.f32 %v205, %v1707
    %v1758 = vmul.f32 %v206, %v1707
    %v1759 = vmul.f32 %v207, %v1707
    %v1760 = vmul.f32 %v208, %v1707
    %v1761 = vmul.f32 %v209, %v1707
    %v1762 = vmul.f32 %v210, %v1707
    %v1763 = vmul.f32 %v211, %v1707
    %v1764 = vmul.f32 %v212, %v1707
    %v1765 = vmul.f32 %v213, %v1707
    %v1766 = vmul.f32 %v214, %v1707
    %v1767 = vmul.f32 %v215, %v1707
    %v1768 = vmul.f32 %v216, %v1707
    %v1769 = vmul.f32 %v217, %v1707
    %v1770 = vmul.f32 %v218, %v1707
    %v1771 = vmul.f32 %v219, %v1707
    %v1772 = vmul.f32 %v220, %v1707
    %v1773 = vmul.f32 %v221, %v1707
    %v1774 = vmul.f32 %v222, %v1707
    %v1775 = vmul.f32 %v223, %v1707
    %v1776 = vmul.f32 %v224, %v1707
    %v1777 = vmul.f32 %v225, %v1707
    %v1778 = vmul.f32 %v226, %v1707
    %v1779 = vmul.f32 %v227, %v1707
    %v1780 = vadd.f32 %v1682, %v1756
    %v1781 = vadd.f32 %v1683, %v1757
    %v1782 = vadd.f32 %v1684, %v1758
    %v1783 = vadd.f32 %v1685, %v1759
    %v1784 = vadd.f32 %v1686, %v1760
    %v1785 = vadd.f32 %v1687, %v1761
    %v1786 = vadd.f32 %v1688, %v1762
    %v1787 = vadd.f32 %v1689, %v1763
    %v1788 = vadd.f32 %v1690, %v1764
    %v1789 = vadd.f32 %v1691, %v1765
    %v1790 = vadd.f32 %v1692, %v1766
    %v1791 = vadd.f32 %v1693, %v1767
    %v1792 = vadd.f32 %v1694, %v1768
    %v1793 = vadd.f32 %v1695, %v1769
    %v1794 = vadd.f32 %v1696, %v1770
    %v1795 = vadd.f32 %v1697, %v1771
    %v1796 = vadd.f32 %v1698, %v1772
    %v1797 = vadd.f32 %v1699, %v1773
    %v1798 = vadd.f32 %v1700, %v1774
    %v1799 = vadd.f32 %v1701, %v1775
    %v1800 = vadd.f32 %v1702, %v1776
    %v1801 = vadd.f32 %v1703, %v1777
    %v1802 = vadd.f32 %v1704, %v1778
    %v1803 = vadd.f32 %v1705, %v1779
    %s1804 = sld [smem:[#allocation3 + $0xa]]
    %v1805 = vstv %s1804
    %v1806 = vmul.f32 %v277, %v1805
    %v1807 = vmul.f32 %v278, %v1805
    %v1808 = vmul.f32 %v279, %v1805
    %v1809 = vmul.f32 %v280, %v1805
    %v1810 = vmul.f32 %v281, %v1805
    %v1811 = vmul.f32 %v282, %v1805
    %v1812 = vmul.f32 %v283, %v1805
    %v1813 = vmul.f32 %v284, %v1805
    %v1814 = vmul.f32 %v285, %v1805
    %v1815 = vmul.f32 %v286, %v1805
    %v1816 = vmul.f32 %v287, %v1805
    %v1817 = vmul.f32 %v288, %v1805
    %v1818 = vmul.f32 %v289, %v1805
    %v1819 = vmul.f32 %v290, %v1805
    %v1820 = vmul.f32 %v291, %v1805
    %v1821 = vmul.f32 %v292, %v1805
    %v1822 = vmul.f32 %v293, %v1805
    %v1823 = vmul.f32 %v294, %v1805
    %v1824 = vmul.f32 %v295, %v1805
    %v1825 = vmul.f32 %v296, %v1805
    %v1826 = vmul.f32 %v297, %v1805
    %v1827 = vmul.f32 %v298, %v1805
    %v1828 = vmul.f32 %v299, %v1805
    %v1829 = vmul.f32 %v300, %v1805
    %v1830 = vadd.f32 %v1732, %v1806
    %v1831 = vadd.f32 %v1733, %v1807
    %v1832 = vadd.f32 %v1734, %v1808
    %v1833 = vadd.f32 %v1735, %v1809
    %v1834 = vadd.f32 %v1736, %v1810
    %v1835 = vadd.f32 %v1737, %v1811
    %v1836 = vadd.f32 %v1738, %v1812
    %v1837 = vadd.f32 %v1739, %v1813
    %v1838 = vadd.f32 %v1740, %v1814
    %v1839 = vadd.f32 %v1741, %v1815
    %v1840 = vadd.f32 %v1742, %v1816
    %v1841 = vadd.f32 %v1743, %v1817
    %v1842 = vadd.f32 %v1744, %v1818
    %v1843 = vadd.f32 %v1745, %v1819
    %v1844 = vadd.f32 %v1746, %v1820
    %v1845 = vadd.f32 %v1747, %v1821
    %v1846 = vadd.f32 %v1748, %v1822
    %v1847 = vadd.f32 %v1749, %v1823
    %v1848 = vadd.f32 %v1750, %v1824
    %v1849 = vadd.f32 %v1751, %v1825
    %v1850 = vadd.f32 %v1752, %v1826
    %v1851 = vadd.f32 %v1753, %v1827
    %v1852 = vadd.f32 %v1754, %v1828
    %v1853 = vadd.f32 %v1755, %v1829
    %v1854 = vmul.f32 %v350, %v1805
    %v1855 = vmul.f32 %v351, %v1805
    %v1856 = vmul.f32 %v352, %v1805
    %v1857 = vmul.f32 %v353, %v1805
    %v1858 = vmul.f32 %v354, %v1805
    %v1859 = vmul.f32 %v355, %v1805
    %v1860 = vmul.f32 %v356, %v1805
    %v1861 = vmul.f32 %v357, %v1805
    %v1862 = vmul.f32 %v358, %v1805
    %v1863 = vmul.f32 %v359, %v1805
    %v1864 = vmul.f32 %v360, %v1805
    %v1865 = vmul.f32 %v361, %v1805
    %v1866 = vmul.f32 %v362, %v1805
    %v1867 = vmul.f32 %v363, %v1805
    %v1868 = vmul.f32 %v364, %v1805
    %v1869 = vmul.f32 %v365, %v1805
    %v1870 = vmul.f32 %v366, %v1805
    %v1871 = vmul.f32 %v367, %v1805
    %v1872 = vmul.f32 %v368, %v1805
    %v1873 = vmul.f32 %v369, %v1805
    %v1874 = vmul.f32 %v370, %v1805
    %v1875 = vmul.f32 %v371, %v1805
    %v1876 = vmul.f32 %v372, %v1805
    %v1877 = vmul.f32 %v373, %v1805
    %v1878 = vadd.f32 %v1780, %v1854
    %v1879 = vadd.f32 %v1781, %v1855
    %v1880 = vadd.f32 %v1782, %v1856
    %v1881 = vadd.f32 %v1783, %v1857
    %v1882 = vadd.f32 %v1784, %v1858
    %v1883 = vadd.f32 %v1785, %v1859
    %v1884 = vadd.f32 %v1786, %v1860
    %v1885 = vadd.f32 %v1787, %v1861
    %v1886 = vadd.f32 %v1788, %v1862
    %v1887 = vadd.f32 %v1789, %v1863
    %v1888 = vadd.f32 %v1790, %v1864
    %v1889 = vadd.f32 %v1791, %v1865
    %v1890 = vadd.f32 %v1792, %v1866
    %v1891 = vadd.f32 %v1793, %v1867
    %v1892 = vadd.f32 %v1794, %v1868
    %v1893 = vadd.f32 %v1795, %v1869
    %v1894 = vadd.f32 %v1796, %v1870
    %v1895 = vadd.f32 %v1797, %v1871
    %v1896 = vadd.f32 %v1798, %v1872
    %v1897 = vadd.f32 %v1799, %v1873
    %v1898 = vadd.f32 %v1800, %v1874
    %v1899 = vadd.f32 %v1801, %v1875
    %v1900 = vadd.f32 %v1802, %v1876
    %v1901 = vadd.f32 %v1803, %v1877
    %s1902 = sld [smem:[#allocation3 + $0xb]]
    %v1903 = vstv %s1902
    %v1904 = vmul.f32 %v423, %v1903
    %v1905 = vmul.f32 %v424, %v1903
    %v1906 = vmul.f32 %v425, %v1903
    %v1907 = vmul.f32 %v426, %v1903
    %v1908 = vmul.f32 %v427, %v1903
    %v1909 = vmul.f32 %v428, %v1903
    %v1910 = vmul.f32 %v429, %v1903
    %v1911 = vmul.f32 %v430, %v1903
    %v1912 = vmul.f32 %v431, %v1903
    %v1913 = vmul.f32 %v432, %v1903
    %v1914 = vmul.f32 %v433, %v1903
    %v1915 = vmul.f32 %v434, %v1903
    %v1916 = vmul.f32 %v435, %v1903
    %v1917 = vmul.f32 %v436, %v1903
    %v1918 = vmul.f32 %v437, %v1903
    %v1919 = vmul.f32 %v438, %v1903
    %v1920 = vmul.f32 %v439, %v1903
    %v1921 = vmul.f32 %v440, %v1903
    %v1922 = vmul.f32 %v441, %v1903
    %v1923 = vmul.f32 %v442, %v1903
    %v1924 = vmul.f32 %v443, %v1903
    %v1925 = vmul.f32 %v444, %v1903
    %v1926 = vmul.f32 %v445, %v1903
    %v1927 = vmul.f32 %v446, %v1903
    %v1928 = vadd.f32 %v1830, %v1904
    %v1929 = vadd.f32 %v1831, %v1905
    %v1930 = vadd.f32 %v1832, %v1906
    %v1931 = vadd.f32 %v1833, %v1907
    %v1932 = vadd.f32 %v1834, %v1908
    %v1933 = vadd.f32 %v1835, %v1909
    %v1934 = vadd.f32 %v1836, %v1910
    %v1935 = vadd.f32 %v1837, %v1911
    %v1936 = vadd.f32 %v1838, %v1912
    %v1937 = vadd.f32 %v1839, %v1913
    %v1938 = vadd.f32 %v1840, %v1914
    %v1939 = vadd.f32 %v1841, %v1915
    %v1940 = vadd.f32 %v1842, %v1916
    %v1941 = vadd.f32 %v1843, %v1917
    %v1942 = vadd.f32 %v1844, %v1918
    %v1943 = vadd.f32 %v1845, %v1919
    %v1944 = vadd.f32 %v1846, %v1920
    %v1945 = vadd.f32 %v1847, %v1921
    %v1946 = vadd.f32 %v1848, %v1922
    %v1947 = vadd.f32 %v1849, %v1923
    %v1948 = vadd.f32 %v1850, %v1924
    %v1949 = vadd.f32 %v1851, %v1925
    %v1950 = vadd.f32 %v1852, %v1926
    %v1951 = vadd.f32 %v1853, %v1927
    %v1952 = vmul.f32 %v496, %v1903
    %v1953 = vmul.f32 %v497, %v1903
    %v1954 = vmul.f32 %v498, %v1903
    %v1955 = vmul.f32 %v499, %v1903
    %v1956 = vmul.f32 %v500, %v1903
    %v1957 = vmul.f32 %v501, %v1903
    %v1958 = vmul.f32 %v502, %v1903
    %v1959 = vmul.f32 %v503, %v1903
    %v1960 = vmul.f32 %v504, %v1903
    %v1961 = vmul.f32 %v505, %v1903
    %v1962 = vmul.f32 %v506, %v1903
    %v1963 = vmul.f32 %v507, %v1903
    %v1964 = vmul.f32 %v508, %v1903
    %v1965 = vmul.f32 %v509, %v1903
    %v1966 = vmul.f32 %v510, %v1903
    %v1967 = vmul.f32 %v511, %v1903
    %v1968 = vmul.f32 %v512, %v1903
    %v1969 = vmul.f32 %v513, %v1903
    %v1970 = vmul.f32 %v514, %v1903
    %v1971 = vmul.f32 %v515, %v1903
    %v1972 = vmul.f32 %v516, %v1903
    %v1973 = vmul.f32 %v517, %v1903
    %v1974 = vmul.f32 %v518, %v1903
    %v1975 = vmul.f32 %v519, %v1903
    %v1976 = vadd.f32 %v1878, %v1952
    %v1977 = vadd.f32 %v1879, %v1953
    %v1978 = vadd.f32 %v1880, %v1954
    %v1979 = vadd.f32 %v1881, %v1955
    %v1980 = vadd.f32 %v1882, %v1956
    %v1981 = vadd.f32 %v1883, %v1957
    %v1982 = vadd.f32 %v1884, %v1958
    %v1983 = vadd.f32 %v1885, %v1959
    %v1984 = vadd.f32 %v1886, %v1960
    %v1985 = vadd.f32 %v1887, %v1961
    %v1986 = vadd.f32 %v1888, %v1962
    %v1987 = vadd.f32 %v1889, %v1963
    %v1988 = vadd.f32 %v1890, %v1964
    %v1989 = vadd.f32 %v1891, %v1965
    %v1990 = vadd.f32 %v1892, %v1966
    %v1991 = vadd.f32 %v1893, %v1967
    %v1992 = vadd.f32 %v1894, %v1968
    %v1993 = vadd.f32 %v1895, %v1969
    %v1994 = vadd.f32 %v1896, %v1970
    %v1995 = vadd.f32 %v1897, %v1971
    %v1996 = vadd.f32 %v1898, %v1972
    %v1997 = vadd.f32 %v1899, %v1973
    %v1998 = vadd.f32 %v1900, %v1974
    %v1999 = vadd.f32 %v1901, %v1975
    %s2000 = sld [smem:[#allocation4 + $0x2]]
    %v2001 = vstv %s2000
    %v2002 = vadd.f32 %v1928, %v2001
    %v2003 = vadd.f32 %v1929, %v2001
    %v2004 = vadd.f32 %v1930, %v2001
    %v2005 = vadd.f32 %v1931, %v2001
    %v2006 = vadd.f32 %v1932, %v2001
    %v2007 = vadd.f32 %v1933, %v2001
    %v2008 = vadd.f32 %v1934, %v2001
    %v2009 = vadd.f32 %v1935, %v2001
    %v2010 = vadd.f32 %v1936, %v2001
    %v2011 = vadd.f32 %v1937, %v2001
    %v2012 = vadd.f32 %v1938, %v2001
    %v2013 = vadd.f32 %v1939, %v2001
    %v2014 = vadd.f32 %v1940, %v2001
    %v2015 = vadd.f32 %v1941, %v2001
    %v2016 = vadd.f32 %v1942, %v2001
    %v2017 = vadd.f32 %v1943, %v2001
    %v2018 = vadd.f32 %v1944, %v2001
    %v2019 = vadd.f32 %v1945, %v2001
    %v2020 = vadd.f32 %v1946, %v2001
    %v2021 = vadd.f32 %v1947, %v2001
    %v2022 = vadd.f32 %v1948, %v2001
    %v2023 = vadd.f32 %v1949, %v2001
    %v2024 = vadd.f32 %v1950, %v2001
    %v2025 = vadd.f32 %v1951, %v2001
    %v2026 = vadd.f32 %v1976, %v2001
    %v2027 = vadd.f32 %v1977, %v2001
    %v2028 = vadd.f32 %v1978, %v2001
    %v2029 = vadd.f32 %v1979, %v2001
    %v2030 = vadd.f32 %v1980, %v2001
    %v2031 = vadd.f32 %v1981, %v2001
    %v2032 = vadd.f32 %v1982, %v2001
    %v2033 = vadd.f32 %v1983, %v2001
    %v2034 = vadd.f32 %v1984, %v2001
    %v2035 = vadd.f32 %v1985, %v2001
    %v2036 = vadd.f32 %v1986, %v2001
    %v2037 = vadd.f32 %v1987, %v2001
    %v2038 = vadd.f32 %v1988, %v2001
    %v2039 = vadd.f32 %v1989, %v2001
    %v2040 = vadd.f32 %v1990, %v2001
    %v2041 = vadd.f32 %v1991, %v2001
    %v2042 = vadd.f32 %v1992, %v2001
    %v2043 = vadd.f32 %v1993, %v2001
    %v2044 = vadd.f32 %v1994, %v2001
    %v2045 = vadd.f32 %v1995, %v2001
    %v2046 = vadd.f32 %v1996, %v2001
    %v2047 = vadd.f32 %v1997, %v2001
    %v2048 = vadd.f32 %v1998, %v2001
    %v2049 = vadd.f32 %v1999, %v2001
    %v2050 = vmul.f32 %v2002, %v2026
    %v2051 = vmul.f32 %v2003, %v2027
    %v2052 = vmul.f32 %v2004, %v2028
    %v2053 = vmul.f32 %v2005, %v2029
    %v2054 = vmul.f32 %v2006, %v2030
    %v2055 = vmul.f32 %v2007, %v2031
    %v2056 = vmul.f32 %v2008, %v2032
    %v2057 = vmul.f32 %v2009, %v2033
    %v2058 = vmul.f32 %v2010, %v2034
    %v2059 = vmul.f32 %v2011, %v2035
    %v2060 = vmul.f32 %v2012, %v2036
    %v2061 = vmul.f32 %v2013, %v2037
    %v2062 = vmul.f32 %v2014, %v2038
    %v2063 = vmul.f32 %v2015, %v2039
    %v2064 = vmul.f32 %v2016, %v2040
    %v2065 = vmul.f32 %v2017, %v2041
    %v2066 = vmul.f32 %v2018, %v2042
    %v2067 = vmul.f32 %v2019, %v2043
    %v2068 = vmul.f32 %v2020, %v2044
    %v2069 = vmul.f32 %v2021, %v2045
    %v2070 = vmul.f32 %v2022, %v2046
    %v2071 = vmul.f32 %v2023, %v2047
    %v2072 = vmul.f32 %v2024, %v2048
    %v2073 = vmul.f32 %v2025, %v2049
    %v2098 = vrot.slane %v2051, 7
    %v2099 = vsel %vm667, %v2098, %v2050
    %v2100 = vrot.slane %v2052, 6
    %v2101 = vsel %vm670, %v2100, %v2099
    %v2102 = vrot.slane %v2053, 5
    %v2103 = vsel %vm673, %v2102, %v2101
    %v2104 = vrot.slane %v2054, 4
    %v2105 = vsel %vm676, %v2104, %v2103
    %v2106 = vrot.slane %v2055, 3
    %v2107 = vsel %vm679, %v2106, %v2105
    %v2108 = vrot.slane %v2056, 2
    %v2109 = vsel %vm682, %v2108, %v2107
    %v2110 = vrot.slane %v2057, 1
    %v2111 = vsel %vm685, %v2110, %v2109
    %v2112 = vrot.slane %v2059, 7
    %v2113 = vsel %vm667, %v2112, %v2058
    %v2114 = vrot.slane %v2060, 6
    %v2115 = vsel %vm670, %v2114, %v2113
    %v2116 = vrot.slane %v2061, 5
    %v2117 = vsel %vm673, %v2116, %v2115
    %v2118 = vrot.slane %v2062, 4
    %v2119 = vsel %vm676, %v2118, %v2117
    %v2120 = vrot.slane %v2063, 3
    %v2121 = vsel %vm679, %v2120, %v2119
    %v2122 = vrot.slane %v2064, 2
    %v2123 = vsel %vm682, %v2122, %v2121
    %v2124 = vrot.slane %v2065, 1
    %v2125 = vsel %vm685, %v2124, %v2123
    %v2126 = vrot.slane %v2067, 7
    %v2127 = vsel %vm667, %v2126, %v2066
    %v2128 = vrot.slane %v2068, 6
    %v2129 = vsel %vm670, %v2128, %v2127
    %v2130 = vrot.slane %v2069, 5
    %v2131 = vsel %vm673, %v2130, %v2129
    %v2132 = vrot.slane %v2070, 4
    %v2133 = vsel %vm676, %v2132, %v2131
    %v2134 = vrot.slane %v2071, 3
    %v2135 = vsel %vm679, %v2134, %v2133
    %v2136 = vrot.slane %v2072, 2
    %v2137 = vsel %vm682, %v2136, %v2135
    %v2138 = vrot.slane %v2073, 1
    %v2139 = vsel %vm685, %v2138, %v2137
    %v2143 = vsel %vm718, %v2111, 0.0
    %2144 = vadd.xlane.f32.xlu0 %v2143
    %v2145 = vpop.xlane.xlu0 %2144
    %v2146 = vsel %vm718, %v2125, 0.0
    %2147 = vadd.xlane.f32.xlu0 %v2146
    %v2148 = vpop.xlane.xlu0 %2147
    %v2149 = vsel %vm718, %v2139, 0.0
    %2150 = vadd.xlane.f32.xlu0 %v2149
    %v2151 = vpop.xlane.xlu0 %2150
    %v2152 = vmul.f32 %v2002, %v2002
    %v2153 = vmul.f32 %v2003, %v2003
    %v2154 = vmul.f32 %v2004, %v2004
    %v2155 = vmul.f32 %v2005, %v2005
    %v2156 = vmul.f32 %v2006, %v2006
    %v2157 = vmul.f32 %v2007, %v2007
    %v2158 = vmul.f32 %v2008, %v2008
    %v2159 = vmul.f32 %v2009, %v2009
    %v2160 = vmul.f32 %v2010, %v2010
    %v2161 = vmul.f32 %v2011, %v2011
    %v2162 = vmul.f32 %v2012, %v2012
    %v2163 = vmul.f32 %v2013, %v2013
    %v2164 = vmul.f32 %v2014, %v2014
    %v2165 = vmul.f32 %v2015, %v2015
    %v2166 = vmul.f32 %v2016, %v2016
    %v2167 = vmul.f32 %v2017, %v2017
    %v2168 = vmul.f32 %v2018, %v2018
    %v2169 = vmul.f32 %v2019, %v2019
    %v2170 = vmul.f32 %v2020, %v2020
    %v2171 = vmul.f32 %v2021, %v2021
    %v2172 = vmul.f32 %v2022, %v2022
    %v2173 = vmul.f32 %v2023, %v2023
    %v2174 = vmul.f32 %v2024, %v2024
    %v2175 = vmul.f32 %v2025, %v2025
    %v2200 = vrot.slane %v2153, 7
    %v2201 = vsel %vm667, %v2200, %v2152
    %v2202 = vrot.slane %v2154, 6
    %v2203 = vsel %vm670, %v2202, %v2201
    %v2204 = vrot.slane %v2155, 5
    %v2205 = vsel %vm673, %v2204, %v2203
    %v2206 = vrot.slane %v2156, 4
    %v2207 = vsel %vm676, %v2206, %v2205
    %v2208 = vrot.slane %v2157, 3
    %v2209 = vsel %vm679, %v2208, %v2207
    %v2210 = vrot.slane %v2158, 2
    %v2211 = vsel %vm682, %v2210, %v2209
    %v2212 = vrot.slane %v2159, 1
    %v2213 = vsel %vm685, %v2212, %v2211
    %v2214 = vrot.slane %v2161, 7
    %v2215 = vsel %vm667, %v2214, %v2160
    %v2216 = vrot.slane %v2162, 6
    %v2217 = vsel %vm670, %v2216, %v2215
    %v2218 = vrot.slane %v2163, 5
    %v2219 = vsel %vm673, %v2218, %v2217
    %v2220 = vrot.slane %v2164, 4
    %v2221 = vsel %vm676, %v2220, %v2219
    %v2222 = vrot.slane %v2165, 3
    %v2223 = vsel %vm679, %v2222, %v2221
    %v2224 = vrot.slane %v2166, 2
    %v2225 = vsel %vm682, %v2224, %v2223
    %v2226 = vrot.slane %v2167, 1
    %v2227 = vsel %vm685, %v2226, %v2225
    %v2228 = vrot.slane %v2169, 7
    %v2229 = vsel %vm667, %v2228, %v2168
    %v2230 = vrot.slane %v2170, 6
    %v2231 = vsel %vm670, %v2230, %v2229
    %v2232 = vrot.slane %v2171, 5
    %v2233 = vsel %vm673, %v2232, %v2231
    %v2234 = vrot.slane %v2172, 4
    %v2235 = vsel %vm676, %v2234, %v2233
    %v2236 = vrot.slane %v2173, 3
    %v2237 = vsel %vm679, %v2236, %v2235
    %v2238 = vrot.slane %v2174, 2
    %v2239 = vsel %vm682, %v2238, %v2237
    %v2240 = vrot.slane %v2175, 1
    %v2241 = vsel %vm685, %v2240, %v2239
    %v2245 = vsel %vm718, %v2213, 0.0
    %2246 = vadd.xlane.f32.xlu0 %v2245
    %v2247 = vpop.xlane.xlu0 %2246
    %v2248 = vsel %vm718, %v2227, 0.0
    %2249 = vadd.xlane.f32.xlu0 %v2248
    %v2250 = vpop.xlane.xlu0 %2249
    %v2251 = vsel %vm718, %v2241, 0.0
    %2252 = vadd.xlane.f32.xlu0 %v2251
    %v2253 = vpop.xlane.xlu0 %2252
    %v2254 = vmul.f32 %v2026, %v2026
    %v2255 = vmul.f32 %v2027, %v2027
    %v2256 = vmul.f32 %v2028, %v2028
    %v2257 = vmul.f32 %v2029, %v2029
    %v2258 = vmul.f32 %v2030, %v2030
    %v2259 = vmul.f32 %v2031, %v2031
    %v2260 = vmul.f32 %v2032, %v2032
    %v2261 = vmul.f32 %v2033, %v2033
    %v2262 = vmul.f32 %v2034, %v2034
    %v2263 = vmul.f32 %v2035, %v2035
    %v2264 = vmul.f32 %v2036, %v2036
    %v2265 = vmul.f32 %v2037, %v2037
    %v2266 = vmul.f32 %v2038, %v2038
    %v2267 = vmul.f32 %v2039, %v2039
    %v2268 = vmul.f32 %v2040, %v2040
    %v2269 = vmul.f32 %v2041, %v2041
    %v2270 = vmul.f32 %v2042, %v2042
    %v2271 = vmul.f32 %v2043, %v2043
    %v2272 = vmul.f32 %v2044, %v2044
    %v2273 = vmul.f32 %v2045, %v2045
    %v2274 = vmul.f32 %v2046, %v2046
    %v2275 = vmul.f32 %v2047, %v2047
    %v2276 = vmul.f32 %v2048, %v2048
    %v2277 = vmul.f32 %v2049, %v2049
    %v2302 = vrot.slane %v2255, 7
    %v2303 = vsel %vm667, %v2302, %v2254
    %v2304 = vrot.slane %v2256, 6
    %v2305 = vsel %vm670, %v2304, %v2303
    %v2306 = vrot.slane %v2257, 5
    %v2307 = vsel %vm673, %v2306, %v2305
    %v2308 = vrot.slane %v2258, 4
    %v2309 = vsel %vm676, %v2308, %v2307
    %v2310 = vrot.slane %v2259, 3
    %v2311 = vsel %vm679, %v2310, %v2309
    %v2312 = vrot.slane %v2260, 2
    %v2313 = vsel %vm682, %v2312, %v2311
    %v2314 = vrot.slane %v2261, 1
    %v2315 = vsel %vm685, %v2314, %v2313
    %v2316 = vrot.slane %v2263, 7
    %v2317 = vsel %vm667, %v2316, %v2262
    %v2318 = vrot.slane %v2264, 6
    %v2319 = vsel %vm670, %v2318, %v2317
    %v2320 = vrot.slane %v2265, 5
    %v2321 = vsel %vm673, %v2320, %v2319
    %v2322 = vrot.slane %v2266, 4
    %v2323 = vsel %vm676, %v2322, %v2321
    %v2324 = vrot.slane %v2267, 3
    %v2325 = vsel %vm679, %v2324, %v2323
    %v2326 = vrot.slane %v2268, 2
    %v2327 = vsel %vm682, %v2326, %v2325
    %v2328 = vrot.slane %v2269, 1
    %v2329 = vsel %vm685, %v2328, %v2327
    %v2330 = vrot.slane %v2271, 7
    %v2331 = vsel %vm667, %v2330, %v2270
    %v2332 = vrot.slane %v2272, 6
    %v2333 = vsel %vm670, %v2332, %v2331
    %v2334 = vrot.slane %v2273, 5
    %v2335 = vsel %vm673, %v2334, %v2333
    %v2336 = vrot.slane %v2274, 4
    %v2337 = vsel %vm676, %v2336, %v2335
    %v2338 = vrot.slane %v2275, 3
    %v2339 = vsel %vm679, %v2338, %v2337
    %v2340 = vrot.slane %v2276, 2
    %v2341 = vsel %vm682, %v2340, %v2339
    %v2342 = vrot.slane %v2277, 1
    %v2343 = vsel %vm685, %v2342, %v2341
    %v2347 = vsel %vm718, %v2315, 0.0
    %2348 = vadd.xlane.f32.xlu0 %v2347
    %v2349 = vpop.xlane.xlu0 %2348
    %v2350 = vsel %vm718, %v2329, 0.0
    %2351 = vadd.xlane.f32.xlu0 %v2350
    %v2352 = vpop.xlane.xlu0 %2351
    %v2353 = vsel %vm718, %v2343, 0.0
    %2354 = vadd.xlane.f32.xlu0 %v2353
    %v2355 = vpop.xlane.xlu0 %2354
    %v2356 = vmul.f32 %v2247, %v2349
    %v2357 = vmul.f32 %v2250, %v2352
    %v2358 = vmul.f32 %v2253, %v2355
    %v2359 = vmax.f32 %v2356, 1e-16
    %v2360 = vmax.f32 %v2357, 1e-16
    %v2361 = vmax.f32 %v2358, 1e-16
    %v2362 = vrsqrt.pop %v2359
    %v2363 = vrsqrt.pop %v2360
    %v2364 = vrsqrt.pop %v2361
    %v2365 = vmul.f32 %v2145, %v2362
    %v2366 = vmul.f32 %v2148, %v2363
    %v2367 = vmul.f32 %v2151, %v2364
    %s2368 = sld [smem:[#allocation3 + $0xc]]
    %v2369 = vstv %s2368
    %v2370 = vmul.f32 %v33, %v2369
    %v2371 = vmul.f32 %v34, %v2369
    %v2372 = vmul.f32 %v35, %v2369
    %v2373 = vmul.f32 %v36, %v2369
    %v2374 = vmul.f32 %v37, %v2369
    %v2375 = vmul.f32 %v38, %v2369
    %v2376 = vmul.f32 %v39, %v2369
    %v2377 = vmul.f32 %v40, %v2369
    %v2378 = vmul.f32 %v41, %v2369
    %v2379 = vmul.f32 %v42, %v2369
    %v2380 = vmul.f32 %v43, %v2369
    %v2381 = vmul.f32 %v44, %v2369
    %v2382 = vmul.f32 %v45, %v2369
    %v2383 = vmul.f32 %v46, %v2369
    %v2384 = vmul.f32 %v47, %v2369
    %v2385 = vmul.f32 %v48, %v2369
    %v2386 = vmul.f32 %v49, %v2369
    %v2387 = vmul.f32 %v50, %v2369
    %v2388 = vmul.f32 %v51, %v2369
    %v2389 = vmul.f32 %v52, %v2369
    %v2390 = vmul.f32 %v53, %v2369
    %v2391 = vmul.f32 %v54, %v2369
    %v2392 = vmul.f32 %v55, %v2369
    %v2393 = vmul.f32 %v56, %v2369
    %v2394 = vmul.f32 %v82, %v2369
    %v2395 = vmul.f32 %v83, %v2369
    %v2396 = vmul.f32 %v84, %v2369
    %v2397 = vmul.f32 %v85, %v2369
    %v2398 = vmul.f32 %v86, %v2369
    %v2399 = vmul.f32 %v87, %v2369
    %v2400 = vmul.f32 %v88, %v2369
    %v2401 = vmul.f32 %v89, %v2369
    %v2402 = vmul.f32 %v90, %v2369
    %v2403 = vmul.f32 %v91, %v2369
    %v2404 = vmul.f32 %v92, %v2369
    %v2405 = vmul.f32 %v93, %v2369
    %v2406 = vmul.f32 %v94, %v2369
    %v2407 = vmul.f32 %v95, %v2369
    %v2408 = vmul.f32 %v96, %v2369
    %v2409 = vmul.f32 %v97, %v2369
    %v2410 = vmul.f32 %v98, %v2369
    %v2411 = vmul.f32 %v99, %v2369
    %v2412 = vmul.f32 %v100, %v2369
    %v2413 = vmul.f32 %v101, %v2369
    %v2414 = vmul.f32 %v102, %v2369
    %v2415 = vmul.f32 %v103, %v2369
    %v2416 = vmul.f32 %v104, %v2369
    %v2417 = vmul.f32 %v105, %v2369
    %s2418 = sld [smem:[#allocation3 + $0xd]]
    %v2419 = vstv %s2418
    %v2420 = vmul.f32 %v131, %v2419
    %v2421 = vmul.f32 %v132, %v2419
    %v2422 = vmul.f32 %v133, %v2419
    %v2423 = vmul.f32 %v134, %v2419
    %v2424 = vmul.f32 %v135, %v2419
    %v2425 = vmul.f32 %v136, %v2419
    %v2426 = vmul.f32 %v137, %v2419
    %v2427 = vmul.f32 %v138, %v2419
    %v2428 = vmul.f32 %v139, %v2419
    %v2429 = vmul.f32 %v140, %v2419
    %v2430 = vmul.f32 %v141, %v2419
    %v2431 = vmul.f32 %v142, %v2419
    %v2432 = vmul.f32 %v143, %v2419
    %v2433 = vmul.f32 %v144, %v2419
    %v2434 = vmul.f32 %v145, %v2419
    %v2435 = vmul.f32 %v146, %v2419
    %v2436 = vmul.f32 %v147, %v2419
    %v2437 = vmul.f32 %v148, %v2419
    %v2438 = vmul.f32 %v149, %v2419
    %v2439 = vmul.f32 %v150, %v2419
    %v2440 = vmul.f32 %v151, %v2419
    %v2441 = vmul.f32 %v152, %v2419
    %v2442 = vmul.f32 %v153, %v2419
    %v2443 = vmul.f32 %v154, %v2419
    %v2444 = vadd.f32 %v2370, %v2420
    %v2445 = vadd.f32 %v2371, %v2421
    %v2446 = vadd.f32 %v2372, %v2422
    %v2447 = vadd.f32 %v2373, %v2423
    %v2448 = vadd.f32 %v2374, %v2424
    %v2449 = vadd.f32 %v2375, %v2425
    %v2450 = vadd.f32 %v2376, %v2426
    %v2451 = vadd.f32 %v2377, %v2427
    %v2452 = vadd.f32 %v2378, %v2428
    %v2453 = vadd.f32 %v2379, %v2429
    %v2454 = vadd.f32 %v2380, %v2430
    %v2455 = vadd.f32 %v2381, %v2431
    %v2456 = vadd.f32 %v2382, %v2432
    %v2457 = vadd.f32 %v2383, %v2433
    %v2458 = vadd.f32 %v2384, %v2434
    %v2459 = vadd.f32 %v2385, %v2435
    %v2460 = vadd.f32 %v2386, %v2436
    %v2461 = vadd.f32 %v2387, %v2437
    %v2462 = vadd.f32 %v2388, %v2438
    %v2463 = vadd.f32 %v2389, %v2439
    %v2464 = vadd.f32 %v2390, %v2440
    %v2465 = vadd.f32 %v2391, %v2441
    %v2466 = vadd.f32 %v2392, %v2442
    %v2467 = vadd.f32 %v2393, %v2443
    %v2468 = vmul.f32 %v204, %v2419
    %v2469 = vmul.f32 %v205, %v2419
    %v2470 = vmul.f32 %v206, %v2419
    %v2471 = vmul.f32 %v207, %v2419
    %v2472 = vmul.f32 %v208, %v2419
    %v2473 = vmul.f32 %v209, %v2419
    %v2474 = vmul.f32 %v210, %v2419
    %v2475 = vmul.f32 %v211, %v2419
    %v2476 = vmul.f32 %v212, %v2419
    %v2477 = vmul.f32 %v213, %v2419
    %v2478 = vmul.f32 %v214, %v2419
    %v2479 = vmul.f32 %v215, %v2419
    %v2480 = vmul.f32 %v216, %v2419
    %v2481 = vmul.f32 %v217, %v2419
    %v2482 = vmul.f32 %v218, %v2419
    %v2483 = vmul.f32 %v219, %v2419
    %v2484 = vmul.f32 %v220, %v2419
    %v2485 = vmul.f32 %v221, %v2419
    %v2486 = vmul.f32 %v222, %v2419
    %v2487 = vmul.f32 %v223, %v2419
    %v2488 = vmul.f32 %v224, %v2419
    %v2489 = vmul.f32 %v225, %v2419
    %v2490 = vmul.f32 %v226, %v2419
    %v2491 = vmul.f32 %v227, %v2419
    %v2492 = vadd.f32 %v2394, %v2468
    %v2493 = vadd.f32 %v2395, %v2469
    %v2494 = vadd.f32 %v2396, %v2470
    %v2495 = vadd.f32 %v2397, %v2471
    %v2496 = vadd.f32 %v2398, %v2472
    %v2497 = vadd.f32 %v2399, %v2473
    %v2498 = vadd.f32 %v2400, %v2474
    %v2499 = vadd.f32 %v2401, %v2475
    %v2500 = vadd.f32 %v2402, %v2476
    %v2501 = vadd.f32 %v2403, %v2477
    %v2502 = vadd.f32 %v2404, %v2478
    %v2503 = vadd.f32 %v2405, %v2479
    %v2504 = vadd.f32 %v2406, %v2480
    %v2505 = vadd.f32 %v2407, %v2481
    %v2506 = vadd.f32 %v2408, %v2482
    %v2507 = vadd.f32 %v2409, %v2483
    %v2508 = vadd.f32 %v2410, %v2484
    %v2509 = vadd.f32 %v2411, %v2485
    %v2510 = vadd.f32 %v2412, %v2486
    %v2511 = vadd.f32 %v2413, %v2487
    %v2512 = vadd.f32 %v2414, %v2488
    %v2513 = vadd.f32 %v2415, %v2489
    %v2514 = vadd.f32 %v2416, %v2490
    %v2515 = vadd.f32 %v2417, %v2491
    %s2516 = sld [smem:[#allocation3 + $0xe]]
    %v2517 = vstv %s2516
    %v2518 = vmul.f32 %v277, %v2517
    %v2519 = vmul.f32 %v278, %v2517
    %v2520 = vmul.f32 %v279, %v2517
    %v2521 = vmul.f32 %v280, %v2517
    %v2522 = vmul.f32 %v281, %v2517
    %v2523 = vmul.f32 %v282, %v2517
    %v2524 = vmul.f32 %v283, %v2517
    %v2525 = vmul.f32 %v284, %v2517
    %v2526 = vmul.f32 %v285, %v2517
    %v2527 = vmul.f32 %v286, %v2517
    %v2528 = vmul.f32 %v287, %v2517
    %v2529 = vmul.f32 %v288, %v2517
    %v2530 = vmul.f32 %v289, %v2517
    %v2531 = vmul.f32 %v290, %v2517
    %v2532 = vmul.f32 %v291, %v2517
    %v2533 = vmul.f32 %v292, %v2517
    %v2534 = vmul.f32 %v293, %v2517
    %v2535 = vmul.f32 %v294, %v2517
    %v2536 = vmul.f32 %v295, %v2517
    %v2537 = vmul.f32 %v296, %v2517
    %v2538 = vmul.f32 %v297, %v2517
    %v2539 = vmul.f32 %v298, %v2517
    %v2540 = vmul.f32 %v299, %v2517
    %v2541 = vmul.f32 %v300, %v2517
    %v2542 = vadd.f32 %v2444, %v2518
    %v2543 = vadd.f32 %v2445, %v2519
    %v2544 = vadd.f32 %v2446, %v2520
    %v2545 = vadd.f32 %v2447, %v2521
    %v2546 = vadd.f32 %v2448, %v2522
    %v2547 = vadd.f32 %v2449, %v2523
    %v2548 = vadd.f32 %v2450, %v2524
    %v2549 = vadd.f32 %v2451, %v2525
    %v2550 = vadd.f32 %v2452, %v2526
    %v2551 = vadd.f32 %v2453, %v2527
    %v2552 = vadd.f32 %v2454, %v2528
    %v2553 = vadd.f32 %v2455, %v2529
    %v2554 = vadd.f32 %v2456, %v2530
    %v2555 = vadd.f32 %v2457, %v2531
    %v2556 = vadd.f32 %v2458, %v2532
    %v2557 = vadd.f32 %v2459, %v2533
    %v2558 = vadd.f32 %v2460, %v2534
    %v2559 = vadd.f32 %v2461, %v2535
    %v2560 = vadd.f32 %v2462, %v2536
    %v2561 = vadd.f32 %v2463, %v2537
    %v2562 = vadd.f32 %v2464, %v2538
    %v2563 = vadd.f32 %v2465, %v2539
    %v2564 = vadd.f32 %v2466, %v2540
    %v2565 = vadd.f32 %v2467, %v2541
    %v2566 = vmul.f32 %v350, %v2517
    %v2567 = vmul.f32 %v351, %v2517
    %v2568 = vmul.f32 %v352, %v2517
    %v2569 = vmul.f32 %v353, %v2517
    %v2570 = vmul.f32 %v354, %v2517
    %v2571 = vmul.f32 %v355, %v2517
    %v2572 = vmul.f32 %v356, %v2517
    %v2573 = vmul.f32 %v357, %v2517
    %v2574 = vmul.f32 %v358, %v2517
    %v2575 = vmul.f32 %v359, %v2517
    %v2576 = vmul.f32 %v360, %v2517
    %v2577 = vmul.f32 %v361, %v2517
    %v2578 = vmul.f32 %v362, %v2517
    %v2579 = vmul.f32 %v363, %v2517
    %v2580 = vmul.f32 %v364, %v2517
    %v2581 = vmul.f32 %v365, %v2517
    %v2582 = vmul.f32 %v366, %v2517
    %v2583 = vmul.f32 %v367, %v2517
    %v2584 = vmul.f32 %v368, %v2517
    %v2585 = vmul.f32 %v369, %v2517
    %v2586 = vmul.f32 %v370, %v2517
    %v2587 = vmul.f32 %v371, %v2517
    %v2588 = vmul.f32 %v372, %v2517
    %v2589 = vmul.f32 %v373, %v2517
    %v2590 = vadd.f32 %v2492, %v2566
    %v2591 = vadd.f32 %v2493, %v2567
    %v2592 = vadd.f32 %v2494, %v2568
    %v2593 = vadd.f32 %v2495, %v2569
    %v2594 = vadd.f32 %v2496, %v2570
    %v2595 = vadd.f32 %v2497, %v2571
    %v2596 = vadd.f32 %v2498, %v2572
    %v2597 = vadd.f32 %v2499, %v2573
    %v2598 = vadd.f32 %v2500, %v2574
    %v2599 = vadd.f32 %v2501, %v2575
    %v2600 = vadd.f32 %v2502, %v2576
    %v2601 = vadd.f32 %v2503, %v2577
    %v2602 = vadd.f32 %v2504, %v2578
    %v2603 = vadd.f32 %v2505, %v2579
    %v2604 = vadd.f32 %v2506, %v2580
    %v2605 = vadd.f32 %v2507, %v2581
    %v2606 = vadd.f32 %v2508, %v2582
    %v2607 = vadd.f32 %v2509, %v2583
    %v2608 = vadd.f32 %v2510, %v2584
    %v2609 = vadd.f32 %v2511, %v2585
    %v2610 = vadd.f32 %v2512, %v2586
    %v2611 = vadd.f32 %v2513, %v2587
    %v2612 = vadd.f32 %v2514, %v2588
    %v2613 = vadd.f32 %v2515, %v2589
    %s2614 = sld [smem:[#allocation3 + $0xf]]
    %v2615 = vstv %s2614
    %v2616 = vmul.f32 %v423, %v2615
    %v2617 = vmul.f32 %v424, %v2615
    %v2618 = vmul.f32 %v425, %v2615
    %v2619 = vmul.f32 %v426, %v2615
    %v2620 = vmul.f32 %v427, %v2615
    %v2621 = vmul.f32 %v428, %v2615
    %v2622 = vmul.f32 %v429, %v2615
    %v2623 = vmul.f32 %v430, %v2615
    %v2624 = vmul.f32 %v431, %v2615
    %v2625 = vmul.f32 %v432, %v2615
    %v2626 = vmul.f32 %v433, %v2615
    %v2627 = vmul.f32 %v434, %v2615
    %v2628 = vmul.f32 %v435, %v2615
    %v2629 = vmul.f32 %v436, %v2615
    %v2630 = vmul.f32 %v437, %v2615
    %v2631 = vmul.f32 %v438, %v2615
    %v2632 = vmul.f32 %v439, %v2615
    %v2633 = vmul.f32 %v440, %v2615
    %v2634 = vmul.f32 %v441, %v2615
    %v2635 = vmul.f32 %v442, %v2615
    %v2636 = vmul.f32 %v443, %v2615
    %v2637 = vmul.f32 %v444, %v2615
    %v2638 = vmul.f32 %v445, %v2615
    %v2639 = vmul.f32 %v446, %v2615
    %v2640 = vadd.f32 %v2542, %v2616
    %v2641 = vadd.f32 %v2543, %v2617
    %v2642 = vadd.f32 %v2544, %v2618
    %v2643 = vadd.f32 %v2545, %v2619
    %v2644 = vadd.f32 %v2546, %v2620
    %v2645 = vadd.f32 %v2547, %v2621
    %v2646 = vadd.f32 %v2548, %v2622
    %v2647 = vadd.f32 %v2549, %v2623
    %v2648 = vadd.f32 %v2550, %v2624
    %v2649 = vadd.f32 %v2551, %v2625
    %v2650 = vadd.f32 %v2552, %v2626
    %v2651 = vadd.f32 %v2553, %v2627
    %v2652 = vadd.f32 %v2554, %v2628
    %v2653 = vadd.f32 %v2555, %v2629
    %v2654 = vadd.f32 %v2556, %v2630
    %v2655 = vadd.f32 %v2557, %v2631
    %v2656 = vadd.f32 %v2558, %v2632
    %v2657 = vadd.f32 %v2559, %v2633
    %v2658 = vadd.f32 %v2560, %v2634
    %v2659 = vadd.f32 %v2561, %v2635
    %v2660 = vadd.f32 %v2562, %v2636
    %v2661 = vadd.f32 %v2563, %v2637
    %v2662 = vadd.f32 %v2564, %v2638
    %v2663 = vadd.f32 %v2565, %v2639
    %v2664 = vmul.f32 %v496, %v2615
    %v2665 = vmul.f32 %v497, %v2615
    %v2666 = vmul.f32 %v498, %v2615
    %v2667 = vmul.f32 %v499, %v2615
    %v2668 = vmul.f32 %v500, %v2615
    %v2669 = vmul.f32 %v501, %v2615
    %v2670 = vmul.f32 %v502, %v2615
    %v2671 = vmul.f32 %v503, %v2615
    %v2672 = vmul.f32 %v504, %v2615
    %v2673 = vmul.f32 %v505, %v2615
    %v2674 = vmul.f32 %v506, %v2615
    %v2675 = vmul.f32 %v507, %v2615
    %v2676 = vmul.f32 %v508, %v2615
    %v2677 = vmul.f32 %v509, %v2615
    %v2678 = vmul.f32 %v510, %v2615
    %v2679 = vmul.f32 %v511, %v2615
    %v2680 = vmul.f32 %v512, %v2615
    %v2681 = vmul.f32 %v513, %v2615
    %v2682 = vmul.f32 %v514, %v2615
    %v2683 = vmul.f32 %v515, %v2615
    %v2684 = vmul.f32 %v516, %v2615
    %v2685 = vmul.f32 %v517, %v2615
    %v2686 = vmul.f32 %v518, %v2615
    %v2687 = vmul.f32 %v519, %v2615
    %v2688 = vadd.f32 %v2590, %v2664
    %v2689 = vadd.f32 %v2591, %v2665
    %v2690 = vadd.f32 %v2592, %v2666
    %v2691 = vadd.f32 %v2593, %v2667
    %v2692 = vadd.f32 %v2594, %v2668
    %v2693 = vadd.f32 %v2595, %v2669
    %v2694 = vadd.f32 %v2596, %v2670
    %v2695 = vadd.f32 %v2597, %v2671
    %v2696 = vadd.f32 %v2598, %v2672
    %v2697 = vadd.f32 %v2599, %v2673
    %v2698 = vadd.f32 %v2600, %v2674
    %v2699 = vadd.f32 %v2601, %v2675
    %v2700 = vadd.f32 %v2602, %v2676
    %v2701 = vadd.f32 %v2603, %v2677
    %v2702 = vadd.f32 %v2604, %v2678
    %v2703 = vadd.f32 %v2605, %v2679
    %v2704 = vadd.f32 %v2606, %v2680
    %v2705 = vadd.f32 %v2607, %v2681
    %v2706 = vadd.f32 %v2608, %v2682
    %v2707 = vadd.f32 %v2609, %v2683
    %v2708 = vadd.f32 %v2610, %v2684
    %v2709 = vadd.f32 %v2611, %v2685
    %v2710 = vadd.f32 %v2612, %v2686
    %v2711 = vadd.f32 %v2613, %v2687
    %s2712 = sld [smem:[#allocation4 + $0x3]]
    %v2713 = vstv %s2712
    %v2714 = vadd.f32 %v2640, %v2713
    %v2715 = vadd.f32 %v2641, %v2713
    %v2716 = vadd.f32 %v2642, %v2713
    %v2717 = vadd.f32 %v2643, %v2713
    %v2718 = vadd.f32 %v2644, %v2713
    %v2719 = vadd.f32 %v2645, %v2713
    %v2720 = vadd.f32 %v2646, %v2713
    %v2721 = vadd.f32 %v2647, %v2713
    %v2722 = vadd.f32 %v2648, %v2713
    %v2723 = vadd.f32 %v2649, %v2713
    %v2724 = vadd.f32 %v2650, %v2713
    %v2725 = vadd.f32 %v2651, %v2713
    %v2726 = vadd.f32 %v2652, %v2713
    %v2727 = vadd.f32 %v2653, %v2713
    %v2728 = vadd.f32 %v2654, %v2713
    %v2729 = vadd.f32 %v2655, %v2713
    %v2730 = vadd.f32 %v2656, %v2713
    %v2731 = vadd.f32 %v2657, %v2713
    %v2732 = vadd.f32 %v2658, %v2713
    %v2733 = vadd.f32 %v2659, %v2713
    %v2734 = vadd.f32 %v2660, %v2713
    %v2735 = vadd.f32 %v2661, %v2713
    %v2736 = vadd.f32 %v2662, %v2713
    %v2737 = vadd.f32 %v2663, %v2713
    %v2738 = vadd.f32 %v2688, %v2713
    %v2739 = vadd.f32 %v2689, %v2713
    %v2740 = vadd.f32 %v2690, %v2713
    %v2741 = vadd.f32 %v2691, %v2713
    %v2742 = vadd.f32 %v2692, %v2713
    %v2743 = vadd.f32 %v2693, %v2713
    %v2744 = vadd.f32 %v2694, %v2713
    %v2745 = vadd.f32 %v2695, %v2713
    %v2746 = vadd.f32 %v2696, %v2713
    %v2747 = vadd.f32 %v2697, %v2713
    %v2748 = vadd.f32 %v2698, %v2713
    %v2749 = vadd.f32 %v2699, %v2713
    %v2750 = vadd.f32 %v2700, %v2713
    %v2751 = vadd.f32 %v2701, %v2713
    %v2752 = vadd.f32 %v2702, %v2713
    %v2753 = vadd.f32 %v2703, %v2713
    %v2754 = vadd.f32 %v2704, %v2713
    %v2755 = vadd.f32 %v2705, %v2713
    %v2756 = vadd.f32 %v2706, %v2713
    %v2757 = vadd.f32 %v2707, %v2713
    %v2758 = vadd.f32 %v2708, %v2713
    %v2759 = vadd.f32 %v2709, %v2713
    %v2760 = vadd.f32 %v2710, %v2713
    %v2761 = vadd.f32 %v2711, %v2713
    %v2762 = vmul.f32 %v2714, %v2738
    %v2763 = vmul.f32 %v2715, %v2739
    %v2764 = vmul.f32 %v2716, %v2740
    %v2765 = vmul.f32 %v2717, %v2741
    %v2766 = vmul.f32 %v2718, %v2742
    %v2767 = vmul.f32 %v2719, %v2743
    %v2768 = vmul.f32 %v2720, %v2744
    %v2769 = vmul.f32 %v2721, %v2745
    %v2770 = vmul.f32 %v2722, %v2746
    %v2771 = vmul.f32 %v2723, %v2747
    %v2772 = vmul.f32 %v2724, %v2748
    %v2773 = vmul.f32 %v2725, %v2749
    %v2774 = vmul.f32 %v2726, %v2750
    %v2775 = vmul.f32 %v2727, %v2751
    %v2776 = vmul.f32 %v2728, %v2752
    %v2777 = vmul.f32 %v2729, %v2753
    %v2778 = vmul.f32 %v2730, %v2754
    %v2779 = vmul.f32 %v2731, %v2755
    %v2780 = vmul.f32 %v2732, %v2756
    %v2781 = vmul.f32 %v2733, %v2757
    %v2782 = vmul.f32 %v2734, %v2758
    %v2783 = vmul.f32 %v2735, %v2759
    %v2784 = vmul.f32 %v2736, %v2760
    %v2785 = vmul.f32 %v2737, %v2761
    %v2810 = vrot.slane %v2763, 7
    %v2811 = vsel %vm667, %v2810, %v2762
    %v2812 = vrot.slane %v2764, 6
    %v2813 = vsel %vm670, %v2812, %v2811
    %v2814 = vrot.slane %v2765, 5
    %v2815 = vsel %vm673, %v2814, %v2813
    %v2816 = vrot.slane %v2766, 4
    %v2817 = vsel %vm676, %v2816, %v2815
    %v2818 = vrot.slane %v2767, 3
    %v2819 = vsel %vm679, %v2818, %v2817
    %v2820 = vrot.slane %v2768, 2
    %v2821 = vsel %vm682, %v2820, %v2819
    %v2822 = vrot.slane %v2769, 1
    %v2823 = vsel %vm685, %v2822, %v2821
    %v2824 = vrot.slane %v2771, 7
    %v2825 = vsel %vm667, %v2824, %v2770
    %v2826 = vrot.slane %v2772, 6
    %v2827 = vsel %vm670, %v2826, %v2825
    %v2828 = vrot.slane %v2773, 5
    %v2829 = vsel %vm673, %v2828, %v2827
    %v2830 = vrot.slane %v2774, 4
    %v2831 = vsel %vm676, %v2830, %v2829
    %v2832 = vrot.slane %v2775, 3
    %v2833 = vsel %vm679, %v2832, %v2831
    %v2834 = vrot.slane %v2776, 2
    %v2835 = vsel %vm682, %v2834, %v2833
    %v2836 = vrot.slane %v2777, 1
    %v2837 = vsel %vm685, %v2836, %v2835
    %v2838 = vrot.slane %v2779, 7
    %v2839 = vsel %vm667, %v2838, %v2778
    %v2840 = vrot.slane %v2780, 6
    %v2841 = vsel %vm670, %v2840, %v2839
    %v2842 = vrot.slane %v2781, 5
    %v2843 = vsel %vm673, %v2842, %v2841
    %v2844 = vrot.slane %v2782, 4
    %v2845 = vsel %vm676, %v2844, %v2843
    %v2846 = vrot.slane %v2783, 3
    %v2847 = vsel %vm679, %v2846, %v2845
    %v2848 = vrot.slane %v2784, 2
    %v2849 = vsel %vm682, %v2848, %v2847
    %v2850 = vrot.slane %v2785, 1
    %v2851 = vsel %vm685, %v2850, %v2849
    %v2855 = vsel %vm718, %v2823, 0.0
    %2856 = vadd.xlane.f32.xlu0 %v2855
    %v2857 = vpop.xlane.xlu0 %2856
    %v2858 = vsel %vm718, %v2837, 0.0
    %2859 = vadd.xlane.f32.xlu0 %v2858
    %v2860 = vpop.xlane.xlu0 %2859
    %v2861 = vsel %vm718, %v2851, 0.0
    %2862 = vadd.xlane.f32.xlu0 %v2861
    %v2863 = vpop.xlane.xlu0 %2862
    %v2864 = vmul.f32 %v2714, %v2714
    %v2865 = vmul.f32 %v2715, %v2715
    %v2866 = vmul.f32 %v2716, %v2716
    %v2867 = vmul.f32 %v2717, %v2717
    %v2868 = vmul.f32 %v2718, %v2718
    %v2869 = vmul.f32 %v2719, %v2719
    %v2870 = vmul.f32 %v2720, %v2720
    %v2871 = vmul.f32 %v2721, %v2721
    %v2872 = vmul.f32 %v2722, %v2722
    %v2873 = vmul.f32 %v2723, %v2723
    %v2874 = vmul.f32 %v2724, %v2724
    %v2875 = vmul.f32 %v2725, %v2725
    %v2876 = vmul.f32 %v2726, %v2726
    %v2877 = vmul.f32 %v2727, %v2727
    %v2878 = vmul.f32 %v2728, %v2728
    %v2879 = vmul.f32 %v2729, %v2729
    %v2880 = vmul.f32 %v2730, %v2730
    %v2881 = vmul.f32 %v2731, %v2731
    %v2882 = vmul.f32 %v2732, %v2732
    %v2883 = vmul.f32 %v2733, %v2733
    %v2884 = vmul.f32 %v2734, %v2734
    %v2885 = vmul.f32 %v2735, %v2735
    %v2886 = vmul.f32 %v2736, %v2736
    %v2887 = vmul.f32 %v2737, %v2737
    %v2912 = vrot.slane %v2865, 7
    %v2913 = vsel %vm667, %v2912, %v2864
    %v2914 = vrot.slane %v2866, 6
    %v2915 = vsel %vm670, %v2914, %v2913
    %v2916 = vrot.slane %v2867, 5
    %v2917 = vsel %vm673, %v2916, %v2915
    %v2918 = vrot.slane %v2868, 4
    %v2919 = vsel %vm676, %v2918, %v2917
    %v2920 = vrot.slane %v2869, 3
    %v2921 = vsel %vm679, %v2920, %v2919
    %v2922 = vrot.slane %v2870, 2
    %v2923 = vsel %vm682, %v2922, %v2921
    %v2924 = vrot.slane %v2871, 1
    %v2925 = vsel %vm685, %v2924, %v2923
    %v2926 = vrot.slane %v2873, 7
    %v2927 = vsel %vm667, %v2926, %v2872
    %v2928 = vrot.slane %v2874, 6
    %v2929 = vsel %vm670, %v2928, %v2927
    %v2930 = vrot.slane %v2875, 5
    %v2931 = vsel %vm673, %v2930, %v2929
    %v2932 = vrot.slane %v2876, 4
    %v2933 = vsel %vm676, %v2932, %v2931
    %v2934 = vrot.slane %v2877, 3
    %v2935 = vsel %vm679, %v2934, %v2933
    %v2936 = vrot.slane %v2878, 2
    %v2937 = vsel %vm682, %v2936, %v2935
    %v2938 = vrot.slane %v2879, 1
    %v2939 = vsel %vm685, %v2938, %v2937
    %v2940 = vrot.slane %v2881, 7
    %v2941 = vsel %vm667, %v2940, %v2880
    %v2942 = vrot.slane %v2882, 6
    %v2943 = vsel %vm670, %v2942, %v2941
    %v2944 = vrot.slane %v2883, 5
    %v2945 = vsel %vm673, %v2944, %v2943
    %v2946 = vrot.slane %v2884, 4
    %v2947 = vsel %vm676, %v2946, %v2945
    %v2948 = vrot.slane %v2885, 3
    %v2949 = vsel %vm679, %v2948, %v2947
    %v2950 = vrot.slane %v2886, 2
    %v2951 = vsel %vm682, %v2950, %v2949
    %v2952 = vrot.slane %v2887, 1
    %v2953 = vsel %vm685, %v2952, %v2951
    %v2957 = vsel %vm718, %v2925, 0.0
    %2958 = vadd.xlane.f32.xlu0 %v2957
    %v2959 = vpop.xlane.xlu0 %2958
    %v2960 = vsel %vm718, %v2939, 0.0
    %2961 = vadd.xlane.f32.xlu0 %v2960
    %v2962 = vpop.xlane.xlu0 %2961
    %v2963 = vsel %vm718, %v2953, 0.0
    %2964 = vadd.xlane.f32.xlu0 %v2963
    %v2965 = vpop.xlane.xlu0 %2964
    %v2966 = vmul.f32 %v2738, %v2738
    %v2967 = vmul.f32 %v2739, %v2739
    %v2968 = vmul.f32 %v2740, %v2740
    %v2969 = vmul.f32 %v2741, %v2741
    %v2970 = vmul.f32 %v2742, %v2742
    %v2971 = vmul.f32 %v2743, %v2743
    %v2972 = vmul.f32 %v2744, %v2744
    %v2973 = vmul.f32 %v2745, %v2745
    %v2974 = vmul.f32 %v2746, %v2746
    %v2975 = vmul.f32 %v2747, %v2747
    %v2976 = vmul.f32 %v2748, %v2748
    %v2977 = vmul.f32 %v2749, %v2749
    %v2978 = vmul.f32 %v2750, %v2750
    %v2979 = vmul.f32 %v2751, %v2751
    %v2980 = vmul.f32 %v2752, %v2752
    %v2981 = vmul.f32 %v2753, %v2753
    %v2982 = vmul.f32 %v2754, %v2754
    %v2983 = vmul.f32 %v2755, %v2755
    %v2984 = vmul.f32 %v2756, %v2756
    %v2985 = vmul.f32 %v2757, %v2757
    %v2986 = vmul.f32 %v2758, %v2758
    %v2987 = vmul.f32 %v2759, %v2759
    %v2988 = vmul.f32 %v2760, %v2760
    %v2989 = vmul.f32 %v2761, %v2761
    %v3014 = vrot.slane %v2967, 7
    %v3015 = vsel %vm667, %v3014, %v2966
    %v3016 = vrot.slane %v2968, 6
    %v3017 = vsel %vm670, %v3016, %v3015
    %v3018 = vrot.slane %v2969, 5
    %v3019 = vsel %vm673, %v3018, %v3017
    %v3020 = vrot.slane %v2970, 4
    %v3021 = vsel %vm676, %v3020, %v3019
    %v3022 = vrot.slane %v2971, 3
    %v3023 = vsel %vm679, %v3022, %v3021
    %v3024 = vrot.slane %v2972, 2
    %v3025 = vsel %vm682, %v3024, %v3023
    %v3026 = vrot.slane %v2973, 1
    %v3027 = vsel %vm685, %v3026, %v3025
    %v3028 = vrot.slane %v2975, 7
    %v3029 = vsel %vm667, %v3028, %v2974
    %v3030 = vrot.slane %v2976, 6
    %v3031 = vsel %vm670, %v3030, %v3029
    %v3032 = vrot.slane %v2977, 5
    %v3033 = vsel %vm673, %v3032, %v3031
    %v3034 = vrot.slane %v2978, 4
    %v3035 = vsel %vm676, %v3034, %v3033
    %v3036 = vrot.slane %v2979, 3
    %v3037 = vsel %vm679, %v3036, %v3035
    %v3038 = vrot.slane %v2980, 2
    %v3039 = vsel %vm682, %v3038, %v3037
    %v3040 = vrot.slane %v2981, 1
    %v3041 = vsel %vm685, %v3040, %v3039
    %v3042 = vrot.slane %v2983, 7
    %v3043 = vsel %vm667, %v3042, %v2982
    %v3044 = vrot.slane %v2984, 6
    %v3045 = vsel %vm670, %v3044, %v3043
    %v3046 = vrot.slane %v2985, 5
    %v3047 = vsel %vm673, %v3046, %v3045
    %v3048 = vrot.slane %v2986, 4
    %v3049 = vsel %vm676, %v3048, %v3047
    %v3050 = vrot.slane %v2987, 3
    %v3051 = vsel %vm679, %v3050, %v3049
    %v3052 = vrot.slane %v2988, 2
    %v3053 = vsel %vm682, %v3052, %v3051
    %v3054 = vrot.slane %v2989, 1
    %v3055 = vsel %vm685, %v3054, %v3053
    %v3059 = vsel %vm718, %v3027, 0.0
    %3060 = vadd.xlane.f32.xlu0 %v3059
    %v3061 = vpop.xlane.xlu0 %3060
    %v3062 = vsel %vm718, %v3041, 0.0
    %3063 = vadd.xlane.f32.xlu0 %v3062
    %v3064 = vpop.xlane.xlu0 %3063
    %v3065 = vsel %vm718, %v3055, 0.0
    %3066 = vadd.xlane.f32.xlu0 %v3065
    %v3067 = vpop.xlane.xlu0 %3066
    %v3068 = vmul.f32 %v2959, %v3061
    %v3069 = vmul.f32 %v2962, %v3064
    %v3070 = vmul.f32 %v2965, %v3067
    %v3071 = vmax.f32 %v3068, 1e-16
    %v3072 = vmax.f32 %v3069, 1e-16
    %v3073 = vmax.f32 %v3070, 1e-16
    %v3074 = vrsqrt.pop %v3071
    %v3075 = vrsqrt.pop %v3072
    %v3076 = vrsqrt.pop %v3073
    %v3077 = vmul.f32 %v2857, %v3074
    %v3078 = vmul.f32 %v2860, %v3075
    %v3079 = vmul.f32 %v2863, %v3076
    %s3080 = sld [smem:[#allocation3 + $0x10]]
    %v3081 = vstv %s3080
    %v3082 = vmul.f32 %v33, %v3081
    %v3083 = vmul.f32 %v34, %v3081
    %v3084 = vmul.f32 %v35, %v3081
    %v3085 = vmul.f32 %v36, %v3081
    %v3086 = vmul.f32 %v37, %v3081
    %v3087 = vmul.f32 %v38, %v3081
    %v3088 = vmul.f32 %v39, %v3081
    %v3089 = vmul.f32 %v40, %v3081
    %v3090 = vmul.f32 %v41, %v3081
    %v3091 = vmul.f32 %v42, %v3081
    %v3092 = vmul.f32 %v43, %v3081
    %v3093 = vmul.f32 %v44, %v3081
    %v3094 = vmul.f32 %v45, %v3081
    %v3095 = vmul.f32 %v46, %v3081
    %v3096 = vmul.f32 %v47, %v3081
    %v3097 = vmul.f32 %v48, %v3081
    %v3098 = vmul.f32 %v49, %v3081
    %v3099 = vmul.f32 %v50, %v3081
    %v3100 = vmul.f32 %v51, %v3081
    %v3101 = vmul.f32 %v52, %v3081
    %v3102 = vmul.f32 %v53, %v3081
    %v3103 = vmul.f32 %v54, %v3081
    %v3104 = vmul.f32 %v55, %v3081
    %v3105 = vmul.f32 %v56, %v3081
    %v3106 = vmul.f32 %v82, %v3081
    %v3107 = vmul.f32 %v83, %v3081
    %v3108 = vmul.f32 %v84, %v3081
    %v3109 = vmul.f32 %v85, %v3081
    %v3110 = vmul.f32 %v86, %v3081
    %v3111 = vmul.f32 %v87, %v3081
    %v3112 = vmul.f32 %v88, %v3081
    %v3113 = vmul.f32 %v89, %v3081
    %v3114 = vmul.f32 %v90, %v3081
    %v3115 = vmul.f32 %v91, %v3081
    %v3116 = vmul.f32 %v92, %v3081
    %v3117 = vmul.f32 %v93, %v3081
    %v3118 = vmul.f32 %v94, %v3081
    %v3119 = vmul.f32 %v95, %v3081
    %v3120 = vmul.f32 %v96, %v3081
    %v3121 = vmul.f32 %v97, %v3081
    %v3122 = vmul.f32 %v98, %v3081
    %v3123 = vmul.f32 %v99, %v3081
    %v3124 = vmul.f32 %v100, %v3081
    %v3125 = vmul.f32 %v101, %v3081
    %v3126 = vmul.f32 %v102, %v3081
    %v3127 = vmul.f32 %v103, %v3081
    %v3128 = vmul.f32 %v104, %v3081
    %v3129 = vmul.f32 %v105, %v3081
    %s3130 = sld [smem:[#allocation3 + $0x11]]
    %v3131 = vstv %s3130
    %v3132 = vmul.f32 %v131, %v3131
    %v3133 = vmul.f32 %v132, %v3131
    %v3134 = vmul.f32 %v133, %v3131
    %v3135 = vmul.f32 %v134, %v3131
    %v3136 = vmul.f32 %v135, %v3131
    %v3137 = vmul.f32 %v136, %v3131
    %v3138 = vmul.f32 %v137, %v3131
    %v3139 = vmul.f32 %v138, %v3131
    %v3140 = vmul.f32 %v139, %v3131
    %v3141 = vmul.f32 %v140, %v3131
    %v3142 = vmul.f32 %v141, %v3131
    %v3143 = vmul.f32 %v142, %v3131
    %v3144 = vmul.f32 %v143, %v3131
    %v3145 = vmul.f32 %v144, %v3131
    %v3146 = vmul.f32 %v145, %v3131
    %v3147 = vmul.f32 %v146, %v3131
    %v3148 = vmul.f32 %v147, %v3131
    %v3149 = vmul.f32 %v148, %v3131
    %v3150 = vmul.f32 %v149, %v3131
    %v3151 = vmul.f32 %v150, %v3131
    %v3152 = vmul.f32 %v151, %v3131
    %v3153 = vmul.f32 %v152, %v3131
    %v3154 = vmul.f32 %v153, %v3131
    %v3155 = vmul.f32 %v154, %v3131
    %v3156 = vadd.f32 %v3082, %v3132
    %v3157 = vadd.f32 %v3083, %v3133
    %v3158 = vadd.f32 %v3084, %v3134
    %v3159 = vadd.f32 %v3085, %v3135
    %v3160 = vadd.f32 %v3086, %v3136
    %v3161 = vadd.f32 %v3087, %v3137
    %v3162 = vadd.f32 %v3088, %v3138
    %v3163 = vadd.f32 %v3089, %v3139
    %v3164 = vadd.f32 %v3090, %v3140
    %v3165 = vadd.f32 %v3091, %v3141
    %v3166 = vadd.f32 %v3092, %v3142
    %v3167 = vadd.f32 %v3093, %v3143
    %v3168 = vadd.f32 %v3094, %v3144
    %v3169 = vadd.f32 %v3095, %v3145
    %v3170 = vadd.f32 %v3096, %v3146
    %v3171 = vadd.f32 %v3097, %v3147
    %v3172 = vadd.f32 %v3098, %v3148
    %v3173 = vadd.f32 %v3099, %v3149
    %v3174 = vadd.f32 %v3100, %v3150
    %v3175 = vadd.f32 %v3101, %v3151
    %v3176 = vadd.f32 %v3102, %v3152
    %v3177 = vadd.f32 %v3103, %v3153
    %v3178 = vadd.f32 %v3104, %v3154
    %v3179 = vadd.f32 %v3105, %v3155
    %v3180 = vmul.f32 %v204, %v3131
    %v3181 = vmul.f32 %v205, %v3131
    %v3182 = vmul.f32 %v206, %v3131
    %v3183 = vmul.f32 %v207, %v3131
    %v3184 = vmul.f32 %v208, %v3131
    %v3185 = vmul.f32 %v209, %v3131
    %v3186 = vmul.f32 %v210, %v3131
    %v3187 = vmul.f32 %v211, %v3131
    %v3188 = vmul.f32 %v212, %v3131
    %v3189 = vmul.f32 %v213, %v3131
    %v3190 = vmul.f32 %v214, %v3131
    %v3191 = vmul.f32 %v215, %v3131
    %v3192 = vmul.f32 %v216, %v3131
    %v3193 = vmul.f32 %v217, %v3131
    %v3194 = vmul.f32 %v218, %v3131
    %v3195 = vmul.f32 %v219, %v3131
    %v3196 = vmul.f32 %v220, %v3131
    %v3197 = vmul.f32 %v221, %v3131
    %v3198 = vmul.f32 %v222, %v3131
    %v3199 = vmul.f32 %v223, %v3131
    %v3200 = vmul.f32 %v224, %v3131
    %v3201 = vmul.f32 %v225, %v3131
    %v3202 = vmul.f32 %v226, %v3131
    %v3203 = vmul.f32 %v227, %v3131
    %v3204 = vadd.f32 %v3106, %v3180
    %v3205 = vadd.f32 %v3107, %v3181
    %v3206 = vadd.f32 %v3108, %v3182
    %v3207 = vadd.f32 %v3109, %v3183
    %v3208 = vadd.f32 %v3110, %v3184
    %v3209 = vadd.f32 %v3111, %v3185
    %v3210 = vadd.f32 %v3112, %v3186
    %v3211 = vadd.f32 %v3113, %v3187
    %v3212 = vadd.f32 %v3114, %v3188
    %v3213 = vadd.f32 %v3115, %v3189
    %v3214 = vadd.f32 %v3116, %v3190
    %v3215 = vadd.f32 %v3117, %v3191
    %v3216 = vadd.f32 %v3118, %v3192
    %v3217 = vadd.f32 %v3119, %v3193
    %v3218 = vadd.f32 %v3120, %v3194
    %v3219 = vadd.f32 %v3121, %v3195
    %v3220 = vadd.f32 %v3122, %v3196
    %v3221 = vadd.f32 %v3123, %v3197
    %v3222 = vadd.f32 %v3124, %v3198
    %v3223 = vadd.f32 %v3125, %v3199
    %v3224 = vadd.f32 %v3126, %v3200
    %v3225 = vadd.f32 %v3127, %v3201
    %v3226 = vadd.f32 %v3128, %v3202
    %v3227 = vadd.f32 %v3129, %v3203
    %s3228 = sld [smem:[#allocation3 + $0x12]]
    %v3229 = vstv %s3228
    %v3230 = vmul.f32 %v277, %v3229
    %v3231 = vmul.f32 %v278, %v3229
    %v3232 = vmul.f32 %v279, %v3229
    %v3233 = vmul.f32 %v280, %v3229
    %v3234 = vmul.f32 %v281, %v3229
    %v3235 = vmul.f32 %v282, %v3229
    %v3236 = vmul.f32 %v283, %v3229
    %v3237 = vmul.f32 %v284, %v3229
    %v3238 = vmul.f32 %v285, %v3229
    %v3239 = vmul.f32 %v286, %v3229
    %v3240 = vmul.f32 %v287, %v3229
    %v3241 = vmul.f32 %v288, %v3229
    %v3242 = vmul.f32 %v289, %v3229
    %v3243 = vmul.f32 %v290, %v3229
    %v3244 = vmul.f32 %v291, %v3229
    %v3245 = vmul.f32 %v292, %v3229
    %v3246 = vmul.f32 %v293, %v3229
    %v3247 = vmul.f32 %v294, %v3229
    %v3248 = vmul.f32 %v295, %v3229
    %v3249 = vmul.f32 %v296, %v3229
    %v3250 = vmul.f32 %v297, %v3229
    %v3251 = vmul.f32 %v298, %v3229
    %v3252 = vmul.f32 %v299, %v3229
    %v3253 = vmul.f32 %v300, %v3229
    %v3254 = vadd.f32 %v3156, %v3230
    %v3255 = vadd.f32 %v3157, %v3231
    %v3256 = vadd.f32 %v3158, %v3232
    %v3257 = vadd.f32 %v3159, %v3233
    %v3258 = vadd.f32 %v3160, %v3234
    %v3259 = vadd.f32 %v3161, %v3235
    %v3260 = vadd.f32 %v3162, %v3236
    %v3261 = vadd.f32 %v3163, %v3237
    %v3262 = vadd.f32 %v3164, %v3238
    %v3263 = vadd.f32 %v3165, %v3239
    %v3264 = vadd.f32 %v3166, %v3240
    %v3265 = vadd.f32 %v3167, %v3241
    %v3266 = vadd.f32 %v3168, %v3242
    %v3267 = vadd.f32 %v3169, %v3243
    %v3268 = vadd.f32 %v3170, %v3244
    %v3269 = vadd.f32 %v3171, %v3245
    %v3270 = vadd.f32 %v3172, %v3246
    %v3271 = vadd.f32 %v3173, %v3247
    %v3272 = vadd.f32 %v3174, %v3248
    %v3273 = vadd.f32 %v3175, %v3249
    %v3274 = vadd.f32 %v3176, %v3250
    %v3275 = vadd.f32 %v3177, %v3251
    %v3276 = vadd.f32 %v3178, %v3252
    %v3277 = vadd.f32 %v3179, %v3253
    %v3278 = vmul.f32 %v350, %v3229
    %v3279 = vmul.f32 %v351, %v3229
    %v3280 = vmul.f32 %v352, %v3229
    %v3281 = vmul.f32 %v353, %v3229
    %v3282 = vmul.f32 %v354, %v3229
    %v3283 = vmul.f32 %v355, %v3229
    %v3284 = vmul.f32 %v356, %v3229
    %v3285 = vmul.f32 %v357, %v3229
    %v3286 = vmul.f32 %v358, %v3229
    %v3287 = vmul.f32 %v359, %v3229
    %v3288 = vmul.f32 %v360, %v3229
    %v3289 = vmul.f32 %v361, %v3229
    %v3290 = vmul.f32 %v362, %v3229
    %v3291 = vmul.f32 %v363, %v3229
    %v3292 = vmul.f32 %v364, %v3229
    %v3293 = vmul.f32 %v365, %v3229
    %v3294 = vmul.f32 %v366, %v3229
    %v3295 = vmul.f32 %v367, %v3229
    %v3296 = vmul.f32 %v368, %v3229
    %v3297 = vmul.f32 %v369, %v3229
    %v3298 = vmul.f32 %v370, %v3229
    %v3299 = vmul.f32 %v371, %v3229
    %v3300 = vmul.f32 %v372, %v3229
    %v3301 = vmul.f32 %v373, %v3229
    %v3302 = vadd.f32 %v3204, %v3278
    %v3303 = vadd.f32 %v3205, %v3279
    %v3304 = vadd.f32 %v3206, %v3280
    %v3305 = vadd.f32 %v3207, %v3281
    %v3306 = vadd.f32 %v3208, %v3282
    %v3307 = vadd.f32 %v3209, %v3283
    %v3308 = vadd.f32 %v3210, %v3284
    %v3309 = vadd.f32 %v3211, %v3285
    %v3310 = vadd.f32 %v3212, %v3286
    %v3311 = vadd.f32 %v3213, %v3287
    %v3312 = vadd.f32 %v3214, %v3288
    %v3313 = vadd.f32 %v3215, %v3289
    %v3314 = vadd.f32 %v3216, %v3290
    %v3315 = vadd.f32 %v3217, %v3291
    %v3316 = vadd.f32 %v3218, %v3292
    %v3317 = vadd.f32 %v3219, %v3293
    %v3318 = vadd.f32 %v3220, %v3294
    %v3319 = vadd.f32 %v3221, %v3295
    %v3320 = vadd.f32 %v3222, %v3296
    %v3321 = vadd.f32 %v3223, %v3297
    %v3322 = vadd.f32 %v3224, %v3298
    %v3323 = vadd.f32 %v3225, %v3299
    %v3324 = vadd.f32 %v3226, %v3300
    %v3325 = vadd.f32 %v3227, %v3301
    %s3326 = sld [smem:[#allocation3 + $0x13]]
    %v3327 = vstv %s3326
    %v3328 = vmul.f32 %v423, %v3327
    %v3329 = vmul.f32 %v424, %v3327
    %v3330 = vmul.f32 %v425, %v3327
    %v3331 = vmul.f32 %v426, %v3327
    %v3332 = vmul.f32 %v427, %v3327
    %v3333 = vmul.f32 %v428, %v3327
    %v3334 = vmul.f32 %v429, %v3327
    %v3335 = vmul.f32 %v430, %v3327
    %v3336 = vmul.f32 %v431, %v3327
    %v3337 = vmul.f32 %v432, %v3327
    %v3338 = vmul.f32 %v433, %v3327
    %v3339 = vmul.f32 %v434, %v3327
    %v3340 = vmul.f32 %v435, %v3327
    %v3341 = vmul.f32 %v436, %v3327
    %v3342 = vmul.f32 %v437, %v3327
    %v3343 = vmul.f32 %v438, %v3327
    %v3344 = vmul.f32 %v439, %v3327
    %v3345 = vmul.f32 %v440, %v3327
    %v3346 = vmul.f32 %v441, %v3327
    %v3347 = vmul.f32 %v442, %v3327
    %v3348 = vmul.f32 %v443, %v3327
    %v3349 = vmul.f32 %v444, %v3327
    %v3350 = vmul.f32 %v445, %v3327
    %v3351 = vmul.f32 %v446, %v3327
    %v3352 = vadd.f32 %v3254, %v3328
    %v3353 = vadd.f32 %v3255, %v3329
    %v3354 = vadd.f32 %v3256, %v3330
    %v3355 = vadd.f32 %v3257, %v3331
    %v3356 = vadd.f32 %v3258, %v3332
    %v3357 = vadd.f32 %v3259, %v3333
    %v3358 = vadd.f32 %v3260, %v3334
    %v3359 = vadd.f32 %v3261, %v3335
    %v3360 = vadd.f32 %v3262, %v3336
    %v3361 = vadd.f32 %v3263, %v3337
    %v3362 = vadd.f32 %v3264, %v3338
    %v3363 = vadd.f32 %v3265, %v3339
    %v3364 = vadd.f32 %v3266, %v3340
    %v3365 = vadd.f32 %v3267, %v3341
    %v3366 = vadd.f32 %v3268, %v3342
    %v3367 = vadd.f32 %v3269, %v3343
    %v3368 = vadd.f32 %v3270, %v3344
    %v3369 = vadd.f32 %v3271, %v3345
    %v3370 = vadd.f32 %v3272, %v3346
    %v3371 = vadd.f32 %v3273, %v3347
    %v3372 = vadd.f32 %v3274, %v3348
    %v3373 = vadd.f32 %v3275, %v3349
    %v3374 = vadd.f32 %v3276, %v3350
    %v3375 = vadd.f32 %v3277, %v3351
    %v3376 = vmul.f32 %v496, %v3327
    %v3377 = vmul.f32 %v497, %v3327
    %v3378 = vmul.f32 %v498, %v3327
    %v3379 = vmul.f32 %v499, %v3327
    %v3380 = vmul.f32 %v500, %v3327
    %v3381 = vmul.f32 %v501, %v3327
    %v3382 = vmul.f32 %v502, %v3327
    %v3383 = vmul.f32 %v503, %v3327
    %v3384 = vmul.f32 %v504, %v3327
    %v3385 = vmul.f32 %v505, %v3327
    %v3386 = vmul.f32 %v506, %v3327
    %v3387 = vmul.f32 %v507, %v3327
    %v3388 = vmul.f32 %v508, %v3327
    %v3389 = vmul.f32 %v509, %v3327
    %v3390 = vmul.f32 %v510, %v3327
    %v3391 = vmul.f32 %v511, %v3327
    %v3392 = vmul.f32 %v512, %v3327
    %v3393 = vmul.f32 %v513, %v3327
    %v3394 = vmul.f32 %v514, %v3327
    %v3395 = vmul.f32 %v515, %v3327
    %v3396 = vmul.f32 %v516, %v3327
    %v3397 = vmul.f32 %v517, %v3327
    %v3398 = vmul.f32 %v518, %v3327
    %v3399 = vmul.f32 %v519, %v3327
    %v3400 = vadd.f32 %v3302, %v3376
    %v3401 = vadd.f32 %v3303, %v3377
    %v3402 = vadd.f32 %v3304, %v3378
    %v3403 = vadd.f32 %v3305, %v3379
    %v3404 = vadd.f32 %v3306, %v3380
    %v3405 = vadd.f32 %v3307, %v3381
    %v3406 = vadd.f32 %v3308, %v3382
    %v3407 = vadd.f32 %v3309, %v3383
    %v3408 = vadd.f32 %v3310, %v3384
    %v3409 = vadd.f32 %v3311, %v3385
    %v3410 = vadd.f32 %v3312, %v3386
    %v3411 = vadd.f32 %v3313, %v3387
    %v3412 = vadd.f32 %v3314, %v3388
    %v3413 = vadd.f32 %v3315, %v3389
    %v3414 = vadd.f32 %v3316, %v3390
    %v3415 = vadd.f32 %v3317, %v3391
    %v3416 = vadd.f32 %v3318, %v3392
    %v3417 = vadd.f32 %v3319, %v3393
    %v3418 = vadd.f32 %v3320, %v3394
    %v3419 = vadd.f32 %v3321, %v3395
    %v3420 = vadd.f32 %v3322, %v3396
    %v3421 = vadd.f32 %v3323, %v3397
    %v3422 = vadd.f32 %v3324, %v3398
    %v3423 = vadd.f32 %v3325, %v3399
    %s3424 = sld [smem:[#allocation4 + $0x4]]
    %v3425 = vstv %s3424
    %v3426 = vadd.f32 %v3352, %v3425
    %v3427 = vadd.f32 %v3353, %v3425
    %v3428 = vadd.f32 %v3354, %v3425
    %v3429 = vadd.f32 %v3355, %v3425
    %v3430 = vadd.f32 %v3356, %v3425
    %v3431 = vadd.f32 %v3357, %v3425
    %v3432 = vadd.f32 %v3358, %v3425
    %v3433 = vadd.f32 %v3359, %v3425
    %v3434 = vadd.f32 %v3360, %v3425
    %v3435 = vadd.f32 %v3361, %v3425
    %v3436 = vadd.f32 %v3362, %v3425
    %v3437 = vadd.f32 %v3363, %v3425
    %v3438 = vadd.f32 %v3364, %v3425
    %v3439 = vadd.f32 %v3365, %v3425
    %v3440 = vadd.f32 %v3366, %v3425
    %v3441 = vadd.f32 %v3367, %v3425
    %v3442 = vadd.f32 %v3368, %v3425
    %v3443 = vadd.f32 %v3369, %v3425
    %v3444 = vadd.f32 %v3370, %v3425
    %v3445 = vadd.f32 %v3371, %v3425
    %v3446 = vadd.f32 %v3372, %v3425
    %v3447 = vadd.f32 %v3373, %v3425
    %v3448 = vadd.f32 %v3374, %v3425
    %v3449 = vadd.f32 %v3375, %v3425
    %v3450 = vadd.f32 %v3400, %v3425
    %v3451 = vadd.f32 %v3401, %v3425
    %v3452 = vadd.f32 %v3402, %v3425
    %v3453 = vadd.f32 %v3403, %v3425
    %v3454 = vadd.f32 %v3404, %v3425
    %v3455 = vadd.f32 %v3405, %v3425
    %v3456 = vadd.f32 %v3406, %v3425
    %v3457 = vadd.f32 %v3407, %v3425
    %v3458 = vadd.f32 %v3408, %v3425
    %v3459 = vadd.f32 %v3409, %v3425
    %v3460 = vadd.f32 %v3410, %v3425
    %v3461 = vadd.f32 %v3411, %v3425
    %v3462 = vadd.f32 %v3412, %v3425
    %v3463 = vadd.f32 %v3413, %v3425
    %v3464 = vadd.f32 %v3414, %v3425
    %v3465 = vadd.f32 %v3415, %v3425
    %v3466 = vadd.f32 %v3416, %v3425
    %v3467 = vadd.f32 %v3417, %v3425
    %v3468 = vadd.f32 %v3418, %v3425
    %v3469 = vadd.f32 %v3419, %v3425
    %v3470 = vadd.f32 %v3420, %v3425
    %v3471 = vadd.f32 %v3421, %v3425
    %v3472 = vadd.f32 %v3422, %v3425
    %v3473 = vadd.f32 %v3423, %v3425
    %v3474 = vmul.f32 %v3426, %v3450
    %v3475 = vmul.f32 %v3427, %v3451
    %v3476 = vmul.f32 %v3428, %v3452
    %v3477 = vmul.f32 %v3429, %v3453
    %v3478 = vmul.f32 %v3430, %v3454
    %v3479 = vmul.f32 %v3431, %v3455
    %v3480 = vmul.f32 %v3432, %v3456
    %v3481 = vmul.f32 %v3433, %v3457
    %v3482 = vmul.f32 %v3434, %v3458
    %v3483 = vmul.f32 %v3435, %v3459
    %v3484 = vmul.f32 %v3436, %v3460
    %v3485 = vmul.f32 %v3437, %v3461
    %v3486 = vmul.f32 %v3438, %v3462
    %v3487 = vmul.f32 %v3439, %v3463
    %v3488 = vmul.f32 %v3440, %v3464
    %v3489 = vmul.f32 %v3441, %v3465
    %v3490 = vmul.f32 %v3442, %v3466
    %v3491 = vmul.f32 %v3443, %v3467
    %v3492 = vmul.f32 %v3444, %v3468
    %v3493 = vmul.f32 %v3445, %v3469
    %v3494 = vmul.f32 %v3446, %v3470
    %v3495 = vmul.f32 %v3447, %v3471
    %v3496 = vmul.f32 %v3448, %v3472
    %v3497 = vmul.f32 %v3449, %v3473
    %v3522 = vrot.slane %v3475, 7
    %v3523 = vsel %vm667, %v3522, %v3474
    %v3524 = vrot.slane %v3476, 6
    %v3525 = vsel %vm670, %v3524, %v3523
    %v3526 = vrot.slane %v3477, 5
    %v3527 = vsel %vm673, %v3526, %v3525
    %v3528 = vrot.slane %v3478, 4
    %v3529 = vsel %vm676, %v3528, %v3527
    %v3530 = vrot.slane %v3479, 3
    %v3531 = vsel %vm679, %v3530, %v3529
    %v3532 = vrot.slane %v3480, 2
    %v3533 = vsel %vm682, %v3532, %v3531
    %v3534 = vrot.slane %v3481, 1
    %v3535 = vsel %vm685, %v3534, %v3533
    %v3536 = vrot.slane %v3483, 7
    %v3537 = vsel %vm667, %v3536, %v3482
    %v3538 = vrot.slane %v3484, 6
    %v3539 = vsel %vm670, %v3538, %v3537
    %v3540 = vrot.slane %v3485, 5
    %v3541 = vsel %vm673, %v3540, %v3539
    %v3542 = vrot.slane %v3486, 4
    %v3543 = vsel %vm676, %v3542, %v3541
    %v3544 = vrot.slane %v3487, 3
    %v3545 = vsel %vm679, %v3544, %v3543
    %v3546 = vrot.slane %v3488, 2
    %v3547 = vsel %vm682, %v3546, %v3545
    %v3548 = vrot.slane %v3489, 1
    %v3549 = vsel %vm685, %v3548, %v3547
    %v3550 = vrot.slane %v3491, 7
    %v3551 = vsel %vm667, %v3550, %v3490
    %v3552 = vrot.slane %v3492, 6
    %v3553 = vsel %vm670, %v3552, %v3551
    %v3554 = vrot.slane %v3493, 5
    %v3555 = vsel %vm673, %v3554, %v3553
    %v3556 = vrot.slane %v3494, 4
    %v3557 = vsel %vm676, %v3556, %v3555
    %v3558 = vrot.slane %v3495, 3
    %v3559 = vsel %vm679, %v3558, %v3557
    %v3560 = vrot.slane %v3496, 2
    %v3561 = vsel %vm682, %v3560, %v3559
    %v3562 = vrot.slane %v3497, 1
    %v3563 = vsel %vm685, %v3562, %v3561
    %v3567 = vsel %vm718, %v3535, 0.0
    %3568 = vadd.xlane.f32.xlu0 %v3567
    %v3569 = vpop.xlane.xlu0 %3568
    %v3570 = vsel %vm718, %v3549, 0.0
    %3571 = vadd.xlane.f32.xlu0 %v3570
    %v3572 = vpop.xlane.xlu0 %3571
    %v3573 = vsel %vm718, %v3563, 0.0
    %3574 = vadd.xlane.f32.xlu0 %v3573
    %v3575 = vpop.xlane.xlu0 %3574
    %v3576 = vmul.f32 %v3426, %v3426
    %v3577 = vmul.f32 %v3427, %v3427
    %v3578 = vmul.f32 %v3428, %v3428
    %v3579 = vmul.f32 %v3429, %v3429
    %v3580 = vmul.f32 %v3430, %v3430
    %v3581 = vmul.f32 %v3431, %v3431
    %v3582 = vmul.f32 %v3432, %v3432
    %v3583 = vmul.f32 %v3433, %v3433
    %v3584 = vmul.f32 %v3434, %v3434
    %v3585 = vmul.f32 %v3435, %v3435
    %v3586 = vmul.f32 %v3436, %v3436
    %v3587 = vmul.f32 %v3437, %v3437
    %v3588 = vmul.f32 %v3438, %v3438
    %v3589 = vmul.f32 %v3439, %v3439
    %v3590 = vmul.f32 %v3440, %v3440
    %v3591 = vmul.f32 %v3441, %v3441
    %v3592 = vmul.f32 %v3442, %v3442
    %v3593 = vmul.f32 %v3443, %v3443
    %v3594 = vmul.f32 %v3444, %v3444
    %v3595 = vmul.f32 %v3445, %v3445
    %v3596 = vmul.f32 %v3446, %v3446
    %v3597 = vmul.f32 %v3447, %v3447
    %v3598 = vmul.f32 %v3448, %v3448
    %v3599 = vmul.f32 %v3449, %v3449
    %v3624 = vrot.slane %v3577, 7
    %v3625 = vsel %vm667, %v3624, %v3576
    %v3626 = vrot.slane %v3578, 6
    %v3627 = vsel %vm670, %v3626, %v3625
    %v3628 = vrot.slane %v3579, 5
    %v3629 = vsel %vm673, %v3628, %v3627
    %v3630 = vrot.slane %v3580, 4
    %v3631 = vsel %vm676, %v3630, %v3629
    %v3632 = vrot.slane %v3581, 3
    %v3633 = vsel %vm679, %v3632, %v3631
    %v3634 = vrot.slane %v3582, 2
    %v3635 = vsel %vm682, %v3634, %v3633
    %v3636 = vrot.slane %v3583, 1
    %v3637 = vsel %vm685, %v3636, %v3635
    %v3638 = vrot.slane %v3585, 7
    %v3639 = vsel %vm667, %v3638, %v3584
    %v3640 = vrot.slane %v3586, 6
    %v3641 = vsel %vm670, %v3640, %v3639
    %v3642 = vrot.slane %v3587, 5
    %v3643 = vsel %vm673, %v3642, %v3641
    %v3644 = vrot.slane %v3588, 4
    %v3645 = vsel %vm676, %v3644, %v3643
    %v3646 = vrot.slane %v3589, 3
    %v3647 = vsel %vm679, %v3646, %v3645
    %v3648 = vrot.slane %v3590, 2
    %v3649 = vsel %vm682, %v3648, %v3647
    %v3650 = vrot.slane %v3591, 1
    %v3651 = vsel %vm685, %v3650, %v3649
    %v3652 = vrot.slane %v3593, 7
    %v3653 = vsel %vm667, %v3652, %v3592
    %v3654 = vrot.slane %v3594, 6
    %v3655 = vsel %vm670, %v3654, %v3653
    %v3656 = vrot.slane %v3595, 5
    %v3657 = vsel %vm673, %v3656, %v3655
    %v3658 = vrot.slane %v3596, 4
    %v3659 = vsel %vm676, %v3658, %v3657
    %v3660 = vrot.slane %v3597, 3
    %v3661 = vsel %vm679, %v3660, %v3659
    %v3662 = vrot.slane %v3598, 2
    %v3663 = vsel %vm682, %v3662, %v3661
    %v3664 = vrot.slane %v3599, 1
    %v3665 = vsel %vm685, %v3664, %v3663
    %v3669 = vsel %vm718, %v3637, 0.0
    %3670 = vadd.xlane.f32.xlu0 %v3669
    %v3671 = vpop.xlane.xlu0 %3670
    %v3672 = vsel %vm718, %v3651, 0.0
    %3673 = vadd.xlane.f32.xlu0 %v3672
    %v3674 = vpop.xlane.xlu0 %3673
    %v3675 = vsel %vm718, %v3665, 0.0
    %3676 = vadd.xlane.f32.xlu0 %v3675
    %v3677 = vpop.xlane.xlu0 %3676
    %v3678 = vmul.f32 %v3450, %v3450
    %v3679 = vmul.f32 %v3451, %v3451
    %v3680 = vmul.f32 %v3452, %v3452
    %v3681 = vmul.f32 %v3453, %v3453
    %v3682 = vmul.f32 %v3454, %v3454
    %v3683 = vmul.f32 %v3455, %v3455
    %v3684 = vmul.f32 %v3456, %v3456
    %v3685 = vmul.f32 %v3457, %v3457
    %v3686 = vmul.f32 %v3458, %v3458
    %v3687 = vmul.f32 %v3459, %v3459
    %v3688 = vmul.f32 %v3460, %v3460
    %v3689 = vmul.f32 %v3461, %v3461
    %v3690 = vmul.f32 %v3462, %v3462
    %v3691 = vmul.f32 %v3463, %v3463
    %v3692 = vmul.f32 %v3464, %v3464
    %v3693 = vmul.f32 %v3465, %v3465
    %v3694 = vmul.f32 %v3466, %v3466
    %v3695 = vmul.f32 %v3467, %v3467
    %v3696 = vmul.f32 %v3468, %v3468
    %v3697 = vmul.f32 %v3469, %v3469
    %v3698 = vmul.f32 %v3470, %v3470
    %v3699 = vmul.f32 %v3471, %v3471
    %v3700 = vmul.f32 %v3472, %v3472
    %v3701 = vmul.f32 %v3473, %v3473
    %v3726 = vrot.slane %v3679, 7
    %v3727 = vsel %vm667, %v3726, %v3678
    %v3728 = vrot.slane %v3680, 6
    %v3729 = vsel %vm670, %v3728, %v3727
    %v3730 = vrot.slane %v3681, 5
    %v3731 = vsel %vm673, %v3730, %v3729
    %v3732 = vrot.slane %v3682, 4
    %v3733 = vsel %vm676, %v3732, %v3731
    %v3734 = vrot.slane %v3683, 3
    %v3735 = vsel %vm679, %v3734, %v3733
    %v3736 = vrot.slane %v3684, 2
    %v3737 = vsel %vm682, %v3736, %v3735
    %v3738 = vrot.slane %v3685, 1
    %v3739 = vsel %vm685, %v3738, %v3737
    %v3740 = vrot.slane %v3687, 7
    %v3741 = vsel %vm667, %v3740, %v3686
    %v3742 = vrot.slane %v3688, 6
    %v3743 = vsel %vm670, %v3742, %v3741
    %v3744 = vrot.slane %v3689, 5
    %v3745 = vsel %vm673, %v3744, %v3743
    %v3746 = vrot.slane %v3690, 4
    %v3747 = vsel %vm676, %v3746, %v3745
    %v3748 = vrot.slane %v3691, 3
    %v3749 = vsel %vm679, %v3748, %v3747
    %v3750 = vrot.slane %v3692, 2
    %v3751 = vsel %vm682, %v3750, %v3749
    %v3752 = vrot.slane %v3693, 1
    %v3753 = vsel %vm685, %v3752, %v3751
    %v3754 = vrot.slane %v3695, 7
    %v3755 = vsel %vm667, %v3754, %v3694
    %v3756 = vrot.slane %v3696, 6
    %v3757 = vsel %vm670, %v3756, %v3755
    %v3758 = vrot.slane %v3697, 5
    %v3759 = vsel %vm673, %v3758, %v3757
    %v3760 = vrot.slane %v3698, 4
    %v3761 = vsel %vm676, %v3760, %v3759
    %v3762 = vrot.slane %v3699, 3
    %v3763 = vsel %vm679, %v3762, %v3761
    %v3764 = vrot.slane %v3700, 2
    %v3765 = vsel %vm682, %v3764, %v3763
    %v3766 = vrot.slane %v3701, 1
    %v3767 = vsel %vm685, %v3766, %v3765
    %v3771 = vsel %vm718, %v3739, 0.0
    %3772 = vadd.xlane.f32.xlu0 %v3771
    %v3773 = vpop.xlane.xlu0 %3772
    %v3774 = vsel %vm718, %v3753, 0.0
    %3775 = vadd.xlane.f32.xlu0 %v3774
    %v3776 = vpop.xlane.xlu0 %3775
    %v3777 = vsel %vm718, %v3767, 0.0
    %3778 = vadd.xlane.f32.xlu0 %v3777
    %v3779 = vpop.xlane.xlu0 %3778
    %v3780 = vmul.f32 %v3671, %v3773
    %v3781 = vmul.f32 %v3674, %v3776
    %v3782 = vmul.f32 %v3677, %v3779
    %v3783 = vmax.f32 %v3780, 1e-16
    %v3784 = vmax.f32 %v3781, 1e-16
    %v3785 = vmax.f32 %v3782, 1e-16
    %v3786 = vrsqrt.pop %v3783
    %v3787 = vrsqrt.pop %v3784
    %v3788 = vrsqrt.pop %v3785
    %v3789 = vmul.f32 %v3569, %v3786
    %v3790 = vmul.f32 %v3572, %v3787
    %v3791 = vmul.f32 %v3575, %v3788
    %s3792 = sld [smem:[#allocation3 + $0x14]]
    %v3793 = vstv %s3792
    %v3794 = vmul.f32 %v33, %v3793
    %v3795 = vmul.f32 %v34, %v3793
    %v3796 = vmul.f32 %v35, %v3793
    %v3797 = vmul.f32 %v36, %v3793
    %v3798 = vmul.f32 %v37, %v3793
    %v3799 = vmul.f32 %v38, %v3793
    %v3800 = vmul.f32 %v39, %v3793
    %v3801 = vmul.f32 %v40, %v3793
    %v3802 = vmul.f32 %v41, %v3793
    %v3803 = vmul.f32 %v42, %v3793
    %v3804 = vmul.f32 %v43, %v3793
    %v3805 = vmul.f32 %v44, %v3793
    %v3806 = vmul.f32 %v45, %v3793
    %v3807 = vmul.f32 %v46, %v3793
    %v3808 = vmul.f32 %v47, %v3793
    %v3809 = vmul.f32 %v48, %v3793
    %v3810 = vmul.f32 %v49, %v3793
    %v3811 = vmul.f32 %v50, %v3793
    %v3812 = vmul.f32 %v51, %v3793
    %v3813 = vmul.f32 %v52, %v3793
    %v3814 = vmul.f32 %v53, %v3793
    %v3815 = vmul.f32 %v54, %v3793
    %v3816 = vmul.f32 %v55, %v3793
    %v3817 = vmul.f32 %v56, %v3793
    %v3818 = vmul.f32 %v82, %v3793
    %v3819 = vmul.f32 %v83, %v3793
    %v3820 = vmul.f32 %v84, %v3793
    %v3821 = vmul.f32 %v85, %v3793
    %v3822 = vmul.f32 %v86, %v3793
    %v3823 = vmul.f32 %v87, %v3793
    %v3824 = vmul.f32 %v88, %v3793
    %v3825 = vmul.f32 %v89, %v3793
    %v3826 = vmul.f32 %v90, %v3793
    %v3827 = vmul.f32 %v91, %v3793
    %v3828 = vmul.f32 %v92, %v3793
    %v3829 = vmul.f32 %v93, %v3793
    %v3830 = vmul.f32 %v94, %v3793
    %v3831 = vmul.f32 %v95, %v3793
    %v3832 = vmul.f32 %v96, %v3793
    %v3833 = vmul.f32 %v97, %v3793
    %v3834 = vmul.f32 %v98, %v3793
    %v3835 = vmul.f32 %v99, %v3793
    %v3836 = vmul.f32 %v100, %v3793
    %v3837 = vmul.f32 %v101, %v3793
    %v3838 = vmul.f32 %v102, %v3793
    %v3839 = vmul.f32 %v103, %v3793
    %v3840 = vmul.f32 %v104, %v3793
    %v3841 = vmul.f32 %v105, %v3793
    %s3842 = sld [smem:[#allocation3 + $0x15]]
    %v3843 = vstv %s3842
    %v3844 = vmul.f32 %v131, %v3843
    %v3845 = vmul.f32 %v132, %v3843
    %v3846 = vmul.f32 %v133, %v3843
    %v3847 = vmul.f32 %v134, %v3843
    %v3848 = vmul.f32 %v135, %v3843
    %v3849 = vmul.f32 %v136, %v3843
    %v3850 = vmul.f32 %v137, %v3843
    %v3851 = vmul.f32 %v138, %v3843
    %v3852 = vmul.f32 %v139, %v3843
    %v3853 = vmul.f32 %v140, %v3843
    %v3854 = vmul.f32 %v141, %v3843
    %v3855 = vmul.f32 %v142, %v3843
    %v3856 = vmul.f32 %v143, %v3843
    %v3857 = vmul.f32 %v144, %v3843
    %v3858 = vmul.f32 %v145, %v3843
    %v3859 = vmul.f32 %v146, %v3843
    %v3860 = vmul.f32 %v147, %v3843
    %v3861 = vmul.f32 %v148, %v3843
    %v3862 = vmul.f32 %v149, %v3843
    %v3863 = vmul.f32 %v150, %v3843
    %v3864 = vmul.f32 %v151, %v3843
    %v3865 = vmul.f32 %v152, %v3843
    %v3866 = vmul.f32 %v153, %v3843
    %v3867 = vmul.f32 %v154, %v3843
    %v3868 = vadd.f32 %v3794, %v3844
    %v3869 = vadd.f32 %v3795, %v3845
    %v3870 = vadd.f32 %v3796, %v3846
    %v3871 = vadd.f32 %v3797, %v3847
    %v3872 = vadd.f32 %v3798, %v3848
    %v3873 = vadd.f32 %v3799, %v3849
    %v3874 = vadd.f32 %v3800, %v3850
    %v3875 = vadd.f32 %v3801, %v3851
    %v3876 = vadd.f32 %v3802, %v3852
    %v3877 = vadd.f32 %v3803, %v3853
    %v3878 = vadd.f32 %v3804, %v3854
    %v3879 = vadd.f32 %v3805, %v3855
    %v3880 = vadd.f32 %v3806, %v3856
    %v3881 = vadd.f32 %v3807, %v3857
    %v3882 = vadd.f32 %v3808, %v3858
    %v3883 = vadd.f32 %v3809, %v3859
    %v3884 = vadd.f32 %v3810, %v3860
    %v3885 = vadd.f32 %v3811, %v3861
    %v3886 = vadd.f32 %v3812, %v3862
    %v3887 = vadd.f32 %v3813, %v3863
    %v3888 = vadd.f32 %v3814, %v3864
    %v3889 = vadd.f32 %v3815, %v3865
    %v3890 = vadd.f32 %v3816, %v3866
    %v3891 = vadd.f32 %v3817, %v3867
    %v3892 = vmul.f32 %v204, %v3843
    %v3893 = vmul.f32 %v205, %v3843
    %v3894 = vmul.f32 %v206, %v3843
    %v3895 = vmul.f32 %v207, %v3843
    %v3896 = vmul.f32 %v208, %v3843
    %v3897 = vmul.f32 %v209, %v3843
    %v3898 = vmul.f32 %v210, %v3843
    %v3899 = vmul.f32 %v211, %v3843
    %v3900 = vmul.f32 %v212, %v3843
    %v3901 = vmul.f32 %v213, %v3843
    %v3902 = vmul.f32 %v214, %v3843
    %v3903 = vmul.f32 %v215, %v3843
    %v3904 = vmul.f32 %v216, %v3843
    %v3905 = vmul.f32 %v217, %v3843
    %v3906 = vmul.f32 %v218, %v3843
    %v3907 = vmul.f32 %v219, %v3843
    %v3908 = vmul.f32 %v220, %v3843
    %v3909 = vmul.f32 %v221, %v3843
    %v3910 = vmul.f32 %v222, %v3843
    %v3911 = vmul.f32 %v223, %v3843
    %v3912 = vmul.f32 %v224, %v3843
    %v3913 = vmul.f32 %v225, %v3843
    %v3914 = vmul.f32 %v226, %v3843
    %v3915 = vmul.f32 %v227, %v3843
    %v3916 = vadd.f32 %v3818, %v3892
    %v3917 = vadd.f32 %v3819, %v3893
    %v3918 = vadd.f32 %v3820, %v3894
    %v3919 = vadd.f32 %v3821, %v3895
    %v3920 = vadd.f32 %v3822, %v3896
    %v3921 = vadd.f32 %v3823, %v3897
    %v3922 = vadd.f32 %v3824, %v3898
    %v3923 = vadd.f32 %v3825, %v3899
    %v3924 = vadd.f32 %v3826, %v3900
    %v3925 = vadd.f32 %v3827, %v3901
    %v3926 = vadd.f32 %v3828, %v3902
    %v3927 = vadd.f32 %v3829, %v3903
    %v3928 = vadd.f32 %v3830, %v3904
    %v3929 = vadd.f32 %v3831, %v3905
    %v3930 = vadd.f32 %v3832, %v3906
    %v3931 = vadd.f32 %v3833, %v3907
    %v3932 = vadd.f32 %v3834, %v3908
    %v3933 = vadd.f32 %v3835, %v3909
    %v3934 = vadd.f32 %v3836, %v3910
    %v3935 = vadd.f32 %v3837, %v3911
    %v3936 = vadd.f32 %v3838, %v3912
    %v3937 = vadd.f32 %v3839, %v3913
    %v3938 = vadd.f32 %v3840, %v3914
    %v3939 = vadd.f32 %v3841, %v3915
    %s3940 = sld [smem:[#allocation3 + $0x16]]
    %v3941 = vstv %s3940
    %v3942 = vmul.f32 %v277, %v3941
    %v3943 = vmul.f32 %v278, %v3941
    %v3944 = vmul.f32 %v279, %v3941
    %v3945 = vmul.f32 %v280, %v3941
    %v3946 = vmul.f32 %v281, %v3941
    %v3947 = vmul.f32 %v282, %v3941
    %v3948 = vmul.f32 %v283, %v3941
    %v3949 = vmul.f32 %v284, %v3941
    %v3950 = vmul.f32 %v285, %v3941
    %v3951 = vmul.f32 %v286, %v3941
    %v3952 = vmul.f32 %v287, %v3941
    %v3953 = vmul.f32 %v288, %v3941
    %v3954 = vmul.f32 %v289, %v3941
    %v3955 = vmul.f32 %v290, %v3941
    %v3956 = vmul.f32 %v291, %v3941
    %v3957 = vmul.f32 %v292, %v3941
    %v3958 = vmul.f32 %v293, %v3941
    %v3959 = vmul.f32 %v294, %v3941
    %v3960 = vmul.f32 %v295, %v3941
    %v3961 = vmul.f32 %v296, %v3941
    %v3962 = vmul.f32 %v297, %v3941
    %v3963 = vmul.f32 %v298, %v3941
    %v3964 = vmul.f32 %v299, %v3941
    %v3965 = vmul.f32 %v300, %v3941
    %v3966 = vadd.f32 %v3868, %v3942
    %v3967 = vadd.f32 %v3869, %v3943
    %v3968 = vadd.f32 %v3870, %v3944
    %v3969 = vadd.f32 %v3871, %v3945
    %v3970 = vadd.f32 %v3872, %v3946
    %v3971 = vadd.f32 %v3873, %v3947
    %v3972 = vadd.f32 %v3874, %v3948
    %v3973 = vadd.f32 %v3875, %v3949
    %v3974 = vadd.f32 %v3876, %v3950
    %v3975 = vadd.f32 %v3877, %v3951
    %v3976 = vadd.f32 %v3878, %v3952
    %v3977 = vadd.f32 %v3879, %v3953
    %v3978 = vadd.f32 %v3880, %v3954
    %v3979 = vadd.f32 %v3881, %v3955
    %v3980 = vadd.f32 %v3882, %v3956
    %v3981 = vadd.f32 %v3883, %v3957
    %v3982 = vadd.f32 %v3884, %v3958
    %v3983 = vadd.f32 %v3885, %v3959
    %v3984 = vadd.f32 %v3886, %v3960
    %v3985 = vadd.f32 %v3887, %v3961
    %v3986 = vadd.f32 %v3888, %v3962
    %v3987 = vadd.f32 %v3889, %v3963
    %v3988 = vadd.f32 %v3890, %v3964
    %v3989 = vadd.f32 %v3891, %v3965
    %v3990 = vmul.f32 %v350, %v3941
    %v3991 = vmul.f32 %v351, %v3941
    %v3992 = vmul.f32 %v352, %v3941
    %v3993 = vmul.f32 %v353, %v3941
    %v3994 = vmul.f32 %v354, %v3941
    %v3995 = vmul.f32 %v355, %v3941
    %v3996 = vmul.f32 %v356, %v3941
    %v3997 = vmul.f32 %v357, %v3941
    %v3998 = vmul.f32 %v358, %v3941
    %v3999 = vmul.f32 %v359, %v3941
    %v4000 = vmul.f32 %v360, %v3941
    %v4001 = vmul.f32 %v361, %v3941
    %v4002 = vmul.f32 %v362, %v3941
    %v4003 = vmul.f32 %v363, %v3941
    %v4004 = vmul.f32 %v364, %v3941
    %v4005 = vmul.f32 %v365, %v3941
    %v4006 = vmul.f32 %v366, %v3941
    %v4007 = vmul.f32 %v367, %v3941
    %v4008 = vmul.f32 %v368, %v3941
    %v4009 = vmul.f32 %v369, %v3941
    %v4010 = vmul.f32 %v370, %v3941
    %v4011 = vmul.f32 %v371, %v3941
    %v4012 = vmul.f32 %v372, %v3941
    %v4013 = vmul.f32 %v373, %v3941
    %v4014 = vadd.f32 %v3916, %v3990
    %v4015 = vadd.f32 %v3917, %v3991
    %v4016 = vadd.f32 %v3918, %v3992
    %v4017 = vadd.f32 %v3919, %v3993
    %v4018 = vadd.f32 %v3920, %v3994
    %v4019 = vadd.f32 %v3921, %v3995
    %v4020 = vadd.f32 %v3922, %v3996
    %v4021 = vadd.f32 %v3923, %v3997
    %v4022 = vadd.f32 %v3924, %v3998
    %v4023 = vadd.f32 %v3925, %v3999
    %v4024 = vadd.f32 %v3926, %v4000
    %v4025 = vadd.f32 %v3927, %v4001
    %v4026 = vadd.f32 %v3928, %v4002
    %v4027 = vadd.f32 %v3929, %v4003
    %v4028 = vadd.f32 %v3930, %v4004
    %v4029 = vadd.f32 %v3931, %v4005
    %v4030 = vadd.f32 %v3932, %v4006
    %v4031 = vadd.f32 %v3933, %v4007
    %v4032 = vadd.f32 %v3934, %v4008
    %v4033 = vadd.f32 %v3935, %v4009
    %v4034 = vadd.f32 %v3936, %v4010
    %v4035 = vadd.f32 %v3937, %v4011
    %v4036 = vadd.f32 %v3938, %v4012
    %v4037 = vadd.f32 %v3939, %v4013
    %s4038 = sld [smem:[#allocation3 + $0x17]]
    %v4039 = vstv %s4038
    %v4040 = vmul.f32 %v423, %v4039
    %v4041 = vmul.f32 %v424, %v4039
    %v4042 = vmul.f32 %v425, %v4039
    %v4043 = vmul.f32 %v426, %v4039
    %v4044 = vmul.f32 %v427, %v4039
    %v4045 = vmul.f32 %v428, %v4039
    %v4046 = vmul.f32 %v429, %v4039
    %v4047 = vmul.f32 %v430, %v4039
    %v4048 = vmul.f32 %v431, %v4039
    %v4049 = vmul.f32 %v432, %v4039
    %v4050 = vmul.f32 %v433, %v4039
    %v4051 = vmul.f32 %v434, %v4039
    %v4052 = vmul.f32 %v435, %v4039
    %v4053 = vmul.f32 %v436, %v4039
    %v4054 = vmul.f32 %v437, %v4039
    %v4055 = vmul.f32 %v438, %v4039
    %v4056 = vmul.f32 %v439, %v4039
    %v4057 = vmul.f32 %v440, %v4039
    %v4058 = vmul.f32 %v441, %v4039
    %v4059 = vmul.f32 %v442, %v4039
    %v4060 = vmul.f32 %v443, %v4039
    %v4061 = vmul.f32 %v444, %v4039
    %v4062 = vmul.f32 %v445, %v4039
    %v4063 = vmul.f32 %v446, %v4039
    %v4064 = vadd.f32 %v3966, %v4040
    %v4065 = vadd.f32 %v3967, %v4041
    %v4066 = vadd.f32 %v3968, %v4042
    %v4067 = vadd.f32 %v3969, %v4043
    %v4068 = vadd.f32 %v3970, %v4044
    %v4069 = vadd.f32 %v3971, %v4045
    %v4070 = vadd.f32 %v3972, %v4046
    %v4071 = vadd.f32 %v3973, %v4047
    %v4072 = vadd.f32 %v3974, %v4048
    %v4073 = vadd.f32 %v3975, %v4049
    %v4074 = vadd.f32 %v3976, %v4050
    %v4075 = vadd.f32 %v3977, %v4051
    %v4076 = vadd.f32 %v3978, %v4052
    %v4077 = vadd.f32 %v3979, %v4053
    %v4078 = vadd.f32 %v3980, %v4054
    %v4079 = vadd.f32 %v3981, %v4055
    %v4080 = vadd.f32 %v3982, %v4056
    %v4081 = vadd.f32 %v3983, %v4057
    %v4082 = vadd.f32 %v3984, %v4058
    %v4083 = vadd.f32 %v3985, %v4059
    %v4084 = vadd.f32 %v3986, %v4060
    %v4085 = vadd.f32 %v3987, %v4061
    %v4086 = vadd.f32 %v3988, %v4062
    %v4087 = vadd.f32 %v3989, %v4063
    %v4088 = vmul.f32 %v496, %v4039
    %v4089 = vmul.f32 %v497, %v4039
    %v4090 = vmul.f32 %v498, %v4039
    %v4091 = vmul.f32 %v499, %v4039
    %v4092 = vmul.f32 %v500, %v4039
    %v4093 = vmul.f32 %v501, %v4039
    %v4094 = vmul.f32 %v502, %v4039
    %v4095 = vmul.f32 %v503, %v4039
    %v4096 = vmul.f32 %v504, %v4039
    %v4097 = vmul.f32 %v505, %v4039
    %v4098 = vmul.f32 %v506, %v4039
    %v4099 = vmul.f32 %v507, %v4039
    %v4100 = vmul.f32 %v508, %v4039
    %v4101 = vmul.f32 %v509, %v4039
    %v4102 = vmul.f32 %v510, %v4039
    %v4103 = vmul.f32 %v511, %v4039
    %v4104 = vmul.f32 %v512, %v4039
    %v4105 = vmul.f32 %v513, %v4039
    %v4106 = vmul.f32 %v514, %v4039
    %v4107 = vmul.f32 %v515, %v4039
    %v4108 = vmul.f32 %v516, %v4039
    %v4109 = vmul.f32 %v517, %v4039
    %v4110 = vmul.f32 %v518, %v4039
    %v4111 = vmul.f32 %v519, %v4039
    %v4112 = vadd.f32 %v4014, %v4088
    %v4113 = vadd.f32 %v4015, %v4089
    %v4114 = vadd.f32 %v4016, %v4090
    %v4115 = vadd.f32 %v4017, %v4091
    %v4116 = vadd.f32 %v4018, %v4092
    %v4117 = vadd.f32 %v4019, %v4093
    %v4118 = vadd.f32 %v4020, %v4094
    %v4119 = vadd.f32 %v4021, %v4095
    %v4120 = vadd.f32 %v4022, %v4096
    %v4121 = vadd.f32 %v4023, %v4097
    %v4122 = vadd.f32 %v4024, %v4098
    %v4123 = vadd.f32 %v4025, %v4099
    %v4124 = vadd.f32 %v4026, %v4100
    %v4125 = vadd.f32 %v4027, %v4101
    %v4126 = vadd.f32 %v4028, %v4102
    %v4127 = vadd.f32 %v4029, %v4103
    %v4128 = vadd.f32 %v4030, %v4104
    %v4129 = vadd.f32 %v4031, %v4105
    %v4130 = vadd.f32 %v4032, %v4106
    %v4131 = vadd.f32 %v4033, %v4107
    %v4132 = vadd.f32 %v4034, %v4108
    %v4133 = vadd.f32 %v4035, %v4109
    %v4134 = vadd.f32 %v4036, %v4110
    %v4135 = vadd.f32 %v4037, %v4111
    %s4136 = sld [smem:[#allocation4 + $0x5]]
    %v4137 = vstv %s4136
    %v4138 = vadd.f32 %v4064, %v4137
    %v4139 = vadd.f32 %v4065, %v4137
    %v4140 = vadd.f32 %v4066, %v4137
    %v4141 = vadd.f32 %v4067, %v4137
    %v4142 = vadd.f32 %v4068, %v4137
    %v4143 = vadd.f32 %v4069, %v4137
    %v4144 = vadd.f32 %v4070, %v4137
    %v4145 = vadd.f32 %v4071, %v4137
    %v4146 = vadd.f32 %v4072, %v4137
    %v4147 = vadd.f32 %v4073, %v4137
    %v4148 = vadd.f32 %v4074, %v4137
    %v4149 = vadd.f32 %v4075, %v4137
    %v4150 = vadd.f32 %v4076, %v4137
    %v4151 = vadd.f32 %v4077, %v4137
    %v4152 = vadd.f32 %v4078, %v4137
    %v4153 = vadd.f32 %v4079, %v4137
    %v4154 = vadd.f32 %v4080, %v4137
    %v4155 = vadd.f32 %v4081, %v4137
    %v4156 = vadd.f32 %v4082, %v4137
    %v4157 = vadd.f32 %v4083, %v4137
    %v4158 = vadd.f32 %v4084, %v4137
    %v4159 = vadd.f32 %v4085, %v4137
    %v4160 = vadd.f32 %v4086, %v4137
    %v4161 = vadd.f32 %v4087, %v4137
    %v4162 = vadd.f32 %v4112, %v4137
    %v4163 = vadd.f32 %v4113, %v4137
    %v4164 = vadd.f32 %v4114, %v4137
    %v4165 = vadd.f32 %v4115, %v4137
    %v4166 = vadd.f32 %v4116, %v4137
    %v4167 = vadd.f32 %v4117, %v4137
    %v4168 = vadd.f32 %v4118, %v4137
    %v4169 = vadd.f32 %v4119, %v4137
    %v4170 = vadd.f32 %v4120, %v4137
    %v4171 = vadd.f32 %v4121, %v4137
    %v4172 = vadd.f32 %v4122, %v4137
    %v4173 = vadd.f32 %v4123, %v4137
    %v4174 = vadd.f32 %v4124, %v4137
    %v4175 = vadd.f32 %v4125, %v4137
    %v4176 = vadd.f32 %v4126, %v4137
    %v4177 = vadd.f32 %v4127, %v4137
    %v4178 = vadd.f32 %v4128, %v4137
    %v4179 = vadd.f32 %v4129, %v4137
    %v4180 = vadd.f32 %v4130, %v4137
    %v4181 = vadd.f32 %v4131, %v4137
    %v4182 = vadd.f32 %v4132, %v4137
    %v4183 = vadd.f32 %v4133, %v4137
    %v4184 = vadd.f32 %v4134, %v4137
    %v4185 = vadd.f32 %v4135, %v4137
    %v4186 = vmul.f32 %v4138, %v4162
    %v4187 = vmul.f32 %v4139, %v4163
    %v4188 = vmul.f32 %v4140, %v4164
    %v4189 = vmul.f32 %v4141, %v4165
    %v4190 = vmul.f32 %v4142, %v4166
    %v4191 = vmul.f32 %v4143, %v4167
    %v4192 = vmul.f32 %v4144, %v4168
    %v4193 = vmul.f32 %v4145, %v4169
    %v4194 = vmul.f32 %v4146, %v4170
    %v4195 = vmul.f32 %v4147, %v4171
    %v4196 = vmul.f32 %v4148, %v4172
    %v4197 = vmul.f32 %v4149, %v4173
    %v4198 = vmul.f32 %v4150, %v4174
    %v4199 = vmul.f32 %v4151, %v4175
    %v4200 = vmul.f32 %v4152, %v4176
    %v4201 = vmul.f32 %v4153, %v4177
    %v4202 = vmul.f32 %v4154, %v4178
    %v4203 = vmul.f32 %v4155, %v4179
    %v4204 = vmul.f32 %v4156, %v4180
    %v4205 = vmul.f32 %v4157, %v4181
    %v4206 = vmul.f32 %v4158, %v4182
    %v4207 = vmul.f32 %v4159, %v4183
    %v4208 = vmul.f32 %v4160, %v4184
    %v4209 = vmul.f32 %v4161, %v4185
    %v4234 = vrot.slane %v4187, 7
    %v4235 = vsel %vm667, %v4234, %v4186
    %v4236 = vrot.slane %v4188, 6
    %v4237 = vsel %vm670, %v4236, %v4235
    %v4238 = vrot.slane %v4189, 5
    %v4239 = vsel %vm673, %v4238, %v4237
    %v4240 = vrot.slane %v4190, 4
    %v4241 = vsel %vm676, %v4240, %v4239
    %v4242 = vrot.slane %v4191, 3
    %v4243 = vsel %vm679, %v4242, %v4241
    %v4244 = vrot.slane %v4192, 2
    %v4245 = vsel %vm682, %v4244, %v4243
    %v4246 = vrot.slane %v4193, 1
    %v4247 = vsel %vm685, %v4246, %v4245
    %v4248 = vrot.slane %v4195, 7
    %v4249 = vsel %vm667, %v4248, %v4194
    %v4250 = vrot.slane %v4196, 6
    %v4251 = vsel %vm670, %v4250, %v4249
    %v4252 = vrot.slane %v4197, 5
    %v4253 = vsel %vm673, %v4252, %v4251
    %v4254 = vrot.slane %v4198, 4
    %v4255 = vsel %vm676, %v4254, %v4253
    %v4256 = vrot.slane %v4199, 3
    %v4257 = vsel %vm679, %v4256, %v4255
    %v4258 = vrot.slane %v4200, 2
    %v4259 = vsel %vm682, %v4258, %v4257
    %v4260 = vrot.slane %v4201, 1
    %v4261 = vsel %vm685, %v4260, %v4259
    %v4262 = vrot.slane %v4203, 7
    %v4263 = vsel %vm667, %v4262, %v4202
    %v4264 = vrot.slane %v4204, 6
    %v4265 = vsel %vm670, %v4264, %v4263
    %v4266 = vrot.slane %v4205, 5
    %v4267 = vsel %vm673, %v4266, %v4265
    %v4268 = vrot.slane %v4206, 4
    %v4269 = vsel %vm676, %v4268, %v4267
    %v4270 = vrot.slane %v4207, 3
    %v4271 = vsel %vm679, %v4270, %v4269
    %v4272 = vrot.slane %v4208, 2
    %v4273 = vsel %vm682, %v4272, %v4271
    %v4274 = vrot.slane %v4209, 1
    %v4275 = vsel %vm685, %v4274, %v4273
    %v4279 = vsel %vm718, %v4247, 0.0
    %4280 = vadd.xlane.f32.xlu0 %v4279
    %v4281 = vpop.xlane.xlu0 %4280
    %v4282 = vsel %vm718, %v4261, 0.0
    %4283 = vadd.xlane.f32.xlu0 %v4282
    %v4284 = vpop.xlane.xlu0 %4283
    %v4285 = vsel %vm718, %v4275, 0.0
    %4286 = vadd.xlane.f32.xlu0 %v4285
    %v4287 = vpop.xlane.xlu0 %4286
    %v4288 = vmul.f32 %v4138, %v4138
    %v4289 = vmul.f32 %v4139, %v4139
    %v4290 = vmul.f32 %v4140, %v4140
    %v4291 = vmul.f32 %v4141, %v4141
    %v4292 = vmul.f32 %v4142, %v4142
    %v4293 = vmul.f32 %v4143, %v4143
    %v4294 = vmul.f32 %v4144, %v4144
    %v4295 = vmul.f32 %v4145, %v4145
    %v4296 = vmul.f32 %v4146, %v4146
    %v4297 = vmul.f32 %v4147, %v4147
    %v4298 = vmul.f32 %v4148, %v4148
    %v4299 = vmul.f32 %v4149, %v4149
    %v4300 = vmul.f32 %v4150, %v4150
    %v4301 = vmul.f32 %v4151, %v4151
    %v4302 = vmul.f32 %v4152, %v4152
    %v4303 = vmul.f32 %v4153, %v4153
    %v4304 = vmul.f32 %v4154, %v4154
    %v4305 = vmul.f32 %v4155, %v4155
    %v4306 = vmul.f32 %v4156, %v4156
    %v4307 = vmul.f32 %v4157, %v4157
    %v4308 = vmul.f32 %v4158, %v4158
    %v4309 = vmul.f32 %v4159, %v4159
    %v4310 = vmul.f32 %v4160, %v4160
    %v4311 = vmul.f32 %v4161, %v4161
    %v4336 = vrot.slane %v4289, 7
    %v4337 = vsel %vm667, %v4336, %v4288
    %v4338 = vrot.slane %v4290, 6
    %v4339 = vsel %vm670, %v4338, %v4337
    %v4340 = vrot.slane %v4291, 5
    %v4341 = vsel %vm673, %v4340, %v4339
    %v4342 = vrot.slane %v4292, 4
    %v4343 = vsel %vm676, %v4342, %v4341
    %v4344 = vrot.slane %v4293, 3
    %v4345 = vsel %vm679, %v4344, %v4343
    %v4346 = vrot.slane %v4294, 2
    %v4347 = vsel %vm682, %v4346, %v4345
    %v4348 = vrot.slane %v4295, 1
    %v4349 = vsel %vm685, %v4348, %v4347
    %v4350 = vrot.slane %v4297, 7
    %v4351 = vsel %vm667, %v4350, %v4296
    %v4352 = vrot.slane %v4298, 6
    %v4353 = vsel %vm670, %v4352, %v4351
    %v4354 = vrot.slane %v4299, 5
    %v4355 = vsel %vm673, %v4354, %v4353
    %v4356 = vrot.slane %v4300, 4
    %v4357 = vsel %vm676, %v4356, %v4355
    %v4358 = vrot.slane %v4301, 3
    %v4359 = vsel %vm679, %v4358, %v4357
    %v4360 = vrot.slane %v4302, 2
    %v4361 = vsel %vm682, %v4360, %v4359
    %v4362 = vrot.slane %v4303, 1
    %v4363 = vsel %vm685, %v4362, %v4361
    %v4364 = vrot.slane %v4305, 7
    %v4365 = vsel %vm667, %v4364, %v4304
    %v4366 = vrot.slane %v4306, 6
    %v4367 = vsel %vm670, %v4366, %v4365
    %v4368 = vrot.slane %v4307, 5
    %v4369 = vsel %vm673, %v4368, %v4367
    %v4370 = vrot.slane %v4308, 4
    %v4371 = vsel %vm676, %v4370, %v4369
    %v4372 = vrot.slane %v4309, 3
    %v4373 = vsel %vm679, %v4372, %v4371
    %v4374 = vrot.slane %v4310, 2
    %v4375 = vsel %vm682, %v4374, %v4373
    %v4376 = vrot.slane %v4311, 1
    %v4377 = vsel %vm685, %v4376, %v4375
    %v4381 = vsel %vm718, %v4349, 0.0
    %4382 = vadd.xlane.f32.xlu0 %v4381
    %v4383 = vpop.xlane.xlu0 %4382
    %v4384 = vsel %vm718, %v4363, 0.0
    %4385 = vadd.xlane.f32.xlu0 %v4384
    %v4386 = vpop.xlane.xlu0 %4385
    %v4387 = vsel %vm718, %v4377, 0.0
    %4388 = vadd.xlane.f32.xlu0 %v4387
    %v4389 = vpop.xlane.xlu0 %4388
    %v4390 = vmul.f32 %v4162, %v4162
    %v4391 = vmul.f32 %v4163, %v4163
    %v4392 = vmul.f32 %v4164, %v4164
    %v4393 = vmul.f32 %v4165, %v4165
    %v4394 = vmul.f32 %v4166, %v4166
    %v4395 = vmul.f32 %v4167, %v4167
    %v4396 = vmul.f32 %v4168, %v4168
    %v4397 = vmul.f32 %v4169, %v4169
    %v4398 = vmul.f32 %v4170, %v4170
    %v4399 = vmul.f32 %v4171, %v4171
    %v4400 = vmul.f32 %v4172, %v4172
    %v4401 = vmul.f32 %v4173, %v4173
    %v4402 = vmul.f32 %v4174, %v4174
    %v4403 = vmul.f32 %v4175, %v4175
    %v4404 = vmul.f32 %v4176, %v4176
    %v4405 = vmul.f32 %v4177, %v4177
    %v4406 = vmul.f32 %v4178, %v4178
    %v4407 = vmul.f32 %v4179, %v4179
    %v4408 = vmul.f32 %v4180, %v4180
    %v4409 = vmul.f32 %v4181, %v4181
    %v4410 = vmul.f32 %v4182, %v4182
    %v4411 = vmul.f32 %v4183, %v4183
    %v4412 = vmul.f32 %v4184, %v4184
    %v4413 = vmul.f32 %v4185, %v4185
    %v4438 = vrot.slane %v4391, 7
    %v4439 = vsel %vm667, %v4438, %v4390
    %v4440 = vrot.slane %v4392, 6
    %v4441 = vsel %vm670, %v4440, %v4439
    %v4442 = vrot.slane %v4393, 5
    %v4443 = vsel %vm673, %v4442, %v4441
    %v4444 = vrot.slane %v4394, 4
    %v4445 = vsel %vm676, %v4444, %v4443
    %v4446 = vrot.slane %v4395, 3
    %v4447 = vsel %vm679, %v4446, %v4445
    %v4448 = vrot.slane %v4396, 2
    %v4449 = vsel %vm682, %v4448, %v4447
    %v4450 = vrot.slane %v4397, 1
    %v4451 = vsel %vm685, %v4450, %v4449
    %v4452 = vrot.slane %v4399, 7
    %v4453 = vsel %vm667, %v4452, %v4398
    %v4454 = vrot.slane %v4400, 6
    %v4455 = vsel %vm670, %v4454, %v4453
    %v4456 = vrot.slane %v4401, 5
    %v4457 = vsel %vm673, %v4456, %v4455
    %v4458 = vrot.slane %v4402, 4
    %v4459 = vsel %vm676, %v4458, %v4457
    %v4460 = vrot.slane %v4403, 3
    %v4461 = vsel %vm679, %v4460, %v4459
    %v4462 = vrot.slane %v4404, 2
    %v4463 = vsel %vm682, %v4462, %v4461
    %v4464 = vrot.slane %v4405, 1
    %v4465 = vsel %vm685, %v4464, %v4463
    %v4466 = vrot.slane %v4407, 7
    %v4467 = vsel %vm667, %v4466, %v4406
    %v4468 = vrot.slane %v4408, 6
    %v4469 = vsel %vm670, %v4468, %v4467
    %v4470 = vrot.slane %v4409, 5
    %v4471 = vsel %vm673, %v4470, %v4469
    %v4472 = vrot.slane %v4410, 4
    %v4473 = vsel %vm676, %v4472, %v4471
    %v4474 = vrot.slane %v4411, 3
    %v4475 = vsel %vm679, %v4474, %v4473
    %v4476 = vrot.slane %v4412, 2
    %v4477 = vsel %vm682, %v4476, %v4475
    %v4478 = vrot.slane %v4413, 1
    %v4479 = vsel %vm685, %v4478, %v4477
    %v4483 = vsel %vm718, %v4451, 0.0
    %4484 = vadd.xlane.f32.xlu0 %v4483
    %v4485 = vpop.xlane.xlu0 %4484
    %v4486 = vsel %vm718, %v4465, 0.0
    %4487 = vadd.xlane.f32.xlu0 %v4486
    %v4488 = vpop.xlane.xlu0 %4487
    %v4489 = vsel %vm718, %v4479, 0.0
    %4490 = vadd.xlane.f32.xlu0 %v4489
    %v4491 = vpop.xlane.xlu0 %4490
    %v4492 = vmul.f32 %v4383, %v4485
    %v4493 = vmul.f32 %v4386, %v4488
    %v4494 = vmul.f32 %v4389, %v4491
    %v4495 = vmax.f32 %v4492, 1e-16
    %v4496 = vmax.f32 %v4493, 1e-16
    %v4497 = vmax.f32 %v4494, 1e-16
    %v4498 = vrsqrt.pop %v4495
    %v4499 = vrsqrt.pop %v4496
    %v4500 = vrsqrt.pop %v4497
    %v4501 = vmul.f32 %v4281, %v4498
    %v4502 = vmul.f32 %v4284, %v4499
    %v4503 = vmul.f32 %v4287, %v4500
    %s4504 = sld [smem:[#allocation3 + $0x18]]
    %v4505 = vstv %s4504
    %v4506 = vmul.f32 %v33, %v4505
    %v4507 = vmul.f32 %v34, %v4505
    %v4508 = vmul.f32 %v35, %v4505
    %v4509 = vmul.f32 %v36, %v4505
    %v4510 = vmul.f32 %v37, %v4505
    %v4511 = vmul.f32 %v38, %v4505
    %v4512 = vmul.f32 %v39, %v4505
    %v4513 = vmul.f32 %v40, %v4505
    %v4514 = vmul.f32 %v41, %v4505
    %v4515 = vmul.f32 %v42, %v4505
    %v4516 = vmul.f32 %v43, %v4505
    %v4517 = vmul.f32 %v44, %v4505
    %v4518 = vmul.f32 %v45, %v4505
    %v4519 = vmul.f32 %v46, %v4505
    %v4520 = vmul.f32 %v47, %v4505
    %v4521 = vmul.f32 %v48, %v4505
    %v4522 = vmul.f32 %v49, %v4505
    %v4523 = vmul.f32 %v50, %v4505
    %v4524 = vmul.f32 %v51, %v4505
    %v4525 = vmul.f32 %v52, %v4505
    %v4526 = vmul.f32 %v53, %v4505
    %v4527 = vmul.f32 %v54, %v4505
    %v4528 = vmul.f32 %v55, %v4505
    %v4529 = vmul.f32 %v56, %v4505
    %v4530 = vmul.f32 %v82, %v4505
    %v4531 = vmul.f32 %v83, %v4505
    %v4532 = vmul.f32 %v84, %v4505
    %v4533 = vmul.f32 %v85, %v4505
    %v4534 = vmul.f32 %v86, %v4505
    %v4535 = vmul.f32 %v87, %v4505
    %v4536 = vmul.f32 %v88, %v4505
    %v4537 = vmul.f32 %v89, %v4505
    %v4538 = vmul.f32 %v90, %v4505
    %v4539 = vmul.f32 %v91, %v4505
    %v4540 = vmul.f32 %v92, %v4505
    %v4541 = vmul.f32 %v93, %v4505
    %v4542 = vmul.f32 %v94, %v4505
    %v4543 = vmul.f32 %v95, %v4505
    %v4544 = vmul.f32 %v96, %v4505
    %v4545 = vmul.f32 %v97, %v4505
    %v4546 = vmul.f32 %v98, %v4505
    %v4547 = vmul.f32 %v99, %v4505
    %v4548 = vmul.f32 %v100, %v4505
    %v4549 = vmul.f32 %v101, %v4505
    %v4550 = vmul.f32 %v102, %v4505
    %v4551 = vmul.f32 %v103, %v4505
    %v4552 = vmul.f32 %v104, %v4505
    %v4553 = vmul.f32 %v105, %v4505
    %s4554 = sld [smem:[#allocation3 + $0x19]]
    %v4555 = vstv %s4554
    %v4556 = vmul.f32 %v131, %v4555
    %v4557 = vmul.f32 %v132, %v4555
    %v4558 = vmul.f32 %v133, %v4555
    %v4559 = vmul.f32 %v134, %v4555
    %v4560 = vmul.f32 %v135, %v4555
    %v4561 = vmul.f32 %v136, %v4555
    %v4562 = vmul.f32 %v137, %v4555
    %v4563 = vmul.f32 %v138, %v4555
    %v4564 = vmul.f32 %v139, %v4555
    %v4565 = vmul.f32 %v140, %v4555
    %v4566 = vmul.f32 %v141, %v4555
    %v4567 = vmul.f32 %v142, %v4555
    %v4568 = vmul.f32 %v143, %v4555
    %v4569 = vmul.f32 %v144, %v4555
    %v4570 = vmul.f32 %v145, %v4555
    %v4571 = vmul.f32 %v146, %v4555
    %v4572 = vmul.f32 %v147, %v4555
    %v4573 = vmul.f32 %v148, %v4555
    %v4574 = vmul.f32 %v149, %v4555
    %v4575 = vmul.f32 %v150, %v4555
    %v4576 = vmul.f32 %v151, %v4555
    %v4577 = vmul.f32 %v152, %v4555
    %v4578 = vmul.f32 %v153, %v4555
    %v4579 = vmul.f32 %v154, %v4555
    %v4580 = vadd.f32 %v4506, %v4556
    %v4581 = vadd.f32 %v4507, %v4557
    %v4582 = vadd.f32 %v4508, %v4558
    %v4583 = vadd.f32 %v4509, %v4559
    %v4584 = vadd.f32 %v4510, %v4560
    %v4585 = vadd.f32 %v4511, %v4561
    %v4586 = vadd.f32 %v4512, %v4562
    %v4587 = vadd.f32 %v4513, %v4563
    %v4588 = vadd.f32 %v4514, %v4564
    %v4589 = vadd.f32 %v4515, %v4565
    %v4590 = vadd.f32 %v4516, %v4566
    %v4591 = vadd.f32 %v4517, %v4567
    %v4592 = vadd.f32 %v4518, %v4568
    %v4593 = vadd.f32 %v4519, %v4569
    %v4594 = vadd.f32 %v4520, %v4570
    %v4595 = vadd.f32 %v4521, %v4571
    %v4596 = vadd.f32 %v4522, %v4572
    %v4597 = vadd.f32 %v4523, %v4573
    %v4598 = vadd.f32 %v4524, %v4574
    %v4599 = vadd.f32 %v4525, %v4575
    %v4600 = vadd.f32 %v4526, %v4576
    %v4601 = vadd.f32 %v4527, %v4577
    %v4602 = vadd.f32 %v4528, %v4578
    %v4603 = vadd.f32 %v4529, %v4579
    %v4604 = vmul.f32 %v204, %v4555
    %v4605 = vmul.f32 %v205, %v4555
    %v4606 = vmul.f32 %v206, %v4555
    %v4607 = vmul.f32 %v207, %v4555
    %v4608 = vmul.f32 %v208, %v4555
    %v4609 = vmul.f32 %v209, %v4555
    %v4610 = vmul.f32 %v210, %v4555
    %v4611 = vmul.f32 %v211, %v4555
    %v4612 = vmul.f32 %v212, %v4555
    %v4613 = vmul.f32 %v213, %v4555
    %v4614 = vmul.f32 %v214, %v4555
    %v4615 = vmul.f32 %v215, %v4555
    %v4616 = vmul.f32 %v216, %v4555
    %v4617 = vmul.f32 %v217, %v4555
    %v4618 = vmul.f32 %v218, %v4555
    %v4619 = vmul.f32 %v219, %v4555
    %v4620 = vmul.f32 %v220, %v4555
    %v4621 = vmul.f32 %v221, %v4555
    %v4622 = vmul.f32 %v222, %v4555
    %v4623 = vmul.f32 %v223, %v4555
    %v4624 = vmul.f32 %v224, %v4555
    %v4625 = vmul.f32 %v225, %v4555
    %v4626 = vmul.f32 %v226, %v4555
    %v4627 = vmul.f32 %v227, %v4555
    %v4628 = vadd.f32 %v4530, %v4604
    %v4629 = vadd.f32 %v4531, %v4605
    %v4630 = vadd.f32 %v4532, %v4606
    %v4631 = vadd.f32 %v4533, %v4607
    %v4632 = vadd.f32 %v4534, %v4608
    %v4633 = vadd.f32 %v4535, %v4609
    %v4634 = vadd.f32 %v4536, %v4610
    %v4635 = vadd.f32 %v4537, %v4611
    %v4636 = vadd.f32 %v4538, %v4612
    %v4637 = vadd.f32 %v4539, %v4613
    %v4638 = vadd.f32 %v4540, %v4614
    %v4639 = vadd.f32 %v4541, %v4615
    %v4640 = vadd.f32 %v4542, %v4616
    %v4641 = vadd.f32 %v4543, %v4617
    %v4642 = vadd.f32 %v4544, %v4618
    %v4643 = vadd.f32 %v4545, %v4619
    %v4644 = vadd.f32 %v4546, %v4620
    %v4645 = vadd.f32 %v4547, %v4621
    %v4646 = vadd.f32 %v4548, %v4622
    %v4647 = vadd.f32 %v4549, %v4623
    %v4648 = vadd.f32 %v4550, %v4624
    %v4649 = vadd.f32 %v4551, %v4625
    %v4650 = vadd.f32 %v4552, %v4626
    %v4651 = vadd.f32 %v4553, %v4627
    %s4652 = sld [smem:[#allocation3 + $0x1a]]
    %v4653 = vstv %s4652
    %v4654 = vmul.f32 %v277, %v4653
    %v4655 = vmul.f32 %v278, %v4653
    %v4656 = vmul.f32 %v279, %v4653
    %v4657 = vmul.f32 %v280, %v4653
    %v4658 = vmul.f32 %v281, %v4653
    %v4659 = vmul.f32 %v282, %v4653
    %v4660 = vmul.f32 %v283, %v4653
    %v4661 = vmul.f32 %v284, %v4653
    %v4662 = vmul.f32 %v285, %v4653
    %v4663 = vmul.f32 %v286, %v4653
    %v4664 = vmul.f32 %v287, %v4653
    %v4665 = vmul.f32 %v288, %v4653
    %v4666 = vmul.f32 %v289, %v4653
    %v4667 = vmul.f32 %v290, %v4653
    %v4668 = vmul.f32 %v291, %v4653
    %v4669 = vmul.f32 %v292, %v4653
    %v4670 = vmul.f32 %v293, %v4653
    %v4671 = vmul.f32 %v294, %v4653
    %v4672 = vmul.f32 %v295, %v4653
    %v4673 = vmul.f32 %v296, %v4653
    %v4674 = vmul.f32 %v297, %v4653
    %v4675 = vmul.f32 %v298, %v4653
    %v4676 = vmul.f32 %v299, %v4653
    %v4677 = vmul.f32 %v300, %v4653
    %v4678 = vadd.f32 %v4580, %v4654
    %v4679 = vadd.f32 %v4581, %v4655
    %v4680 = vadd.f32 %v4582, %v4656
    %v4681 = vadd.f32 %v4583, %v4657
    %v4682 = vadd.f32 %v4584, %v4658
    %v4683 = vadd.f32 %v4585, %v4659
    %v4684 = vadd.f32 %v4586, %v4660
    %v4685 = vadd.f32 %v4587, %v4661
    %v4686 = vadd.f32 %v4588, %v4662
    %v4687 = vadd.f32 %v4589, %v4663
    %v4688 = vadd.f32 %v4590, %v4664
    %v4689 = vadd.f32 %v4591, %v4665
    %v4690 = vadd.f32 %v4592, %v4666
    %v4691 = vadd.f32 %v4593, %v4667
    %v4692 = vadd.f32 %v4594, %v4668
    %v4693 = vadd.f32 %v4595, %v4669
    %v4694 = vadd.f32 %v4596, %v4670
    %v4695 = vadd.f32 %v4597, %v4671
    %v4696 = vadd.f32 %v4598, %v4672
    %v4697 = vadd.f32 %v4599, %v4673
    %v4698 = vadd.f32 %v4600, %v4674
    %v4699 = vadd.f32 %v4601, %v4675
    %v4700 = vadd.f32 %v4602, %v4676
    %v4701 = vadd.f32 %v4603, %v4677
    %v4702 = vmul.f32 %v350, %v4653
    %v4703 = vmul.f32 %v351, %v4653
    %v4704 = vmul.f32 %v352, %v4653
    %v4705 = vmul.f32 %v353, %v4653
    %v4706 = vmul.f32 %v354, %v4653
    %v4707 = vmul.f32 %v355, %v4653
    %v4708 = vmul.f32 %v356, %v4653
    %v4709 = vmul.f32 %v357, %v4653
    %v4710 = vmul.f32 %v358, %v4653
    %v4711 = vmul.f32 %v359, %v4653
    %v4712 = vmul.f32 %v360, %v4653
    %v4713 = vmul.f32 %v361, %v4653
    %v4714 = vmul.f32 %v362, %v4653
    %v4715 = vmul.f32 %v363, %v4653
    %v4716 = vmul.f32 %v364, %v4653
    %v4717 = vmul.f32 %v365, %v4653
    %v4718 = vmul.f32 %v366, %v4653
    %v4719 = vmul.f32 %v367, %v4653
    %v4720 = vmul.f32 %v368, %v4653
    %v4721 = vmul.f32 %v369, %v4653
    %v4722 = vmul.f32 %v370, %v4653
    %v4723 = vmul.f32 %v371, %v4653
    %v4724 = vmul.f32 %v372, %v4653
    %v4725 = vmul.f32 %v373, %v4653
    %v4726 = vadd.f32 %v4628, %v4702
    %v4727 = vadd.f32 %v4629, %v4703
    %v4728 = vadd.f32 %v4630, %v4704
    %v4729 = vadd.f32 %v4631, %v4705
    %v4730 = vadd.f32 %v4632, %v4706
    %v4731 = vadd.f32 %v4633, %v4707
    %v4732 = vadd.f32 %v4634, %v4708
    %v4733 = vadd.f32 %v4635, %v4709
    %v4734 = vadd.f32 %v4636, %v4710
    %v4735 = vadd.f32 %v4637, %v4711
    %v4736 = vadd.f32 %v4638, %v4712
    %v4737 = vadd.f32 %v4639, %v4713
    %v4738 = vadd.f32 %v4640, %v4714
    %v4739 = vadd.f32 %v4641, %v4715
    %v4740 = vadd.f32 %v4642, %v4716
    %v4741 = vadd.f32 %v4643, %v4717
    %v4742 = vadd.f32 %v4644, %v4718
    %v4743 = vadd.f32 %v4645, %v4719
    %v4744 = vadd.f32 %v4646, %v4720
    %v4745 = vadd.f32 %v4647, %v4721
    %v4746 = vadd.f32 %v4648, %v4722
    %v4747 = vadd.f32 %v4649, %v4723
    %v4748 = vadd.f32 %v4650, %v4724
    %v4749 = vadd.f32 %v4651, %v4725
    %s4750 = sld [smem:[#allocation3 + $0x1b]]
    %v4751 = vstv %s4750
    %v4752 = vmul.f32 %v423, %v4751
    %v4753 = vmul.f32 %v424, %v4751
    %v4754 = vmul.f32 %v425, %v4751
    %v4755 = vmul.f32 %v426, %v4751
    %v4756 = vmul.f32 %v427, %v4751
    %v4757 = vmul.f32 %v428, %v4751
    %v4758 = vmul.f32 %v429, %v4751
    %v4759 = vmul.f32 %v430, %v4751
    %v4760 = vmul.f32 %v431, %v4751
    %v4761 = vmul.f32 %v432, %v4751
    %v4762 = vmul.f32 %v433, %v4751
    %v4763 = vmul.f32 %v434, %v4751
    %v4764 = vmul.f32 %v435, %v4751
    %v4765 = vmul.f32 %v436, %v4751
    %v4766 = vmul.f32 %v437, %v4751
    %v4767 = vmul.f32 %v438, %v4751
    %v4768 = vmul.f32 %v439, %v4751
    %v4769 = vmul.f32 %v440, %v4751
    %v4770 = vmul.f32 %v441, %v4751
    %v4771 = vmul.f32 %v442, %v4751
    %v4772 = vmul.f32 %v443, %v4751
    %v4773 = vmul.f32 %v444, %v4751
    %v4774 = vmul.f32 %v445, %v4751
    %v4775 = vmul.f32 %v446, %v4751
    %v4776 = vadd.f32 %v4678, %v4752
    %v4777 = vadd.f32 %v4679, %v4753
    %v4778 = vadd.f32 %v4680, %v4754
    %v4779 = vadd.f32 %v4681, %v4755
    %v4780 = vadd.f32 %v4682, %v4756
    %v4781 = vadd.f32 %v4683, %v4757
    %v4782 = vadd.f32 %v4684, %v4758
    %v4783 = vadd.f32 %v4685, %v4759
    %v4784 = vadd.f32 %v4686, %v4760
    %v4785 = vadd.f32 %v4687, %v4761
    %v4786 = vadd.f32 %v4688, %v4762
    %v4787 = vadd.f32 %v4689, %v4763
    %v4788 = vadd.f32 %v4690, %v4764
    %v4789 = vadd.f32 %v4691, %v4765
    %v4790 = vadd.f32 %v4692, %v4766
    %v4791 = vadd.f32 %v4693, %v4767
    %v4792 = vadd.f32 %v4694, %v4768
    %v4793 = vadd.f32 %v4695, %v4769
    %v4794 = vadd.f32 %v4696, %v4770
    %v4795 = vadd.f32 %v4697, %v4771
    %v4796 = vadd.f32 %v4698, %v4772
    %v4797 = vadd.f32 %v4699, %v4773
    %v4798 = vadd.f32 %v4700, %v4774
    %v4799 = vadd.f32 %v4701, %v4775
    %v4800 = vmul.f32 %v496, %v4751
    %v4801 = vmul.f32 %v497, %v4751
    %v4802 = vmul.f32 %v498, %v4751
    %v4803 = vmul.f32 %v499, %v4751
    %v4804 = vmul.f32 %v500, %v4751
    %v4805 = vmul.f32 %v501, %v4751
    %v4806 = vmul.f32 %v502, %v4751
    %v4807 = vmul.f32 %v503, %v4751
    %v4808 = vmul.f32 %v504, %v4751
    %v4809 = vmul.f32 %v505, %v4751
    %v4810 = vmul.f32 %v506, %v4751
    %v4811 = vmul.f32 %v507, %v4751
    %v4812 = vmul.f32 %v508, %v4751
    %v4813 = vmul.f32 %v509, %v4751
    %v4814 = vmul.f32 %v510, %v4751
    %v4815 = vmul.f32 %v511, %v4751
    %v4816 = vmul.f32 %v512, %v4751
    %v4817 = vmul.f32 %v513, %v4751
    %v4818 = vmul.f32 %v514, %v4751
    %v4819 = vmul.f32 %v515, %v4751
    %v4820 = vmul.f32 %v516, %v4751
    %v4821 = vmul.f32 %v517, %v4751
    %v4822 = vmul.f32 %v518, %v4751
    %v4823 = vmul.f32 %v519, %v4751
    %v4824 = vadd.f32 %v4726, %v4800
    %v4825 = vadd.f32 %v4727, %v4801
    %v4826 = vadd.f32 %v4728, %v4802
    %v4827 = vadd.f32 %v4729, %v4803
    %v4828 = vadd.f32 %v4730, %v4804
    %v4829 = vadd.f32 %v4731, %v4805
    %v4830 = vadd.f32 %v4732, %v4806
    %v4831 = vadd.f32 %v4733, %v4807
    %v4832 = vadd.f32 %v4734, %v4808
    %v4833 = vadd.f32 %v4735, %v4809
    %v4834 = vadd.f32 %v4736, %v4810
    %v4835 = vadd.f32 %v4737, %v4811
    %v4836 = vadd.f32 %v4738, %v4812
    %v4837 = vadd.f32 %v4739, %v4813
    %v4838 = vadd.f32 %v4740, %v4814
    %v4839 = vadd.f32 %v4741, %v4815
    %v4840 = vadd.f32 %v4742, %v4816
    %v4841 = vadd.f32 %v4743, %v4817
    %v4842 = vadd.f32 %v4744, %v4818
    %v4843 = vadd.f32 %v4745, %v4819
    %v4844 = vadd.f32 %v4746, %v4820
    %v4845 = vadd.f32 %v4747, %v4821
    %v4846 = vadd.f32 %v4748, %v4822
    %v4847 = vadd.f32 %v4749, %v4823
    %s4848 = sld [smem:[#allocation4 + $0x6]]
    %v4849 = vstv %s4848
    %v4850 = vadd.f32 %v4776, %v4849
    %v4851 = vadd.f32 %v4777, %v4849
    %v4852 = vadd.f32 %v4778, %v4849
    %v4853 = vadd.f32 %v4779, %v4849
    %v4854 = vadd.f32 %v4780, %v4849
    %v4855 = vadd.f32 %v4781, %v4849
    %v4856 = vadd.f32 %v4782, %v4849
    %v4857 = vadd.f32 %v4783, %v4849
    %v4858 = vadd.f32 %v4784, %v4849
    %v4859 = vadd.f32 %v4785, %v4849
    %v4860 = vadd.f32 %v4786, %v4849
    %v4861 = vadd.f32 %v4787, %v4849
    %v4862 = vadd.f32 %v4788, %v4849
    %v4863 = vadd.f32 %v4789, %v4849
    %v4864 = vadd.f32 %v4790, %v4849
    %v4865 = vadd.f32 %v4791, %v4849
    %v4866 = vadd.f32 %v4792, %v4849
    %v4867 = vadd.f32 %v4793, %v4849
    %v4868 = vadd.f32 %v4794, %v4849
    %v4869 = vadd.f32 %v4795, %v4849
    %v4870 = vadd.f32 %v4796, %v4849
    %v4871 = vadd.f32 %v4797, %v4849
    %v4872 = vadd.f32 %v4798, %v4849
    %v4873 = vadd.f32 %v4799, %v4849
    %v4874 = vadd.f32 %v4824, %v4849
    %v4875 = vadd.f32 %v4825, %v4849
    %v4876 = vadd.f32 %v4826, %v4849
    %v4877 = vadd.f32 %v4827, %v4849
    %v4878 = vadd.f32 %v4828, %v4849
    %v4879 = vadd.f32 %v4829, %v4849
    %v4880 = vadd.f32 %v4830, %v4849
    %v4881 = vadd.f32 %v4831, %v4849
    %v4882 = vadd.f32 %v4832, %v4849
    %v4883 = vadd.f32 %v4833, %v4849
    %v4884 = vadd.f32 %v4834, %v4849
    %v4885 = vadd.f32 %v4835, %v4849
    %v4886 = vadd.f32 %v4836, %v4849
    %v4887 = vadd.f32 %v4837, %v4849
    %v4888 = vadd.f32 %v4838, %v4849
    %v4889 = vadd.f32 %v4839, %v4849
    %v4890 = vadd.f32 %v4840, %v4849
    %v4891 = vadd.f32 %v4841, %v4849
    %v4892 = vadd.f32 %v4842, %v4849
    %v4893 = vadd.f32 %v4843, %v4849
    %v4894 = vadd.f32 %v4844, %v4849
    %v4895 = vadd.f32 %v4845, %v4849
    %v4896 = vadd.f32 %v4846, %v4849
    %v4897 = vadd.f32 %v4847, %v4849
    %v4898 = vmul.f32 %v4850, %v4874
    %v4899 = vmul.f32 %v4851, %v4875
    %v4900 = vmul.f32 %v4852, %v4876
    %v4901 = vmul.f32 %v4853, %v4877
    %v4902 = vmul.f32 %v4854, %v4878
    %v4903 = vmul.f32 %v4855, %v4879
    %v4904 = vmul.f32 %v4856, %v4880
    %v4905 = vmul.f32 %v4857, %v4881
    %v4906 = vmul.f32 %v4858, %v4882
    %v4907 = vmul.f32 %v4859, %v4883
    %v4908 = vmul.f32 %v4860, %v4884
    %v4909 = vmul.f32 %v4861, %v4885
    %v4910 = vmul.f32 %v4862, %v4886
    %v4911 = vmul.f32 %v4863, %v4887
    %v4912 = vmul.f32 %v4864, %v4888
    %v4913 = vmul.f32 %v4865, %v4889
    %v4914 = vmul.f32 %v4866, %v4890
    %v4915 = vmul.f32 %v4867, %v4891
    %v4916 = vmul.f32 %v4868, %v4892
    %v4917 = vmul.f32 %v4869, %v4893
    %v4918 = vmul.f32 %v4870, %v4894
    %v4919 = vmul.f32 %v4871, %v4895
    %v4920 = vmul.f32 %v4872, %v4896
    %v4921 = vmul.f32 %v4873, %v4897
    %v4946 = vrot.slane %v4899, 7
    %v4947 = vsel %vm667, %v4946, %v4898
    %v4948 = vrot.slane %v4900, 6
    %v4949 = vsel %vm670, %v4948, %v4947
    %v4950 = vrot.slane %v4901, 5
    %v4951 = vsel %vm673, %v4950, %v4949
    %v4952 = vrot.slane %v4902, 4
    %v4953 = vsel %vm676, %v4952, %v4951
    %v4954 = vrot.slane %v4903, 3
    %v4955 = vsel %vm679, %v4954, %v4953
    %v4956 = vrot.slane %v4904, 2
    %v4957 = vsel %vm682, %v4956, %v4955
    %v4958 = vrot.slane %v4905, 1
    %v4959 = vsel %vm685, %v4958, %v4957
    %v4960 = vrot.slane %v4907, 7
    %v4961 = vsel %vm667, %v4960, %v4906
    %v4962 = vrot.slane %v4908, 6
    %v4963 = vsel %vm670, %v4962, %v4961
    %v4964 = vrot.slane %v4909, 5
    %v4965 = vsel %vm673, %v4964, %v4963
    %v4966 = vrot.slane %v4910, 4
    %v4967 = vsel %vm676, %v4966, %v4965
    %v4968 = vrot.slane %v4911, 3
    %v4969 = vsel %vm679, %v4968, %v4967
    %v4970 = vrot.slane %v4912, 2
    %v4971 = vsel %vm682, %v4970, %v4969
    %v4972 = vrot.slane %v4913, 1
    %v4973 = vsel %vm685, %v4972, %v4971
    %v4974 = vrot.slane %v4915, 7
    %v4975 = vsel %vm667, %v4974, %v4914
    %v4976 = vrot.slane %v4916, 6
    %v4977 = vsel %vm670, %v4976, %v4975
    %v4978 = vrot.slane %v4917, 5
    %v4979 = vsel %vm673, %v4978, %v4977
    %v4980 = vrot.slane %v4918, 4
    %v4981 = vsel %vm676, %v4980, %v4979
    %v4982 = vrot.slane %v4919, 3
    %v4983 = vsel %vm679, %v4982, %v4981
    %v4984 = vrot.slane %v4920, 2
    %v4985 = vsel %vm682, %v4984, %v4983
    %v4986 = vrot.slane %v4921, 1
    %v4987 = vsel %vm685, %v4986, %v4985
    %v4991 = vsel %vm718, %v4959, 0.0
    %4992 = vadd.xlane.f32.xlu0 %v4991
    %v4993 = vpop.xlane.xlu0 %4992
    %v4994 = vsel %vm718, %v4973, 0.0
    %4995 = vadd.xlane.f32.xlu0 %v4994
    %v4996 = vpop.xlane.xlu0 %4995
    %v4997 = vsel %vm718, %v4987, 0.0
    %4998 = vadd.xlane.f32.xlu0 %v4997
    %v4999 = vpop.xlane.xlu0 %4998
    %v5000 = vmul.f32 %v4850, %v4850
    %v5001 = vmul.f32 %v4851, %v4851
    %v5002 = vmul.f32 %v4852, %v4852
    %v5003 = vmul.f32 %v4853, %v4853
    %v5004 = vmul.f32 %v4854, %v4854
    %v5005 = vmul.f32 %v4855, %v4855
    %v5006 = vmul.f32 %v4856, %v4856
    %v5007 = vmul.f32 %v4857, %v4857
    %v5008 = vmul.f32 %v4858, %v4858
    %v5009 = vmul.f32 %v4859, %v4859
    %v5010 = vmul.f32 %v4860, %v4860
    %v5011 = vmul.f32 %v4861, %v4861
    %v5012 = vmul.f32 %v4862, %v4862
    %v5013 = vmul.f32 %v4863, %v4863
    %v5014 = vmul.f32 %v4864, %v4864
    %v5015 = vmul.f32 %v4865, %v4865
    %v5016 = vmul.f32 %v4866, %v4866
    %v5017 = vmul.f32 %v4867, %v4867
    %v5018 = vmul.f32 %v4868, %v4868
    %v5019 = vmul.f32 %v4869, %v4869
    %v5020 = vmul.f32 %v4870, %v4870
    %v5021 = vmul.f32 %v4871, %v4871
    %v5022 = vmul.f32 %v4872, %v4872
    %v5023 = vmul.f32 %v4873, %v4873
    %v5048 = vrot.slane %v5001, 7
    %v5049 = vsel %vm667, %v5048, %v5000
    %v5050 = vrot.slane %v5002, 6
    %v5051 = vsel %vm670, %v5050, %v5049
    %v5052 = vrot.slane %v5003, 5
    %v5053 = vsel %vm673, %v5052, %v5051
    %v5054 = vrot.slane %v5004, 4
    %v5055 = vsel %vm676, %v5054, %v5053
    %v5056 = vrot.slane %v5005, 3
    %v5057 = vsel %vm679, %v5056, %v5055
    %v5058 = vrot.slane %v5006, 2
    %v5059 = vsel %vm682, %v5058, %v5057
    %v5060 = vrot.slane %v5007, 1
    %v5061 = vsel %vm685, %v5060, %v5059
    %v5062 = vrot.slane %v5009, 7
    %v5063 = vsel %vm667, %v5062, %v5008
    %v5064 = vrot.slane %v5010, 6
    %v5065 = vsel %vm670, %v5064, %v5063
    %v5066 = vrot.slane %v5011, 5
    %v5067 = vsel %vm673, %v5066, %v5065
    %v5068 = vrot.slane %v5012, 4
    %v5069 = vsel %vm676, %v5068, %v5067
    %v5070 = vrot.slane %v5013, 3
    %v5071 = vsel %vm679, %v5070, %v5069
    %v5072 = vrot.slane %v5014, 2
    %v5073 = vsel %vm682, %v5072, %v5071
    %v5074 = vrot.slane %v5015, 1
    %v5075 = vsel %vm685, %v5074, %v5073
    %v5076 = vrot.slane %v5017, 7
    %v5077 = vsel %vm667, %v5076, %v5016
    %v5078 = vrot.slane %v5018, 6
    %v5079 = vsel %vm670, %v5078, %v5077
    %v5080 = vrot.slane %v5019, 5
    %v5081 = vsel %vm673, %v5080, %v5079
    %v5082 = vrot.slane %v5020, 4
    %v5083 = vsel %vm676, %v5082, %v5081
    %v5084 = vrot.slane %v5021, 3
    %v5085 = vsel %vm679, %v5084, %v5083
    %v5086 = vrot.slane %v5022, 2
    %v5087 = vsel %vm682, %v5086, %v5085
    %v5088 = vrot.slane %v5023, 1
    %v5089 = vsel %vm685, %v5088, %v5087
    %v5093 = vsel %vm718, %v5061, 0.0
    %5094 = vadd.xlane.f32.xlu0 %v5093
    %v5095 = vpop.xlane.xlu0 %5094
    %v5096 = vsel %vm718, %v5075, 0.0
    %5097 = vadd.xlane.f32.xlu0 %v5096
    %v5098 = vpop.xlane.xlu0 %5097
    %v5099 = vsel %vm718, %v5089, 0.0
    %5100 = vadd.xlane.f32.xlu0 %v5099
    %v5101 = vpop.xlane.xlu0 %5100
    %v5102 = vmul.f32 %v4874, %v4874
    %v5103 = vmul.f32 %v4875, %v4875
    %v5104 = vmul.f32 %v4876, %v4876
    %v5105 = vmul.f32 %v4877, %v4877
    %v5106 = vmul.f32 %v4878, %v4878
    %v5107 = vmul.f32 %v4879, %v4879
    %v5108 = vmul.f32 %v4880, %v4880
    %v5109 = vmul.f32 %v4881, %v4881
    %v5110 = vmul.f32 %v4882, %v4882
    %v5111 = vmul.f32 %v4883, %v4883
    %v5112 = vmul.f32 %v4884, %v4884
    %v5113 = vmul.f32 %v4885, %v4885
    %v5114 = vmul.f32 %v4886, %v4886
    %v5115 = vmul.f32 %v4887, %v4887
    %v5116 = vmul.f32 %v4888, %v4888
    %v5117 = vmul.f32 %v4889, %v4889
    %v5118 = vmul.f32 %v4890, %v4890
    %v5119 = vmul.f32 %v4891, %v4891
    %v5120 = vmul.f32 %v4892, %v4892
    %v5121 = vmul.f32 %v4893, %v4893
    %v5122 = vmul.f32 %v4894, %v4894
    %v5123 = vmul.f32 %v4895, %v4895
    %v5124 = vmul.f32 %v4896, %v4896
    %v5125 = vmul.f32 %v4897, %v4897
    %v5150 = vrot.slane %v5103, 7
    %v5151 = vsel %vm667, %v5150, %v5102
    %v5152 = vrot.slane %v5104, 6
    %v5153 = vsel %vm670, %v5152, %v5151
    %v5154 = vrot.slane %v5105, 5
    %v5155 = vsel %vm673, %v5154, %v5153
    %v5156 = vrot.slane %v5106, 4
    %v5157 = vsel %vm676, %v5156, %v5155
    %v5158 = vrot.slane %v5107, 3
    %v5159 = vsel %vm679, %v5158, %v5157
    %v5160 = vrot.slane %v5108, 2
    %v5161 = vsel %vm682, %v5160, %v5159
    %v5162 = vrot.slane %v5109, 1
    %v5163 = vsel %vm685, %v5162, %v5161
    %v5164 = vrot.slane %v5111, 7
    %v5165 = vsel %vm667, %v5164, %v5110
    %v5166 = vrot.slane %v5112, 6
    %v5167 = vsel %vm670, %v5166, %v5165
    %v5168 = vrot.slane %v5113, 5
    %v5169 = vsel %vm673, %v5168, %v5167
    %v5170 = vrot.slane %v5114, 4
    %v5171 = vsel %vm676, %v5170, %v5169
    %v5172 = vrot.slane %v5115, 3
    %v5173 = vsel %vm679, %v5172, %v5171
    %v5174 = vrot.slane %v5116, 2
    %v5175 = vsel %vm682, %v5174, %v5173
    %v5176 = vrot.slane %v5117, 1
    %v5177 = vsel %vm685, %v5176, %v5175
    %v5178 = vrot.slane %v5119, 7
    %v5179 = vsel %vm667, %v5178, %v5118
    %v5180 = vrot.slane %v5120, 6
    %v5181 = vsel %vm670, %v5180, %v5179
    %v5182 = vrot.slane %v5121, 5
    %v5183 = vsel %vm673, %v5182, %v5181
    %v5184 = vrot.slane %v5122, 4
    %v5185 = vsel %vm676, %v5184, %v5183
    %v5186 = vrot.slane %v5123, 3
    %v5187 = vsel %vm679, %v5186, %v5185
    %v5188 = vrot.slane %v5124, 2
    %v5189 = vsel %vm682, %v5188, %v5187
    %v5190 = vrot.slane %v5125, 1
    %v5191 = vsel %vm685, %v5190, %v5189
    %v5195 = vsel %vm718, %v5163, 0.0
    %5196 = vadd.xlane.f32.xlu0 %v5195
    %v5197 = vpop.xlane.xlu0 %5196
    %v5198 = vsel %vm718, %v5177, 0.0
    %5199 = vadd.xlane.f32.xlu0 %v5198
    %v5200 = vpop.xlane.xlu0 %5199
    %v5201 = vsel %vm718, %v5191, 0.0
    %5202 = vadd.xlane.f32.xlu0 %v5201
    %v5203 = vpop.xlane.xlu0 %5202
    %v5204 = vmul.f32 %v5095, %v5197
    %v5205 = vmul.f32 %v5098, %v5200
    %v5206 = vmul.f32 %v5101, %v5203
    %v5207 = vmax.f32 %v5204, 1e-16
    %v5208 = vmax.f32 %v5205, 1e-16
    %v5209 = vmax.f32 %v5206, 1e-16
    %v5210 = vrsqrt.pop %v5207
    %v5211 = vrsqrt.pop %v5208
    %v5212 = vrsqrt.pop %v5209
    %v5213 = vmul.f32 %v4993, %v5210
    %v5214 = vmul.f32 %v4996, %v5211
    %v5215 = vmul.f32 %v4999, %v5212
    %s5216 = sld [smem:[#allocation3 + $0x1c]]
    %v5217 = vstv %s5216
    %v5218 = vmul.f32 %v33, %v5217
    %v5219 = vmul.f32 %v34, %v5217
    %v5220 = vmul.f32 %v35, %v5217
    %v5221 = vmul.f32 %v36, %v5217
    %v5222 = vmul.f32 %v37, %v5217
    %v5223 = vmul.f32 %v38, %v5217
    %v5224 = vmul.f32 %v39, %v5217
    %v5225 = vmul.f32 %v40, %v5217
    %v5226 = vmul.f32 %v41, %v5217
    %v5227 = vmul.f32 %v42, %v5217
    %v5228 = vmul.f32 %v43, %v5217
    %v5229 = vmul.f32 %v44, %v5217
    %v5230 = vmul.f32 %v45, %v5217
    %v5231 = vmul.f32 %v46, %v5217
    %v5232 = vmul.f32 %v47, %v5217
    %v5233 = vmul.f32 %v48, %v5217
    %v5234 = vmul.f32 %v49, %v5217
    %v5235 = vmul.f32 %v50, %v5217
    %v5236 = vmul.f32 %v51, %v5217
    %v5237 = vmul.f32 %v52, %v5217
    %v5238 = vmul.f32 %v53, %v5217
    %v5239 = vmul.f32 %v54, %v5217
    %v5240 = vmul.f32 %v55, %v5217
    %v5241 = vmul.f32 %v56, %v5217
    %v5242 = vmul.f32 %v82, %v5217
    %v5243 = vmul.f32 %v83, %v5217
    %v5244 = vmul.f32 %v84, %v5217
    %v5245 = vmul.f32 %v85, %v5217
    %v5246 = vmul.f32 %v86, %v5217
    %v5247 = vmul.f32 %v87, %v5217
    %v5248 = vmul.f32 %v88, %v5217
    %v5249 = vmul.f32 %v89, %v5217
    %v5250 = vmul.f32 %v90, %v5217
    %v5251 = vmul.f32 %v91, %v5217
    %v5252 = vmul.f32 %v92, %v5217
    %v5253 = vmul.f32 %v93, %v5217
    %v5254 = vmul.f32 %v94, %v5217
    %v5255 = vmul.f32 %v95, %v5217
    %v5256 = vmul.f32 %v96, %v5217
    %v5257 = vmul.f32 %v97, %v5217
    %v5258 = vmul.f32 %v98, %v5217
    %v5259 = vmul.f32 %v99, %v5217
    %v5260 = vmul.f32 %v100, %v5217
    %v5261 = vmul.f32 %v101, %v5217
    %v5262 = vmul.f32 %v102, %v5217
    %v5263 = vmul.f32 %v103, %v5217
    %v5264 = vmul.f32 %v104, %v5217
    %v5265 = vmul.f32 %v105, %v5217
    %s5266 = sld [smem:[#allocation3 + $0x1d]]
    %v5267 = vstv %s5266
    %v5268 = vmul.f32 %v131, %v5267
    %v5269 = vmul.f32 %v132, %v5267
    %v5270 = vmul.f32 %v133, %v5267
    %v5271 = vmul.f32 %v134, %v5267
    %v5272 = vmul.f32 %v135, %v5267
    %v5273 = vmul.f32 %v136, %v5267
    %v5274 = vmul.f32 %v137, %v5267
    %v5275 = vmul.f32 %v138, %v5267
    %v5276 = vmul.f32 %v139, %v5267
    %v5277 = vmul.f32 %v140, %v5267
    %v5278 = vmul.f32 %v141, %v5267
    %v5279 = vmul.f32 %v142, %v5267
    %v5280 = vmul.f32 %v143, %v5267
    %v5281 = vmul.f32 %v144, %v5267
    %v5282 = vmul.f32 %v145, %v5267
    %v5283 = vmul.f32 %v146, %v5267
    %v5284 = vmul.f32 %v147, %v5267
    %v5285 = vmul.f32 %v148, %v5267
    %v5286 = vmul.f32 %v149, %v5267
    %v5287 = vmul.f32 %v150, %v5267
    %v5288 = vmul.f32 %v151, %v5267
    %v5289 = vmul.f32 %v152, %v5267
    %v5290 = vmul.f32 %v153, %v5267
    %v5291 = vmul.f32 %v154, %v5267
    %v5292 = vadd.f32 %v5218, %v5268
    %v5293 = vadd.f32 %v5219, %v5269
    %v5294 = vadd.f32 %v5220, %v5270
    %v5295 = vadd.f32 %v5221, %v5271
    %v5296 = vadd.f32 %v5222, %v5272
    %v5297 = vadd.f32 %v5223, %v5273
    %v5298 = vadd.f32 %v5224, %v5274
    %v5299 = vadd.f32 %v5225, %v5275
    %v5300 = vadd.f32 %v5226, %v5276
    %v5301 = vadd.f32 %v5227, %v5277
    %v5302 = vadd.f32 %v5228, %v5278
    %v5303 = vadd.f32 %v5229, %v5279
    %v5304 = vadd.f32 %v5230, %v5280
    %v5305 = vadd.f32 %v5231, %v5281
    %v5306 = vadd.f32 %v5232, %v5282
    %v5307 = vadd.f32 %v5233, %v5283
    %v5308 = vadd.f32 %v5234, %v5284
    %v5309 = vadd.f32 %v5235, %v5285
    %v5310 = vadd.f32 %v5236, %v5286
    %v5311 = vadd.f32 %v5237, %v5287
    %v5312 = vadd.f32 %v5238, %v5288
    %v5313 = vadd.f32 %v5239, %v5289
    %v5314 = vadd.f32 %v5240, %v5290
    %v5315 = vadd.f32 %v5241, %v5291
    %v5316 = vmul.f32 %v204, %v5267
    %v5317 = vmul.f32 %v205, %v5267
    %v5318 = vmul.f32 %v206, %v5267
    %v5319 = vmul.f32 %v207, %v5267
    %v5320 = vmul.f32 %v208, %v5267
    %v5321 = vmul.f32 %v209, %v5267
    %v5322 = vmul.f32 %v210, %v5267
    %v5323 = vmul.f32 %v211, %v5267
    %v5324 = vmul.f32 %v212, %v5267
    %v5325 = vmul.f32 %v213, %v5267
    %v5326 = vmul.f32 %v214, %v5267
    %v5327 = vmul.f32 %v215, %v5267
    %v5328 = vmul.f32 %v216, %v5267
    %v5329 = vmul.f32 %v217, %v5267
    %v5330 = vmul.f32 %v218, %v5267
    %v5331 = vmul.f32 %v219, %v5267
    %v5332 = vmul.f32 %v220, %v5267
    %v5333 = vmul.f32 %v221, %v5267
    %v5334 = vmul.f32 %v222, %v5267
    %v5335 = vmul.f32 %v223, %v5267
    %v5336 = vmul.f32 %v224, %v5267
    %v5337 = vmul.f32 %v225, %v5267
    %v5338 = vmul.f32 %v226, %v5267
    %v5339 = vmul.f32 %v227, %v5267
    %v5340 = vadd.f32 %v5242, %v5316
    %v5341 = vadd.f32 %v5243, %v5317
    %v5342 = vadd.f32 %v5244, %v5318
    %v5343 = vadd.f32 %v5245, %v5319
    %v5344 = vadd.f32 %v5246, %v5320
    %v5345 = vadd.f32 %v5247, %v5321
    %v5346 = vadd.f32 %v5248, %v5322
    %v5347 = vadd.f32 %v5249, %v5323
    %v5348 = vadd.f32 %v5250, %v5324
    %v5349 = vadd.f32 %v5251, %v5325
    %v5350 = vadd.f32 %v5252, %v5326
    %v5351 = vadd.f32 %v5253, %v5327
    %v5352 = vadd.f32 %v5254, %v5328
    %v5353 = vadd.f32 %v5255, %v5329
    %v5354 = vadd.f32 %v5256, %v5330
    %v5355 = vadd.f32 %v5257, %v5331
    %v5356 = vadd.f32 %v5258, %v5332
    %v5357 = vadd.f32 %v5259, %v5333
    %v5358 = vadd.f32 %v5260, %v5334
    %v5359 = vadd.f32 %v5261, %v5335
    %v5360 = vadd.f32 %v5262, %v5336
    %v5361 = vadd.f32 %v5263, %v5337
    %v5362 = vadd.f32 %v5264, %v5338
    %v5363 = vadd.f32 %v5265, %v5339
    %s5364 = sld [smem:[#allocation3 + $0x1e]]
    %v5365 = vstv %s5364
    %v5366 = vmul.f32 %v277, %v5365
    %v5367 = vmul.f32 %v278, %v5365
    %v5368 = vmul.f32 %v279, %v5365
    %v5369 = vmul.f32 %v280, %v5365
    %v5370 = vmul.f32 %v281, %v5365
    %v5371 = vmul.f32 %v282, %v5365
    %v5372 = vmul.f32 %v283, %v5365
    %v5373 = vmul.f32 %v284, %v5365
    %v5374 = vmul.f32 %v285, %v5365
    %v5375 = vmul.f32 %v286, %v5365
    %v5376 = vmul.f32 %v287, %v5365
    %v5377 = vmul.f32 %v288, %v5365
    %v5378 = vmul.f32 %v289, %v5365
    %v5379 = vmul.f32 %v290, %v5365
    %v5380 = vmul.f32 %v291, %v5365
    %v5381 = vmul.f32 %v292, %v5365
    %v5382 = vmul.f32 %v293, %v5365
    %v5383 = vmul.f32 %v294, %v5365
    %v5384 = vmul.f32 %v295, %v5365
    %v5385 = vmul.f32 %v296, %v5365
    %v5386 = vmul.f32 %v297, %v5365
    %v5387 = vmul.f32 %v298, %v5365
    %v5388 = vmul.f32 %v299, %v5365
    %v5389 = vmul.f32 %v300, %v5365
    %v5390 = vadd.f32 %v5292, %v5366
    %v5391 = vadd.f32 %v5293, %v5367
    %v5392 = vadd.f32 %v5294, %v5368
    %v5393 = vadd.f32 %v5295, %v5369
    %v5394 = vadd.f32 %v5296, %v5370
    %v5395 = vadd.f32 %v5297, %v5371
    %v5396 = vadd.f32 %v5298, %v5372
    %v5397 = vadd.f32 %v5299, %v5373
    %v5398 = vadd.f32 %v5300, %v5374
    %v5399 = vadd.f32 %v5301, %v5375
    %v5400 = vadd.f32 %v5302, %v5376
    %v5401 = vadd.f32 %v5303, %v5377
    %v5402 = vadd.f32 %v5304, %v5378
    %v5403 = vadd.f32 %v5305, %v5379
    %v5404 = vadd.f32 %v5306, %v5380
    %v5405 = vadd.f32 %v5307, %v5381
    %v5406 = vadd.f32 %v5308, %v5382
    %v5407 = vadd.f32 %v5309, %v5383
    %v5408 = vadd.f32 %v5310, %v5384
    %v5409 = vadd.f32 %v5311, %v5385
    %v5410 = vadd.f32 %v5312, %v5386
    %v5411 = vadd.f32 %v5313, %v5387
    %v5412 = vadd.f32 %v5314, %v5388
    %v5413 = vadd.f32 %v5315, %v5389
    %v5414 = vmul.f32 %v350, %v5365
    %v5415 = vmul.f32 %v351, %v5365
    %v5416 = vmul.f32 %v352, %v5365
    %v5417 = vmul.f32 %v353, %v5365
    %v5418 = vmul.f32 %v354, %v5365
    %v5419 = vmul.f32 %v355, %v5365
    %v5420 = vmul.f32 %v356, %v5365
    %v5421 = vmul.f32 %v357, %v5365
    %v5422 = vmul.f32 %v358, %v5365
    %v5423 = vmul.f32 %v359, %v5365
    %v5424 = vmul.f32 %v360, %v5365
    %v5425 = vmul.f32 %v361, %v5365
    %v5426 = vmul.f32 %v362, %v5365
    %v5427 = vmul.f32 %v363, %v5365
    %v5428 = vmul.f32 %v364, %v5365
    %v5429 = vmul.f32 %v365, %v5365
    %v5430 = vmul.f32 %v366, %v5365
    %v5431 = vmul.f32 %v367, %v5365
    %v5432 = vmul.f32 %v368, %v5365
    %v5433 = vmul.f32 %v369, %v5365
    %v5434 = vmul.f32 %v370, %v5365
    %v5435 = vmul.f32 %v371, %v5365
    %v5436 = vmul.f32 %v372, %v5365
    %v5437 = vmul.f32 %v373, %v5365
    %v5438 = vadd.f32 %v5340, %v5414
    %v5439 = vadd.f32 %v5341, %v5415
    %v5440 = vadd.f32 %v5342, %v5416
    %v5441 = vadd.f32 %v5343, %v5417
    %v5442 = vadd.f32 %v5344, %v5418
    %v5443 = vadd.f32 %v5345, %v5419
    %v5444 = vadd.f32 %v5346, %v5420
    %v5445 = vadd.f32 %v5347, %v5421
    %v5446 = vadd.f32 %v5348, %v5422
    %v5447 = vadd.f32 %v5349, %v5423
    %v5448 = vadd.f32 %v5350, %v5424
    %v5449 = vadd.f32 %v5351, %v5425
    %v5450 = vadd.f32 %v5352, %v5426
    %v5451 = vadd.f32 %v5353, %v5427
    %v5452 = vadd.f32 %v5354, %v5428
    %v5453 = vadd.f32 %v5355, %v5429
    %v5454 = vadd.f32 %v5356, %v5430
    %v5455 = vadd.f32 %v5357, %v5431
    %v5456 = vadd.f32 %v5358, %v5432
    %v5457 = vadd.f32 %v5359, %v5433
    %v5458 = vadd.f32 %v5360, %v5434
    %v5459 = vadd.f32 %v5361, %v5435
    %v5460 = vadd.f32 %v5362, %v5436
    %v5461 = vadd.f32 %v5363, %v5437
    %s5462 = sld [smem:[#allocation3 + $0x1f]]
    %v5463 = vstv %s5462
    %v5464 = vmul.f32 %v423, %v5463
    %v5465 = vmul.f32 %v424, %v5463
    %v5466 = vmul.f32 %v425, %v5463
    %v5467 = vmul.f32 %v426, %v5463
    %v5468 = vmul.f32 %v427, %v5463
    %v5469 = vmul.f32 %v428, %v5463
    %v5470 = vmul.f32 %v429, %v5463
    %v5471 = vmul.f32 %v430, %v5463
    %v5472 = vmul.f32 %v431, %v5463
    %v5473 = vmul.f32 %v432, %v5463
    %v5474 = vmul.f32 %v433, %v5463
    %v5475 = vmul.f32 %v434, %v5463
    %v5476 = vmul.f32 %v435, %v5463
    %v5477 = vmul.f32 %v436, %v5463
    %v5478 = vmul.f32 %v437, %v5463
    %v5479 = vmul.f32 %v438, %v5463
    %v5480 = vmul.f32 %v439, %v5463
    %v5481 = vmul.f32 %v440, %v5463
    %v5482 = vmul.f32 %v441, %v5463
    %v5483 = vmul.f32 %v442, %v5463
    %v5484 = vmul.f32 %v443, %v5463
    %v5485 = vmul.f32 %v444, %v5463
    %v5486 = vmul.f32 %v445, %v5463
    %v5487 = vmul.f32 %v446, %v5463
    %v5488 = vadd.f32 %v5390, %v5464
    %v5489 = vadd.f32 %v5391, %v5465
    %v5490 = vadd.f32 %v5392, %v5466
    %v5491 = vadd.f32 %v5393, %v5467
    %v5492 = vadd.f32 %v5394, %v5468
    %v5493 = vadd.f32 %v5395, %v5469
    %v5494 = vadd.f32 %v5396, %v5470
    %v5495 = vadd.f32 %v5397, %v5471
    %v5496 = vadd.f32 %v5398, %v5472
    %v5497 = vadd.f32 %v5399, %v5473
    %v5498 = vadd.f32 %v5400, %v5474
    %v5499 = vadd.f32 %v5401, %v5475
    %v5500 = vadd.f32 %v5402, %v5476
    %v5501 = vadd.f32 %v5403, %v5477
    %v5502 = vadd.f32 %v5404, %v5478
    %v5503 = vadd.f32 %v5405, %v5479
    %v5504 = vadd.f32 %v5406, %v5480
    %v5505 = vadd.f32 %v5407, %v5481
    %v5506 = vadd.f32 %v5408, %v5482
    %v5507 = vadd.f32 %v5409, %v5483
    %v5508 = vadd.f32 %v5410, %v5484
    %v5509 = vadd.f32 %v5411, %v5485
    %v5510 = vadd.f32 %v5412, %v5486
    %v5511 = vadd.f32 %v5413, %v5487
    %v5512 = vmul.f32 %v496, %v5463
    %v5513 = vmul.f32 %v497, %v5463
    %v5514 = vmul.f32 %v498, %v5463
    %v5515 = vmul.f32 %v499, %v5463
    %v5516 = vmul.f32 %v500, %v5463
    %v5517 = vmul.f32 %v501, %v5463
    %v5518 = vmul.f32 %v502, %v5463
    %v5519 = vmul.f32 %v503, %v5463
    %v5520 = vmul.f32 %v504, %v5463
    %v5521 = vmul.f32 %v505, %v5463
    %v5522 = vmul.f32 %v506, %v5463
    %v5523 = vmul.f32 %v507, %v5463
    %v5524 = vmul.f32 %v508, %v5463
    %v5525 = vmul.f32 %v509, %v5463
    %v5526 = vmul.f32 %v510, %v5463
    %v5527 = vmul.f32 %v511, %v5463
    %v5528 = vmul.f32 %v512, %v5463
    %v5529 = vmul.f32 %v513, %v5463
    %v5530 = vmul.f32 %v514, %v5463
    %v5531 = vmul.f32 %v515, %v5463
    %v5532 = vmul.f32 %v516, %v5463
    %v5533 = vmul.f32 %v517, %v5463
    %v5534 = vmul.f32 %v518, %v5463
    %v5535 = vmul.f32 %v519, %v5463
    %v5536 = vadd.f32 %v5438, %v5512
    %v5537 = vadd.f32 %v5439, %v5513
    %v5538 = vadd.f32 %v5440, %v5514
    %v5539 = vadd.f32 %v5441, %v5515
    %v5540 = vadd.f32 %v5442, %v5516
    %v5541 = vadd.f32 %v5443, %v5517
    %v5542 = vadd.f32 %v5444, %v5518
    %v5543 = vadd.f32 %v5445, %v5519
    %v5544 = vadd.f32 %v5446, %v5520
    %v5545 = vadd.f32 %v5447, %v5521
    %v5546 = vadd.f32 %v5448, %v5522
    %v5547 = vadd.f32 %v5449, %v5523
    %v5548 = vadd.f32 %v5450, %v5524
    %v5549 = vadd.f32 %v5451, %v5525
    %v5550 = vadd.f32 %v5452, %v5526
    %v5551 = vadd.f32 %v5453, %v5527
    %v5552 = vadd.f32 %v5454, %v5528
    %v5553 = vadd.f32 %v5455, %v5529
    %v5554 = vadd.f32 %v5456, %v5530
    %v5555 = vadd.f32 %v5457, %v5531
    %v5556 = vadd.f32 %v5458, %v5532
    %v5557 = vadd.f32 %v5459, %v5533
    %v5558 = vadd.f32 %v5460, %v5534
    %v5559 = vadd.f32 %v5461, %v5535
    %s5560 = sld [smem:[#allocation4 + $0x7]]
    %v5561 = vstv %s5560
    %v5562 = vadd.f32 %v5488, %v5561
    %v5563 = vadd.f32 %v5489, %v5561
    %v5564 = vadd.f32 %v5490, %v5561
    %v5565 = vadd.f32 %v5491, %v5561
    %v5566 = vadd.f32 %v5492, %v5561
    %v5567 = vadd.f32 %v5493, %v5561
    %v5568 = vadd.f32 %v5494, %v5561
    %v5569 = vadd.f32 %v5495, %v5561
    %v5570 = vadd.f32 %v5496, %v5561
    %v5571 = vadd.f32 %v5497, %v5561
    %v5572 = vadd.f32 %v5498, %v5561
    %v5573 = vadd.f32 %v5499, %v5561
    %v5574 = vadd.f32 %v5500, %v5561
    %v5575 = vadd.f32 %v5501, %v5561
    %v5576 = vadd.f32 %v5502, %v5561
    %v5577 = vadd.f32 %v5503, %v5561
    %v5578 = vadd.f32 %v5504, %v5561
    %v5579 = vadd.f32 %v5505, %v5561
    %v5580 = vadd.f32 %v5506, %v5561
    %v5581 = vadd.f32 %v5507, %v5561
    %v5582 = vadd.f32 %v5508, %v5561
    %v5583 = vadd.f32 %v5509, %v5561
    %v5584 = vadd.f32 %v5510, %v5561
    %v5585 = vadd.f32 %v5511, %v5561
    %v5586 = vadd.f32 %v5536, %v5561
    %v5587 = vadd.f32 %v5537, %v5561
    %v5588 = vadd.f32 %v5538, %v5561
    %v5589 = vadd.f32 %v5539, %v5561
    %v5590 = vadd.f32 %v5540, %v5561
    %v5591 = vadd.f32 %v5541, %v5561
    %v5592 = vadd.f32 %v5542, %v5561
    %v5593 = vadd.f32 %v5543, %v5561
    %v5594 = vadd.f32 %v5544, %v5561
    %v5595 = vadd.f32 %v5545, %v5561
    %v5596 = vadd.f32 %v5546, %v5561
    %v5597 = vadd.f32 %v5547, %v5561
    %v5598 = vadd.f32 %v5548, %v5561
    %v5599 = vadd.f32 %v5549, %v5561
    %v5600 = vadd.f32 %v5550, %v5561
    %v5601 = vadd.f32 %v5551, %v5561
    %v5602 = vadd.f32 %v5552, %v5561
    %v5603 = vadd.f32 %v5553, %v5561
    %v5604 = vadd.f32 %v5554, %v5561
    %v5605 = vadd.f32 %v5555, %v5561
    %v5606 = vadd.f32 %v5556, %v5561
    %v5607 = vadd.f32 %v5557, %v5561
    %v5608 = vadd.f32 %v5558, %v5561
    %v5609 = vadd.f32 %v5559, %v5561
    %v5610 = vmul.f32 %v5562, %v5586
    %v5611 = vmul.f32 %v5563, %v5587
    %v5612 = vmul.f32 %v5564, %v5588
    %v5613 = vmul.f32 %v5565, %v5589
    %v5614 = vmul.f32 %v5566, %v5590
    %v5615 = vmul.f32 %v5567, %v5591
    %v5616 = vmul.f32 %v5568, %v5592
    %v5617 = vmul.f32 %v5569, %v5593
    %v5618 = vmul.f32 %v5570, %v5594
    %v5619 = vmul.f32 %v5571, %v5595
    %v5620 = vmul.f32 %v5572, %v5596
    %v5621 = vmul.f32 %v5573, %v5597
    %v5622 = vmul.f32 %v5574, %v5598
    %v5623 = vmul.f32 %v5575, %v5599
    %v5624 = vmul.f32 %v5576, %v5600
    %v5625 = vmul.f32 %v5577, %v5601
    %v5626 = vmul.f32 %v5578, %v5602
    %v5627 = vmul.f32 %v5579, %v5603
    %v5628 = vmul.f32 %v5580, %v5604
    %v5629 = vmul.f32 %v5581, %v5605
    %v5630 = vmul.f32 %v5582, %v5606
    %v5631 = vmul.f32 %v5583, %v5607
    %v5632 = vmul.f32 %v5584, %v5608
    %v5633 = vmul.f32 %v5585, %v5609
    %v5658 = vrot.slane %v5611, 7
    %v5659 = vsel %vm667, %v5658, %v5610
    %v5660 = vrot.slane %v5612, 6
    %v5661 = vsel %vm670, %v5660, %v5659
    %v5662 = vrot.slane %v5613, 5
    %v5663 = vsel %vm673, %v5662, %v5661
    %v5664 = vrot.slane %v5614, 4
    %v5665 = vsel %vm676, %v5664, %v5663
    %v5666 = vrot.slane %v5615, 3
    %v5667 = vsel %vm679, %v5666, %v5665
    %v5668 = vrot.slane %v5616, 2
    %v5669 = vsel %vm682, %v5668, %v5667
    %v5670 = vrot.slane %v5617, 1
    %v5671 = vsel %vm685, %v5670, %v5669
    %v5672 = vrot.slane %v5619, 7
    %v5673 = vsel %vm667, %v5672, %v5618
    %v5674 = vrot.slane %v5620, 6
    %v5675 = vsel %vm670, %v5674, %v5673
    %v5676 = vrot.slane %v5621, 5
    %v5677 = vsel %vm673, %v5676, %v5675
    %v5678 = vrot.slane %v5622, 4
    %v5679 = vsel %vm676, %v5678, %v5677
    %v5680 = vrot.slane %v5623, 3
    %v5681 = vsel %vm679, %v5680, %v5679
    %v5682 = vrot.slane %v5624, 2
    %v5683 = vsel %vm682, %v5682, %v5681
    %v5684 = vrot.slane %v5625, 1
    %v5685 = vsel %vm685, %v5684, %v5683
    %v5686 = vrot.slane %v5627, 7
    %v5687 = vsel %vm667, %v5686, %v5626
    %v5688 = vrot.slane %v5628, 6
    %v5689 = vsel %vm670, %v5688, %v5687
    %v5690 = vrot.slane %v5629, 5
    %v5691 = vsel %vm673, %v5690, %v5689
    %v5692 = vrot.slane %v5630, 4
    %v5693 = vsel %vm676, %v5692, %v5691
    %v5694 = vrot.slane %v5631, 3
    %v5695 = vsel %vm679, %v5694, %v5693
    %v5696 = vrot.slane %v5632, 2
    %v5697 = vsel %vm682, %v5696, %v5695
    %v5698 = vrot.slane %v5633, 1
    %v5699 = vsel %vm685, %v5698, %v5697
    %v5703 = vsel %vm718, %v5671, 0.0
    %5704 = vadd.xlane.f32.xlu0 %v5703
    %v5705 = vpop.xlane.xlu0 %5704
    %v5706 = vsel %vm718, %v5685, 0.0
    %5707 = vadd.xlane.f32.xlu0 %v5706
    %v5708 = vpop.xlane.xlu0 %5707
    %v5709 = vsel %vm718, %v5699, 0.0
    %5710 = vadd.xlane.f32.xlu0 %v5709
    %v5711 = vpop.xlane.xlu0 %5710
    %v5712 = vmul.f32 %v5562, %v5562
    %v5713 = vmul.f32 %v5563, %v5563
    %v5714 = vmul.f32 %v5564, %v5564
    %v5715 = vmul.f32 %v5565, %v5565
    %v5716 = vmul.f32 %v5566, %v5566
    %v5717 = vmul.f32 %v5567, %v5567
    %v5718 = vmul.f32 %v5568, %v5568
    %v5719 = vmul.f32 %v5569, %v5569
    %v5720 = vmul.f32 %v5570, %v5570
    %v5721 = vmul.f32 %v5571, %v5571
    %v5722 = vmul.f32 %v5572, %v5572
    %v5723 = vmul.f32 %v5573, %v5573
    %v5724 = vmul.f32 %v5574, %v5574
    %v5725 = vmul.f32 %v5575, %v5575
    %v5726 = vmul.f32 %v5576, %v5576
    %v5727 = vmul.f32 %v5577, %v5577
    %v5728 = vmul.f32 %v5578, %v5578
    %v5729 = vmul.f32 %v5579, %v5579
    %v5730 = vmul.f32 %v5580, %v5580
    %v5731 = vmul.f32 %v5581, %v5581
    %v5732 = vmul.f32 %v5582, %v5582
    %v5733 = vmul.f32 %v5583, %v5583
    %v5734 = vmul.f32 %v5584, %v5584
    %v5735 = vmul.f32 %v5585, %v5585
    %v5760 = vrot.slane %v5713, 7
    %v5761 = vsel %vm667, %v5760, %v5712
    %v5762 = vrot.slane %v5714, 6
    %v5763 = vsel %vm670, %v5762, %v5761
    %v5764 = vrot.slane %v5715, 5
    %v5765 = vsel %vm673, %v5764, %v5763
    %v5766 = vrot.slane %v5716, 4
    %v5767 = vsel %vm676, %v5766, %v5765
    %v5768 = vrot.slane %v5717, 3
    %v5769 = vsel %vm679, %v5768, %v5767
    %v5770 = vrot.slane %v5718, 2
    %v5771 = vsel %vm682, %v5770, %v5769
    %v5772 = vrot.slane %v5719, 1
    %v5773 = vsel %vm685, %v5772, %v5771
    %v5774 = vrot.slane %v5721, 7
    %v5775 = vsel %vm667, %v5774, %v5720
    %v5776 = vrot.slane %v5722, 6
    %v5777 = vsel %vm670, %v5776, %v5775
    %v5778 = vrot.slane %v5723, 5
    %v5779 = vsel %vm673, %v5778, %v5777
    %v5780 = vrot.slane %v5724, 4
    %v5781 = vsel %vm676, %v5780, %v5779
    %v5782 = vrot.slane %v5725, 3
    %v5783 = vsel %vm679, %v5782, %v5781
    %v5784 = vrot.slane %v5726, 2
    %v5785 = vsel %vm682, %v5784, %v5783
    %v5786 = vrot.slane %v5727, 1
    %v5787 = vsel %vm685, %v5786, %v5785
    %v5788 = vrot.slane %v5729, 7
    %v5789 = vsel %vm667, %v5788, %v5728
    %v5790 = vrot.slane %v5730, 6
    %v5791 = vsel %vm670, %v5790, %v5789
    %v5792 = vrot.slane %v5731, 5
    %v5793 = vsel %vm673, %v5792, %v5791
    %v5794 = vrot.slane %v5732, 4
    %v5795 = vsel %vm676, %v5794, %v5793
    %v5796 = vrot.slane %v5733, 3
    %v5797 = vsel %vm679, %v5796, %v5795
    %v5798 = vrot.slane %v5734, 2
    %v5799 = vsel %vm682, %v5798, %v5797
    %v5800 = vrot.slane %v5735, 1
    %v5801 = vsel %vm685, %v5800, %v5799
    %v5805 = vsel %vm718, %v5773, 0.0
    %5806 = vadd.xlane.f32.xlu0 %v5805
    %v5807 = vpop.xlane.xlu0 %5806
    %v5808 = vsel %vm718, %v5787, 0.0
    %5809 = vadd.xlane.f32.xlu0 %v5808
    %v5810 = vpop.xlane.xlu0 %5809
    %v5811 = vsel %vm718, %v5801, 0.0
    %5812 = vadd.xlane.f32.xlu0 %v5811
    %v5813 = vpop.xlane.xlu0 %5812
    %v5814 = vmul.f32 %v5586, %v5586
    %v5815 = vmul.f32 %v5587, %v5587
    %v5816 = vmul.f32 %v5588, %v5588
    %v5817 = vmul.f32 %v5589, %v5589
    %v5818 = vmul.f32 %v5590, %v5590
    %v5819 = vmul.f32 %v5591, %v5591
    %v5820 = vmul.f32 %v5592, %v5592
    %v5821 = vmul.f32 %v5593, %v5593
    %v5822 = vmul.f32 %v5594, %v5594
    %v5823 = vmul.f32 %v5595, %v5595
    %v5824 = vmul.f32 %v5596, %v5596
    %v5825 = vmul.f32 %v5597, %v5597
    %v5826 = vmul.f32 %v5598, %v5598
    %v5827 = vmul.f32 %v5599, %v5599
    %v5828 = vmul.f32 %v5600, %v5600
    %v5829 = vmul.f32 %v5601, %v5601
    %v5830 = vmul.f32 %v5602, %v5602
    %v5831 = vmul.f32 %v5603, %v5603
    %v5832 = vmul.f32 %v5604, %v5604
    %v5833 = vmul.f32 %v5605, %v5605
    %v5834 = vmul.f32 %v5606, %v5606
    %v5835 = vmul.f32 %v5607, %v5607
    %v5836 = vmul.f32 %v5608, %v5608
    %v5837 = vmul.f32 %v5609, %v5609
    %v5862 = vrot.slane %v5815, 7
    %v5863 = vsel %vm667, %v5862, %v5814
    %v5864 = vrot.slane %v5816, 6
    %v5865 = vsel %vm670, %v5864, %v5863
    %v5866 = vrot.slane %v5817, 5
    %v5867 = vsel %vm673, %v5866, %v5865
    %v5868 = vrot.slane %v5818, 4
    %v5869 = vsel %vm676, %v5868, %v5867
    %v5870 = vrot.slane %v5819, 3
    %v5871 = vsel %vm679, %v5870, %v5869
    %v5872 = vrot.slane %v5820, 2
    %v5873 = vsel %vm682, %v5872, %v5871
    %v5874 = vrot.slane %v5821, 1
    %v5875 = vsel %vm685, %v5874, %v5873
    %v5876 = vrot.slane %v5823, 7
    %v5877 = vsel %vm667, %v5876, %v5822
    %v5878 = vrot.slane %v5824, 6
    %v5879 = vsel %vm670, %v5878, %v5877
    %v5880 = vrot.slane %v5825, 5
    %v5881 = vsel %vm673, %v5880, %v5879
    %v5882 = vrot.slane %v5826, 4
    %v5883 = vsel %vm676, %v5882, %v5881
    %v5884 = vrot.slane %v5827, 3
    %v5885 = vsel %vm679, %v5884, %v5883
    %v5886 = vrot.slane %v5828, 2
    %v5887 = vsel %vm682, %v5886, %v5885
    %v5888 = vrot.slane %v5829, 1
    %v5889 = vsel %vm685, %v5888, %v5887
    %v5890 = vrot.slane %v5831, 7
    %v5891 = vsel %vm667, %v5890, %v5830
    %v5892 = vrot.slane %v5832, 6
    %v5893 = vsel %vm670, %v5892, %v5891
    %v5894 = vrot.slane %v5833, 5
    %v5895 = vsel %vm673, %v5894, %v5893
    %v5896 = vrot.slane %v5834, 4
    %v5897 = vsel %vm676, %v5896, %v5895
    %v5898 = vrot.slane %v5835, 3
    %v5899 = vsel %vm679, %v5898, %v5897
    %v5900 = vrot.slane %v5836, 2
    %v5901 = vsel %vm682, %v5900, %v5899
    %v5902 = vrot.slane %v5837, 1
    %v5903 = vsel %vm685, %v5902, %v5901
    %v5907 = vsel %vm718, %v5875, 0.0
    %5908 = vadd.xlane.f32.xlu0 %v5907
    %v5909 = vpop.xlane.xlu0 %5908
    %v5910 = vsel %vm718, %v5889, 0.0
    %5911 = vadd.xlane.f32.xlu0 %v5910
    %v5912 = vpop.xlane.xlu0 %5911
    %v5913 = vsel %vm718, %v5903, 0.0
    %5914 = vadd.xlane.f32.xlu0 %v5913
    %v5915 = vpop.xlane.xlu0 %5914
    %v5916 = vmul.f32 %v5807, %v5909
    %v5917 = vmul.f32 %v5810, %v5912
    %v5918 = vmul.f32 %v5813, %v5915
    %v5919 = vmax.f32 %v5916, 1e-16
    %v5920 = vmax.f32 %v5917, 1e-16
    %v5921 = vmax.f32 %v5918, 1e-16
    %v5922 = vrsqrt.pop %v5919
    %v5923 = vrsqrt.pop %v5920
    %v5924 = vrsqrt.pop %v5921
    %v5925 = vmul.f32 %v5705, %v5922
    %v5926 = vmul.f32 %v5708, %v5923
    %v5927 = vmul.f32 %v5711, %v5924
    %vm5928 = vcmask 7168
    %v5929 = vsel %vm5928, %v941, %v1653
    %v5930 = vsel %vm5928, %v942, %v1654
    %v5931 = vsel %vm5928, %v943, %v1655
    %vm5932 = vcmask 15360
    %v5933 = vsel %vm5932, %v5929, %v2365
    %v5934 = vsel %vm5932, %v5930, %v2366
    %v5935 = vsel %vm5932, %v5931, %v2367
    %vm5936 = vcmask 23552
    %v5937 = vsel %vm5936, %v5933, %v3077
    %v5938 = vsel %vm5936, %v5934, %v3078
    %v5939 = vsel %vm5936, %v5935, %v3079
    %vm5940 = vcmask 31744
    %v5941 = vsel %vm5940, %v5937, %v3789
    %v5942 = vsel %vm5940, %v5938, %v3790
    %v5943 = vsel %vm5940, %v5939, %v3791
    %vm5944 = vcmask 39936
    %v5945 = vsel %vm5944, %v5941, %v4501
    %v5946 = vsel %vm5944, %v5942, %v4502
    %v5947 = vsel %vm5944, %v5943, %v4503
    %vm5948 = vcmask 48128
    %v5949 = vsel %vm5948, %v5945, %v5213
    %v5950 = vsel %vm5948, %v5946, %v5214
    %v5951 = vsel %vm5948, %v5947, %v5215
    %vm5952 = vcmask 56320
    %v5953 = vsel %vm5952, %v5949, %v5925
    %v5954 = vsel %vm5952, %v5950, %v5926
    %v5955 = vsel %vm5952, %v5951, %v5927
    %vm5956 = vcmask 64512
    %5957 = vst.msk [vmem:[%s3] sm:$0xff] %vm5956, %v5953
    %5958 = vst.msk [vmem:[%s3 + $0x8] sm:$0xff] %vm5956, %v5954
    %5959 = vst.msk [vmem:[%s3 + $0x10] sm:$0xff] %vm5956, %v5955
    // Predicated region
    $region10: #{tpu_custom_call.1} parent=1 // pred_check
      _
    $region11: #{tpu_custom_call.1} parent=1 // pred_check_branch
      %5961 = sbr.rel (0) target = $region13
    $region12: #{tpu_custom_call.1} parent=1 // pred_region
      _
    $region13: #{tpu_custom_call.1} parent=1 // pred_fallthru
      _
    // Predicated region
    $region14: #{tpu_custom_call.1} parent=1 // pred_check
      _
    $region15: #{tpu_custom_call.1} parent=1 // pred_check_branch
      %5963 = sbr.rel (0) target = $region17
    $region16: #{tpu_custom_call.1} parent=1 // pred_region
      _
    $region17: #{tpu_custom_call.1} parent=1 // pred_fallthru
      _
    %5964 = vsyncpa [#allocation6], 1

</llo_original>
